<compile_context>
chip_gen: v7x
topology: tpu7x:2x2x1
jax: 0.10.0
libtpu: 0.0.40
codegen_flags: <defaults>
</compile_context>

<pallas_src>
import functools
import math

import jax
import jax.numpy as jnp
from jax.experimental import pallas as pl
from jax.experimental.pallas import tpu as pltpu


# ---------------------------------------------------------------------------
# Kernel
# ---------------------------------------------------------------------------
def _layernorm_f32(x, w, b, eps=1e-5):
    # x: (N, D) f32, w/b: (1, D) f32
    mu = jnp.mean(x, axis=-1, keepdims=True)
    xc = x - mu
    var = jnp.mean(xc * xc, axis=-1, keepdims=True)
    return xc * jax.lax.rsqrt(var + eps) * w + b


def transformer_layers_kernel(
    # inputs
    x_ref,                                        # (N, D) f32 embeddings, N = bt*S
    ln1w_ref, ln1b_ref,                           # (1, D) f32
    wqkv_ref, bqkv_ref,                           # (D, 3D) bf16 (q cols pre-scaled), (1, 3D) f32
    wo_ref, bo_ref,                               # (D, D) bf16, (1, D) f32
    ln2w_ref, ln2b_ref,                           # (1, D) f32
    wfc_ref, bfc_ref,                             # (D, 4D) bf16, (1, 4D) f32
    wproj_ref, bproj_ref,                         # (4D, D) bf16, (1, D) f32
    lnfw_ref, lnfb_ref,                           # (1, D) f32 final LayerNorm
    # outputs
    o_ref,                                        # (N, D) f32 output == layer carry (resident)
    # scratch
    mask_ref,                                     # VMEM (S, S) f32 causal mask
    *, d_model: int, n_head: int, bt: int, seq: int,
):
    D, H, S = d_model, n_head, seq
    hd = D // H
    N = bt * S
    layer = pl.program_id(1)
    last_layer = pl.num_programs(1) - 1

    # Layer 0 of each batch tile: seed the carry (the layer-invariant output block is
    # VMEM-resident across the whole layer axis) and build the causal mask once.
    @pl.when(layer == 0)
    def _():
        o_ref[...] = x_ref[...]
        row = jax.lax.broadcasted_iota(jnp.int32, (S, S), 0)
        col = jax.lax.broadcasted_iota(jnp.int32, (S, S), 1)
        mask_ref[...] = jnp.where(col <= row, 0.0, -1e30).astype(jnp.float32)

    x = o_ref[...]                                                        # (N, D) f32
    neg_mask = mask_ref[...]                                              # (S, S) f32

    # ---- attention branch: ln_1 -> MultiheadAttention(q=k=v, causal) ----
    h = _layernorm_f32(x, ln1w_ref[...], ln1b_ref[...])
    qkv = jnp.dot(h.astype(jnp.bfloat16), wqkv_ref[...],
                  preferred_element_type=jnp.float32) + bqkv_ref[...]     # (N, 3D) f32
    # 1/sqrt(head_dim) is already folded into wqkv/bqkv q-columns at pack time.
    qkv3 = qkv.reshape(bt, S, 3 * D)          # leading-dim split only (S % 8 == 0)

    ctx_heads = []
    for hh in range(H):                        # static, small (heads only; batch is vectorized)
        c0 = hh * hd
        qh = qkv3[:, :, c0:c0 + hd].astype(jnp.bfloat16)
        kh = qkv3[:, :, D + c0:D + c0 + hd].astype(jnp.bfloat16)
        vh = qkv3[:, :, 2 * D + c0:2 * D + c0 + hd].astype(jnp.bfloat16)
        s = jnp.einsum("bqd,bkd->bqk", qh, kh,
                       preferred_element_type=jnp.float32) + neg_mask[None]  # (bt, S, S)
        s_max = jnp.max(s, axis=-1, keepdims=True)
        e = jnp.exp(s - s_max)
        p = (e * pl.reciprocal(jnp.sum(e, axis=-1, keepdims=True),
                               approx=True)).astype(jnp.bfloat16)
        ctx_heads.append(jnp.einsum("bqk,bkd->bqd", p, vh,
                                    preferred_element_type=jnp.float32))      # (bt, S, hd)
    ctx = ctx_heads[0] if H == 1 else jnp.concatenate(ctx_heads, axis=-1)     # (bt, S, D)
    attn = jnp.dot(ctx.reshape(N, D).astype(jnp.bfloat16), wo_ref[...],
                   preferred_element_type=jnp.float32) + bo_ref[...]          # (N, D)
    x = x + attn

    # ---- MLP branch: ln_2 -> c_fc -> QuickGELU -> c_proj ----
    h2 = _layernorm_f32(x, ln2w_ref[...], ln2b_ref[...])
    g = jnp.dot(h2.astype(jnp.bfloat16), wfc_ref[...],
                preferred_element_type=jnp.float32) + bfc_ref[...]            # (N, 4D) f32
    g = (g * jax.nn.sigmoid(1.702 * g)).astype(jnp.bfloat16)                  # QuickGELU, bf16
    # TODO(synk): for D >= 768 with large batch tiles on v7x (64 MiB VMEM), additionally
    # tile the 4D hidden dim with an inner fori_loop accumulating into the proj output.
    x = x + (jnp.dot(g, wproj_ref[...],
                     preferred_element_type=jnp.float32) + bproj_ref[...])

    o_ref[...] = x                                                            # carry to next layer

    # Fuse the final LayerNorm into the last layer step (overwrites the resident block).
    @pl.when(layer == last_layer)
    def _():
        o_ref[...] = _layernorm_f32(x, lnfw_ref[...], lnfb_ref[...]).astype(o_ref.dtype)


# ---------------------------------------------------------------------------
# Generation-aware sizing
# ---------------------------------------------------------------------------
def _tpu_vmem_bytes():
    try:
        info = pltpu.get_tpu_info()
        for name in ("vmem_capacity_bytes", "vmem_bytes", "vmem_size_bytes"):
            v = getattr(info, name, None)
            if v:
                return int(v)
    except Exception:
        pass
    return 64 * 1024 * 1024          # conservative fallback (v7x per-TC size)


def _choose_block_b(batch, seq, d_model, n_head, vmem_budget_bytes, target_n=768):
    """Largest divisor of `batch` whose estimated per-step VMEM residency fits,
    stopping once N = block_b*seq crosses the compute-bound (weight-streaming) threshold."""
    fit = int(0.75 * vmem_budget_bytes)   # headroom for compiler scratch / pipeline buffers
    D = d_model

    def footprint(bb):
        n = bb * seq
        w = 48 * D * D                         # double-buffered bf16 layer weights
        a = 8 * n * D                          # input block f32, double-buffered
        a += 4 * n * D                         # resident output / carry block
        a += 12 * n * D                        # qkv f32
        a += 16 * n * D + 8 * n * D            # MLP hidden f32 peak + bf16 copy
        a += 8 * n * D                         # attn / proj f32 temporaries
        sc = 12 * bb * n_head * seq * seq      # scores / exp / probs
        return w + a + sc + 4 * seq * seq

    best = 1
    for bb in range(1, batch + 1):
        if batch % bb:
            continue
        if footprint(bb) > fit:
            break
        best = bb
        if bb * seq >= target_n:               # past the MXU-bound threshold: save VMEM
            break
    return best


# ---------------------------------------------------------------------------
# Wrapper
# ---------------------------------------------------------------------------
def run_transformer_stack(x, p, *, n_head, block_b=None):
    """x: (B, S, D) f32 embeddings.  p: packed (pre-transposed / stacked) params."""
    B, S, D = x.shape
    S_pad = ((S + 7) // 8) * 8                 # sublane-align each per-batch row block
    if S_pad != S:
        x = jnp.pad(x, ((0, 0), (0, S_pad - S), (0, 0)))

    vmem_total = _tpu_vmem_bytes()
    vmem_budget = min(int(0.85 * vmem_total), 110 * 1024 * 1024)   # v7x-safe, uses v5e/v6e headroom
    if block_b is None:
        block_b = _choose_block_b(B, S_pad, D, n_head, vmem_budget)
    assert B % block_b == 0, "batch must be divisible by block_b"
    nb = B // block_b
    N = block_b * S_pad
    L = p["wqkv"].shape[0]

    xr = x.reshape(nb, N, D)                   # lane-dense (N, D) blocks, no in-kernel reshape

    kernel = functools.partial(transformer_layers_kernel,
                               d_model=D, n_head=n_head, bt=block_b, seq=S_pad)

    act_map = lambda b, l: (b, 0, 0)           # activation/output block: layer-invariant (carry)
    layer_map = lambda b, l: (l, 0, 0)         # stacked per-layer weights: prefetch next layer
    const_map = lambda b, l: (0, 0)            # final LN params

    weight_names = ["ln1_w", "ln1_b", "wqkv", "bqkv", "wo", "bo",
                    "ln2_w", "ln2_b", "wfc", "bfc", "wproj", "bproj"]
    weights = [p[n] for n in weight_names]
    weight_specs = [pl.BlockSpec((None,) + w.shape[1:], layer_map) for w in weights]
    final_ln = [p["lnf_w"], p["lnf_b"]]
    final_specs = [pl.BlockSpec(w.shape, const_map) for w in final_ln]

    grid_spec = pltpu.PrefetchScalarGridSpec(
        num_scalar_prefetch=0,
        grid=(nb, L),                                   # layer axis innermost (carry)
        in_specs=[pl.BlockSpec((None, N, D), act_map)] + weight_specs + final_specs,
        out_specs=pl.BlockSpec((None, N, D), act_map),
        scratch_shapes=[pltpu.VMEM((S_pad, S_pad), jnp.float32)],   # causal mask only
    )

    out = pl.pallas_call(
        kernel,
        out_shape=jax.ShapeDtypeStruct((nb, N, D), x.dtype),
        grid_spec=grid_spec,
        compiler_params=pltpu.CompilerParams(
            dimension_semantics=("parallel", "arbitrary"),
            vmem_limit_bytes=vmem_budget,
        ),
    )(xr, *weights, *final_ln)
    out = out.reshape(B, S_pad, D)
    return out[:, :S, :]


def transformer_forward(text_ids, params, packed, *, n_head, block_b=None):
    # text_ids: (B, T) int32
    x = jnp.take(params["tok_emb"], text_ids, axis=0)        # (B, T, D) embedding lookup (JAX)
    x = x + params["pos_emb"][None, :, :]
    x = run_transformer_stack(x, packed, n_head=n_head, block_b=block_b)
    eot_idx = jnp.argmax(text_ids, axis=-1)                   # pool at highest token id
    return x[jnp.arange(x.shape[0]), eot_idx]                 # (B, D)


# ---------------------------------------------------------------------------
# Parameters: PyTorch-layout init, then one-time host-side packing
# ---------------------------------------------------------------------------
def init_params(key, *, vocab_size, context_length, emb_dim, layers):
    d = emb_dim
    keys = iter(jax.random.split(key, 2 + layers * 4))
    nrm = lambda k, shape, std: std * jax.random.normal(k, shape, dtype=jnp.float32)

    params = {
        "tok_emb": nrm(next(keys), (vocab_size, d), 0.02),
        "pos_emb": nrm(next(keys), (context_length, d), 0.01),
        "ln_final_w": jnp.ones((d,), jnp.float32),
        "ln_final_b": jnp.zeros((d,), jnp.float32),
        "layers": [],
    }
    for _ in range(layers):
        params["layers"].append({
            "ln1_w": jnp.ones((d,), jnp.float32),
            "ln1_b": jnp.zeros((d,), jnp.float32),
            # nn.MultiheadAttention: in_proj_weight (3d, d), out_proj.weight (d, d)
            "in_proj_w": nrm(next(keys), (3 * d, d), d ** -0.5),
            "in_proj_b": jnp.zeros((3 * d,), jnp.float32),
            "out_proj_w": nrm(next(keys), (d, d), d ** -0.5),
            "out_proj_b": jnp.zeros((d,), jnp.float32),
            "ln2_w": jnp.ones((d,), jnp.float32),
            "ln2_b": jnp.zeros((d,), jnp.float32),
            # mlp: c_fc.weight (4d, d), c_proj.weight (d, 4d)
            "fc_w": nrm(next(keys), (4 * d, d), d ** -0.5),
            "fc_b": jnp.zeros((4 * d,), jnp.float32),
            "proj_w": nrm(next(keys), (d, 4 * d), (4 * d) ** -0.5),
            "proj_b": jnp.zeros((d,), jnp.float32),
        })
    return params


def pack_params(params, *, n_head):
    """Host-side one-time re-layout: stack layers, pre-transpose to contraction-major,
    bf16 matmul weights, and fold 1/sqrt(head_dim) into the q columns of wqkv/bqkv."""
    f32, bf16 = jnp.float32, jnp.bfloat16
    layers = params["layers"]
    d = layers[0]["ln1_w"].shape[0]
    assert d % n_head == 0
    scale = 1.0 / math.sqrt(d // n_head)

    stk = lambda fn: jnp.stack([fn(lp) for lp in layers], axis=0)
    vec = lambda v: v.reshape(1, -1).astype(f32)

    def qkv_w(lp):
        w = lp["in_proj_w"].astype(f32)
        w = w.at[0:d, :].multiply(scale)                  # scale the q rows (torch layout: q first)
        return w.T.astype(bf16)                           # (D, 3D), q columns pre-scaled

    def qkv_b(lp):
        b = lp["in_proj_b"].astype(f32)
        b = b.at[0:d].multiply(scale)
        return b.reshape(1, -1)

    return {
        "ln1_w": stk(lambda p: vec(p["ln1_w"])),          # (L, 1, D)
        "ln1_b": stk(lambda p: vec(p["ln1_b"])),
        "wqkv":  stk(qkv_w),                              # (L, D, 3D) bf16
        "bqkv":  stk(qkv_b),                              # (L, 1, 3D) f32
        "wo":    stk(lambda p: p["out_proj_w"].T.astype(bf16)),   # (L, D, D)
        "bo":    stk(lambda p: vec(p["out_proj_b"])),
        "ln2_w": stk(lambda p: vec(p["ln2_w"])),
        "ln2_b": stk(lambda p: vec(p["ln2_b"])),
        "wfc":   stk(lambda p: p["fc_w"].T.astype(bf16)),         # (L, D, 4D)
        "bfc":   stk(lambda p: vec(p["fc_b"])),
        "wproj": stk(lambda p: p["proj_w"].T.astype(bf16)),       # (L, 4D, D)
        "bproj": stk(lambda p: vec(p["proj_b"])),
        "lnf_w": params["ln_final_w"].reshape(1, -1).astype(f32), # (1, D)
        "lnf_b": params["ln_final_b"].reshape(1, -1).astype(f32),
    }


# ---------------------------------------------------------------------------
if __name__ == "__main__":
    VOCAB = 64
    CONTEXT = 8       # seq length (multiple of 8 -> sublane aligned, no host padding)
    EMB = 128         # d_model   (multiple of 128 -> lane aligned)
    LAYERS = 2
    HEADS = 2         # head_dim = 64
    BATCH = 4

    key = jax.random.PRNGKey(0)
    k_param, k_ids = jax.random.split(key)
    params = init_params(k_param, vocab_size=VOCAB, context_length=CONTEXT,
                         emb_dim=EMB, layers=LAYERS)
    packed = pack_params(params, n_head=HEADS)
    text_ids = jax.random.randint(k_ids, (BATCH, CONTEXT), 1, VOCAB, dtype=jnp.int32)

    out = transformer_forward(text_ids, params, packed, n_head=HEADS)
    out = jax.block_until_ready(out)
    assert out.shape == (BATCH, EMB) and out.dtype == jnp.float32
    assert bool(jnp.all(jnp.isfinite(out)))
    print("KERNEL_OK")
</pallas_src>

<mosaic_0001>
module attributes {stable_mosaic.version = 11 : i64} {
  func.func @transformer_layers_kernel(%arg0: i32, %arg1: i32, %arg2: memref<1x32x128xf32, #tpu.memory_space<vmem>>, %arg3: memref<1x1x128xf32, #tpu.memory_space<vmem>>, %arg4: memref<1x1x128xf32, #tpu.memory_space<vmem>>, %arg5: memref<1x128x384xbf16, #tpu.memory_space<vmem>>, %arg6: memref<1x1x384xf32, #tpu.memory_space<vmem>>, %arg7: memref<1x128x128xbf16, #tpu.memory_space<vmem>>, %arg8: memref<1x1x128xf32, #tpu.memory_space<vmem>>, %arg9: memref<1x1x128xf32, #tpu.memory_space<vmem>>, %arg10: memref<1x1x128xf32, #tpu.memory_space<vmem>>, %arg11: memref<1x128x512xbf16, #tpu.memory_space<vmem>>, %arg12: memref<1x1x512xf32, #tpu.memory_space<vmem>>, %arg13: memref<1x512x128xbf16, #tpu.memory_space<vmem>>, %arg14: memref<1x1x128xf32, #tpu.memory_space<vmem>>, %arg15: memref<1x128xf32, #tpu.memory_space<vmem>>, %arg16: memref<1x128xf32, #tpu.memory_space<vmem>>, %arg17: memref<1x32x128xf32, #tpu.memory_space<vmem>>, %arg18: memref<8x8xf32, #tpu.memory_space<vmem>>) attributes {dimension_semantics = [#tpu.dimension_semantics<parallel>, #tpu.dimension_semantics<arbitrary>], iteration_bounds = array<i64: 1, 2>, scalar_prefetch = 0 : i64, scratch_operands = 1 : i64, tpu.core_type = #tpu.core_type<tc>, window_params = [{transform_indices = @transform_0, window_bounds = array<i64: 1, 32, 128>}, {transform_indices = @transform_1, window_bounds = array<i64: 1, 1, 128>}, {transform_indices = @transform_2, window_bounds = array<i64: 1, 1, 128>}, {transform_indices = @transform_3, window_bounds = array<i64: 1, 128, 384>}, {transform_indices = @transform_4, window_bounds = array<i64: 1, 1, 384>}, {transform_indices = @transform_5, window_bounds = array<i64: 1, 128, 128>}, {transform_indices = @transform_6, window_bounds = array<i64: 1, 1, 128>}, {transform_indices = @transform_7, window_bounds = array<i64: 1, 1, 128>}, {transform_indices = @transform_8, window_bounds = array<i64: 1, 1, 128>}, {transform_indices = @transform_9, window_bounds = array<i64: 1, 128, 512>}, {transform_indices = @transform_10, window_bounds = array<i64: 1, 1, 512>}, {transform_indices = @transform_11, window_bounds = array<i64: 1, 512, 128>}, {transform_indices = @transform_12, window_bounds = array<i64: 1, 1, 128>}, {pipeline_mode = #tpu.pipeline_mode<synchronous>, transform_indices = @transform_13, window_bounds = array<i64: 1, 128>}, {pipeline_mode = #tpu.pipeline_mode<synchronous>, transform_indices = @transform_14, window_bounds = array<i64: 1, 128>}, {transform_indices = @transform_15, window_bounds = array<i64: 1, 32, 128>}]} {
    %c0_i32 = arith.constant 0 : i32
    %0 = arith.cmpi eq, %arg1, %c0_i32 : i32
    %1 = arith.extui %0 : i1 to i32
    %c0_i32_0 = arith.constant 0 : i32
    %2 = arith.cmpi ne, %1, %c0_i32_0 : i32
    scf.if %2 {
      %c0_68 = arith.constant 0 : index
      %c0_69 = arith.constant 0 : index
      %c0_70 = arith.constant 0 : index
      %149 = vector.load %arg2[%c0_68, %c0_69, %c0_70] : memref<1x32x128xf32, #tpu.memory_space<vmem>>, vector<1x32x128xf32>
      %150 = vector.shape_cast %149 : vector<1x32x128xf32> to vector<32x128xf32>
      %c0_71 = arith.constant 0 : index
      %c0_72 = arith.constant 0 : index
      %c0_73 = arith.constant 0 : index
      %151 = vector.load %arg17[%c0_71, %c0_72, %c0_73] : memref<1x32x128xf32, #tpu.memory_space<vmem>>, vector<1x32x128xf32>
      %152 = vector.shape_cast %151 : vector<1x32x128xf32> to vector<32x128xf32>
      %153 = vector.shape_cast %150 : vector<32x128xf32> to vector<1x32x128xf32>
      tpu.vector_store %arg17[%c0_71, %c0_72, %c0_73], %153 {strides = array<i32>} : memref<1x32x128xf32, #tpu.memory_space<vmem>>, vector<1x32x128xf32>,
      %154 = tpu.iota {dimensions = array<i32: 0>} : vector<8x8xi32>
      %155 = tpu.iota {dimensions = array<i32: 1>} : vector<8x8xi32>
      %156 = arith.cmpi sle, %155, %154 : vector<8x8xi32>
      %cst_74 = arith.constant 0.000000e+00 : f32
      %cst_75 = arith.constant -1.000000e+30 : f32
      %157 = vector.broadcast %cst_74 : f32 to vector<8x8xf32>
      %158 = vector.broadcast %cst_75 : f32 to vector<8x8xf32>
      %159 = arith.select %156, %157, %158 : vector<8x8xi1>, vector<8x8xf32>
      %c0_76 = arith.constant 0 : index
      %c0_77 = arith.constant 0 : index
      %160 = vector.load %arg18[%c0_76, %c0_77] : memref<8x8xf32, #tpu.memory_space<vmem>>, vector<8x8xf32>
      tpu.vector_store %arg18[%c0_76, %c0_77], %159 {strides = array<i32>} : memref<8x8xf32, #tpu.memory_space<vmem>>, vector<8x8xf32>,
    } else {
    }
    %c0 = arith.constant 0 : index
    %c0_1 = arith.constant 0 : index
    %c0_2 = arith.constant 0 : index
    %3 = vector.load %arg17[%c0, %c0_1, %c0_2] : memref<1x32x128xf32, #tpu.memory_space<vmem>>, vector<1x32x128xf32>
    %4 = vector.shape_cast %3 : vector<1x32x128xf32> to vector<32x128xf32>
    %c0_3 = arith.constant 0 : index
    %c0_4 = arith.constant 0 : index
    %5 = vector.load %arg18[%c0_3, %c0_4] : memref<8x8xf32, #tpu.memory_space<vmem>>, vector<8x8xf32>
    %c0_5 = arith.constant 0 : index
    %c0_6 = arith.constant 0 : index
    %c0_7 = arith.constant 0 : index
    %6 = vector.load %arg3[%c0_5, %c0_6, %c0_7] : memref<1x1x128xf32, #tpu.memory_space<vmem>>, vector<1x1x128xf32>
    %7 = vector.shape_cast %6 : vector<1x1x128xf32> to vector<1x128xf32>
    %c0_8 = arith.constant 0 : index
    %c0_9 = arith.constant 0 : index
    %c0_10 = arith.constant 0 : index
    %8 = vector.load %arg4[%c0_8, %c0_9, %c0_10] : memref<1x1x128xf32, #tpu.memory_space<vmem>>, vector<1x1x128xf32>
    %9 = vector.shape_cast %8 : vector<1x1x128xf32> to vector<1x128xf32>
    %cst = arith.constant dense<0.000000e+00> : vector<32xf32>
    %10 = vector.multi_reduction <add>, %4, %cst [1] : vector<32x128xf32> to vector<32xf32>
    %11 = vector.shape_cast %10 : vector<32xf32> to vector<32x1xf32>
    %cst_11 = arith.constant 1.280000e+02 : f32
    %12 = vector.broadcast %cst_11 : f32 to vector<32x1xf32>
    %13 = arith.divf %11, %12 : vector<32x1xf32>
    %14 = vector.broadcast %13 : vector<32x1xf32> to vector<32x128xf32>
    %15 = arith.subf %4, %14 : vector<32x128xf32>
    %16 = arith.mulf %15, %15 : vector<32x128xf32>
    %cst_12 = arith.constant dense<0.000000e+00> : vector<32xf32>
    %17 = vector.multi_reduction <add>, %16, %cst_12 [1] : vector<32x128xf32> to vector<32xf32>
    %18 = vector.shape_cast %17 : vector<32xf32> to vector<32x1xf32>
    %cst_13 = arith.constant 1.280000e+02 : f32
    %19 = vector.broadcast %cst_13 : f32 to vector<32x1xf32>
    %20 = arith.divf %18, %19 : vector<32x1xf32>
    %cst_14 = arith.constant 9.99999974E-6 : f32
    %21 = vector.broadcast %cst_14 : f32 to vector<32x1xf32>
    %22 = arith.addf %20, %21 : vector<32x1xf32>
    %23 = math.rsqrt %22 : vector<32x1xf32>
    %24 = vector.broadcast %23 : vector<32x1xf32> to vector<32x128xf32>
    %25 = arith.mulf %15, %24 : vector<32x128xf32>
    %26 = vector.broadcast %7 : vector<1x128xf32> to vector<32x128xf32>
    %27 = arith.mulf %25, %26 : vector<32x128xf32>
    %28 = vector.broadcast %9 : vector<1x128xf32> to vector<32x128xf32>
    %29 = arith.addf %27, %28 : vector<32x128xf32>
    %30 = arith.truncf %29 : vector<32x128xf32> to vector<32x128xbf16>
    %c0_15 = arith.constant 0 : index
    %c0_16 = arith.constant 0 : index
    %c0_17 = arith.constant 0 : index
    %31 = vector.load %arg5[%c0_15, %c0_16, %c0_17] : memref<1x128x384xbf16, #tpu.memory_space<vmem>>, vector<1x128x384xbf16>
    %32 = vector.shape_cast %31 : vector<1x128x384xbf16> to vector<128x384xbf16>
    %cst_18 = arith.constant dense<0.000000e+00> : vector<32x384xf32>
    %33 = tpu.matmul %30, %32, %cst_18 {dimension_numbers = #tpu.dot_dimension_numbers<[1], [0], [0], [1], [0, 0, 1, 1], [], []>} : vector<32x128xbf16>, vector<128x384xbf16>, vector<32x384xf32> -> vector<32x384xf32>
    %c0_19 = arith.constant 0 : index
    %c0_20 = arith.constant 0 : index
    %c0_21 = arith.constant 0 : index
    %34 = vector.load %arg6[%c0_19, %c0_20, %c0_21] : memref<1x1x384xf32, #tpu.memory_space<vmem>>, vector<1x1x384xf32>
    %35 = vector.shape_cast %34 : vector<1x1x384xf32> to vector<1x384xf32>
    %36 = vector.broadcast %35 : vector<1x384xf32> to vector<32x384xf32>
    %37 = arith.addf %33, %36 : vector<32x384xf32>
    %38 = vector.shape_cast %37 : vector<32x384xf32> to vector<4x8x384xf32>
    %39 = vector.extract_strided_slice %38 {offsets = [0, 0, 0], sizes = [4, 8, 64], strides = [1, 1, 1]} : vector<4x8x384xf32> to vector<4x8x64xf32>
    %40 = arith.truncf %39 : vector<4x8x64xf32> to vector<4x8x64xbf16>
    %41 = vector.extract_strided_slice %38 {offsets = [0, 0, 128], sizes = [4, 8, 64], strides = [1, 1, 1]} : vector<4x8x384xf32> to vector<4x8x64xf32>
    %42 = arith.truncf %41 : vector<4x8x64xf32> to vector<4x8x64xbf16>
    %43 = vector.extract_strided_slice %38 {offsets = [0, 0, 256], sizes = [4, 8, 64], strides = [1, 1, 1]} : vector<4x8x384xf32> to vector<4x8x64xf32>
    %44 = arith.truncf %43 : vector<4x8x64xf32> to vector<4x8x64xbf16>
    "tpu.trace_start"() <{level = 10 : i32, message = "bqd,bkd->bqk"}> : () -> ()
    %cst_22 = arith.constant dense<0.000000e+00> : vector<4x8x8xf32>
    %45 = tpu.matmul %40, %42, %cst_22 {dimension_numbers = #tpu.dot_dimension_numbers<[2], [2], [1], [1], [0, 0, 0, 1, 1, 1], [0], [0]>} : vector<4x8x64xbf16>, vector<4x8x64xbf16>, vector<4x8x8xf32> -> vector<4x8x8xf32>
    "tpu.trace_stop"() : () -> ()
    %46 = vector.shape_cast %5 : vector<8x8xf32> to vector<1x8x8xf32>
    %47 = vector.broadcast %46 : vector<1x8x8xf32> to vector<4x8x8xf32>
    %48 = arith.addf %45, %47 : vector<4x8x8xf32>
    %cst_23 = arith.constant dense<0xFF800000> : vector<4x8xf32>
    %49 = vector.multi_reduction <maximumf>, %48, %cst_23 [2] : vector<4x8x8xf32> to vector<4x8xf32>
    %50 = vector.shape_cast %49 : vector<4x8xf32> to vector<4x8x1xf32>
    %51 = vector.broadcast %50 : vector<4x8x1xf32> to vector<4x8x8xf32>
    %52 = arith.subf %48, %51 : vector<4x8x8xf32>
    %53 = math.exp %52 : vector<4x8x8xf32>
    %cst_24 = arith.constant dense<0.000000e+00> : vector<4x8xf32>
    %54 = vector.multi_reduction <add>, %53, %cst_24 [2] : vector<4x8x8xf32> to vector<4x8xf32>
    %55 = vector.shape_cast %54 : vector<4x8xf32> to vector<4x8x1xf32>
    %56 = tpu.reciprocal %55 {approx = true} : vector<4x8x1xf32> -> vector<4x8x1xf32>
    %57 = vector.broadcast %56 : vector<4x8x1xf32> to vector<4x8x8xf32>
    %58 = arith.mulf %53, %57 : vector<4x8x8xf32>
    %59 = arith.truncf %58 : vector<4x8x8xf32> to vector<4x8x8xbf16>
    "tpu.trace_start"() <{level = 10 : i32, message = "bqk,bkd->bqd"}> : () -> ()
    %cst_25 = arith.constant dense<0.000000e+00> : vector<4x8x64xf32>
    %60 = tpu.matmul %59, %44, %cst_25 {dimension_numbers = #tpu.dot_dimension_numbers<[2], [1], [1], [2], [0, 0, 0, 1, 1, 2], [0], [0]>} : vector<4x8x8xbf16>, vector<4x8x64xbf16>, vector<4x8x64xf32> -> vector<4x8x64xf32>
    "tpu.trace_stop"() : () -> ()
    %61 = vector.extract_strided_slice %38 {offsets = [0, 0, 64], sizes = [4, 8, 64], strides = [1, 1, 1]} : vector<4x8x384xf32> to vector<4x8x64xf32>
    %62 = arith.truncf %61 : vector<4x8x64xf32> to vector<4x8x64xbf16>
    %63 = vector.extract_strided_slice %38 {offsets = [0, 0, 192], sizes = [4, 8, 64], strides = [1, 1, 1]} : vector<4x8x384xf32> to vector<4x8x64xf32>
    %64 = arith.truncf %63 : vector<4x8x64xf32> to vector<4x8x64xbf16>
    %65 = vector.extract_strided_slice %38 {offsets = [0, 0, 320], sizes = [4, 8, 64], strides = [1, 1, 1]} : vector<4x8x384xf32> to vector<4x8x64xf32>
    %66 = arith.truncf %65 : vector<4x8x64xf32> to vector<4x8x64xbf16>
    "tpu.trace_start"() <{level = 10 : i32, message = "bqd,bkd->bqk"}> : () -> ()
    %cst_26 = arith.constant dense<0.000000e+00> : vector<4x8x8xf32>
    %67 = tpu.matmul %62, %64, %cst_26 {dimension_numbers = #tpu.dot_dimension_numbers<[2], [2], [1], [1], [0, 0, 0, 1, 1, 1], [0], [0]>} : vector<4x8x64xbf16>, vector<4x8x64xbf16>, vector<4x8x8xf32> -> vector<4x8x8xf32>
    "tpu.trace_stop"() : () -> ()
    %68 = vector.shape_cast %5 : vector<8x8xf32> to vector<1x8x8xf32>
    %69 = vector.broadcast %68 : vector<1x8x8xf32> to vector<4x8x8xf32>
    %70 = arith.addf %67, %69 : vector<4x8x8xf32>
    %cst_27 = arith.constant dense<0xFF800000> : vector<4x8xf32>
    %71 = vector.multi_reduction <maximumf>, %70, %cst_27 [2] : vector<4x8x8xf32> to vector<4x8xf32>
    %72 = vector.shape_cast %71 : vector<4x8xf32> to vector<4x8x1xf32>
    %73 = vector.broadcast %72 : vector<4x8x1xf32> to vector<4x8x8xf32>
    %74 = arith.subf %70, %73 : vector<4x8x8xf32>
    %75 = math.exp %74 : vector<4x8x8xf32>
    %cst_28 = arith.constant dense<0.000000e+00> : vector<4x8xf32>
    %76 = vector.multi_reduction <add>, %75, %cst_28 [2] : vector<4x8x8xf32> to vector<4x8xf32>
    %77 = vector.shape_cast %76 : vector<4x8xf32> to vector<4x8x1xf32>
    %78 = tpu.reciprocal %77 {approx = true} : vector<4x8x1xf32> -> vector<4x8x1xf32>
    %79 = vector.broadcast %78 : vector<4x8x1xf32> to vector<4x8x8xf32>
    %80 = arith.mulf %75, %79 : vector<4x8x8xf32>
    %81 = arith.truncf %80 : vector<4x8x8xf32> to vector<4x8x8xbf16>
    "tpu.trace_start"() <{level = 10 : i32, message = "bqk,bkd->bqd"}> : () -> ()
    %cst_29 = arith.constant dense<0.000000e+00> : vector<4x8x64xf32>
    %82 = tpu.matmul %81, %66, %cst_29 {dimension_numbers = #tpu.dot_dimension_numbers<[2], [1], [1], [2], [0, 0, 0, 1, 1, 2], [0], [0]>} : vector<4x8x8xbf16>, vector<4x8x64xbf16>, vector<4x8x64xf32> -> vector<4x8x64xf32>
    "tpu.trace_stop"() : () -> ()
    %83 = tpu.concatenate %60, %82 in 2 : vector<4x8x64xf32>, vector<4x8x64xf32> -> vector<4x8x128xf32>
    %84 = vector.shape_cast %83 : vector<4x8x128xf32> to vector<32x128xf32>
    %85 = arith.truncf %84 : vector<32x128xf32> to vector<32x128xbf16>
    %c0_30 = arith.constant 0 : index
    %c0_31 = arith.constant 0 : index
    %c0_32 = arith.constant 0 : index
    %86 = vector.load %arg7[%c0_30, %c0_31, %c0_32] : memref<1x128x128xbf16, #tpu.memory_space<vmem>>, vector<1x128x128xbf16>
    %87 = vector.shape_cast %86 : vector<1x128x128xbf16> to vector<128x128xbf16>
    %cst_33 = arith.constant dense<0.000000e+00> : vector<32x128xf32>
    %88 = tpu.matmul %85, %87, %cst_33 {dimension_numbers = #tpu.dot_dimension_numbers<[1], [0], [0], [1], [0, 0, 1, 1], [], []>} : vector<32x128xbf16>, vector<128x128xbf16>, vector<32x128xf32> -> vector<32x128xf32>
    %c0_34 = arith.constant 0 : index
    %c0_35 = arith.constant 0 : index
    %c0_36 = arith.constant 0 : index
    %89 = vector.load %arg8[%c0_34, %c0_35, %c0_36] : memref<1x1x128xf32, #tpu.memory_space<vmem>>, vector<1x1x128xf32>
    %90 = vector.shape_cast %89 : vector<1x1x128xf32> to vector<1x128xf32>
    %91 = vector.broadcast %90 : vector<1x128xf32> to vector<32x128xf32>
    %92 = arith.addf %88, %91 : vector<32x128xf32>
    %93 = arith.addf %4, %92 : vector<32x128xf32>
    %c0_37 = arith.constant 0 : index
    %c0_38 = arith.constant 0 : index
    %c0_39 = arith.constant 0 : index
    %94 = vector.load %arg9[%c0_37, %c0_38, %c0_39] : memref<1x1x128xf32, #tpu.memory_space<vmem>>, vector<1x1x128xf32>
    %95 = vector.shape_cast %94 : vector<1x1x128xf32> to vector<1x128xf32>
    %c0_40 = arith.constant 0 : index
    %c0_41 = arith.constant 0 : index
    %c0_42 = arith.constant 0 : index
    %96 = vector.load %arg10[%c0_40, %c0_41, %c0_42] : memref<1x1x128xf32, #tpu.memory_space<vmem>>, vector<1x1x128xf32>
    %97 = vector.shape_cast %96 : vector<1x1x128xf32> to vector<1x128xf32>
    %cst_43 = arith.constant dense<0.000000e+00> : vector<32xf32>
    %98 = vector.multi_reduction <add>, %93, %cst_43 [1] : vector<32x128xf32> to vector<32xf32>
    %99 = vector.shape_cast %98 : vector<32xf32> to vector<32x1xf32>
    %cst_44 = arith.constant 1.280000e+02 : f32
    %100 = vector.broadcast %cst_44 : f32 to vector<32x1xf32>
    %101 = arith.divf %99, %100 : vector<32x1xf32>
    %102 = vector.broadcast %101 : vector<32x1xf32> to vector<32x128xf32>
    %103 = arith.subf %93, %102 : vector<32x128xf32>
    %104 = arith.mulf %103, %103 : vector<32x128xf32>
    %cst_45 = arith.constant dense<0.000000e+00> : vector<32xf32>
    %105 = vector.multi_reduction <add>, %104, %cst_45 [1] : vector<32x128xf32> to vector<32xf32>
    %106 = vector.shape_cast %105 : vector<32xf32> to vector<32x1xf32>
    %cst_46 = arith.constant 1.280000e+02 : f32
    %107 = vector.broadcast %cst_46 : f32 to vector<32x1xf32>
    %108 = arith.divf %106, %107 : vector<32x1xf32>
    %cst_47 = arith.constant 9.99999974E-6 : f32
    %109 = vector.broadcast %cst_47 : f32 to vector<32x1xf32>
    %110 = arith.addf %108, %109 : vector<32x1xf32>
    %111 = math.rsqrt %110 : vector<32x1xf32>
    %112 = vector.broadcast %111 : vector<32x1xf32> to vector<32x128xf32>
    %113 = arith.mulf %103, %112 : vector<32x128xf32>
    %114 = vector.broadcast %95 : vector<1x128xf32> to vector<32x128xf32>
    %115 = arith.mulf %113, %114 : vector<32x128xf32>
    %116 = vector.broadcast %97 : vector<1x128xf32> to vector<32x128xf32>
    %117 = arith.addf %115, %116 : vector<32x128xf32>
    %118 = arith.truncf %117 : vector<32x128xf32> to vector<32x128xbf16>
    %c0_48 = arith.constant 0 : index
    %c0_49 = arith.constant 0 : index
    %c0_50 = arith.constant 0 : index
    %119 = vector.load %arg11[%c0_48, %c0_49, %c0_50] : memref<1x128x512xbf16, #tpu.memory_space<vmem>>, vector<1x128x512xbf16>
    %120 = vector.shape_cast %119 : vector<1x128x512xbf16> to vector<128x512xbf16>
    %cst_51 = arith.constant dense<0.000000e+00> : vector<32x512xf32>
    %121 = tpu.matmul %118, %120, %cst_51 {dimension_numbers = #tpu.dot_dimension_numbers<[1], [0], [0], [1], [0, 0, 1, 1], [], []>} : vector<32x128xbf16>, vector<128x512xbf16>, vector<32x512xf32> -> vector<32x512xf32>
    %c0_52 = arith.constant 0 : index
    %c0_53 = arith.constant 0 : index
    %c0_54 = arith.constant 0 : index
    %122 = vector.load %arg12[%c0_52, %c0_53, %c0_54] : memref<1x1x512xf32, #tpu.memory_space<vmem>>, vector<1x1x512xf32>
    %123 = vector.shape_cast %122 : vector<1x1x512xf32> to vector<1x512xf32>
    %124 = vector.broadcast %123 : vector<1x512xf32> to vector<32x512xf32>
    %125 = arith.addf %121, %124 : vector<32x512xf32>
    %cst_55 = arith.constant 1.702000e+00 : f32
    %126 = vector.broadcast %cst_55 : f32 to vector<32x512xf32>
    %127 = arith.mulf %126, %125 : vector<32x512xf32>
    %128 = arith.negf %127 : vector<32x512xf32>
    %129 = math.exp %128 : vector<32x512xf32>
    %cst_56 = arith.constant 1.000000e+00 : f32
    %130 = vector.broadcast %cst_56 : f32 to vector<32x512xf32>
    %131 = arith.addf %130, %129 : vector<32x512xf32>
    %132 = arith.divf %130, %131 : vector<32x512xf32>
    %133 = arith.mulf %125, %132 : vector<32x512xf32>
    %134 = arith.truncf %133 : vector<32x512xf32> to vector<32x512xbf16>
    %c0_57 = arith.constant 0 : index
    %c0_58 = arith.constant 0 : index
    %c0_59 = arith.constant 0 : index
    %135 = vector.load %arg13[%c0_57, %c0_58, %c0_59] : memref<1x512x128xbf16, #tpu.memory_space<vmem>>, vector<1x512x128xbf16>
    %136 = vector.shape_cast %135 : vector<1x512x128xbf16> to vector<512x128xbf16>
    %cst_60 = arith.constant dense<0.000000e+00> : vector<32x128xf32>
    %137 = tpu.matmul %134, %136, %cst_60 {dimension_numbers = #tpu.dot_dimension_numbers<[1], [0], [0], [1], [0, 0, 1, 1], [], []>} : vector<32x512xbf16>, vector<512x128xbf16>, vector<32x128xf32> -> vector<32x128xf32>
    %c0_61 = arith.constant 0 : index
    %c0_62 = arith.constant 0 : index
    %c0_63 = arith.constant 0 : index
    %138 = vector.load %arg14[%c0_61, %c0_62, %c0_63] : memref<1x1x128xf32, #tpu.memory_space<vmem>>, vector<1x1x128xf32>
    %139 = vector.shape_cast %138 : vector<1x1x128xf32> to vector<1x128xf32>
    %140 = vector.broadcast %139 : vector<1x128xf32> to vector<32x128xf32>
    %141 = arith.addf %137, %140 : vector<32x128xf32>
    %142 = arith.addf %93, %141 : vector<32x128xf32>
    %c0_64 = arith.constant 0 : index
    %c0_65 = arith.constant 0 : index
    %c0_66 = arith.constant 0 : index
    %143 = vector.load %arg17[%c0_64, %c0_65, %c0_66] : memref<1x32x128xf32, #tpu.memory_space<vmem>>, vector<1x32x128xf32>
    %144 = vector.shape_cast %143 : vector<1x32x128xf32> to vector<32x128xf32>
    %145 = vector.shape_cast %142 : vector<32x128xf32> to vector<1x32x128xf32>
    tpu.vector_store %arg17[%c0_64, %c0_65, %c0_66], %145 {strides = array<i32>} : memref<1x32x128xf32, #tpu.memory_space<vmem>>, vector<1x32x128xf32>,
    %c1_i32 = arith.constant 1 : i32
    %146 = arith.cmpi eq, %arg1, %c1_i32 : i32
    %147 = arith.extui %146 : i1 to i32
    %c0_i32_67 = arith.constant 0 : i32
    %148 = arith.cmpi ne, %147, %c0_i32_67 : i32
    scf.if %148 {
      %c0_68 = arith.constant 0 : index
      %c0_69 = arith.constant 0 : index
      %149 = vector.load %arg15[%c0_68, %c0_69] : memref<1x128xf32, #tpu.memory_space<vmem>>, vector<1x128xf32>
      %c0_70 = arith.constant 0 : index
      %c0_71 = arith.constant 0 : index
      %150 = vector.load %arg16[%c0_70, %c0_71] : memref<1x128xf32, #tpu.memory_space<vmem>>, vector<1x128xf32>
      %cst_72 = arith.constant dense<0.000000e+00> : vector<32xf32>
      %151 = vector.multi_reduction <add>, %142, %cst_72 [1] : vector<32x128xf32> to vector<32xf32>
      %152 = vector.shape_cast %151 : vector<32xf32> to vector<32x1xf32>
      %cst_73 = arith.constant 1.280000e+02 : f32
      %153 = vector.broadcast %cst_73 : f32 to vector<32x1xf32>
      %154 = arith.divf %152, %153 : vector<32x1xf32>
      %155 = vector.broadcast %154 : vector<32x1xf32> to vector<32x128xf32>
      %156 = arith.subf %142, %155 : vector<32x128xf32>
      %157 = arith.mulf %156, %156 : vector<32x128xf32>
      %cst_74 = arith.constant dense<0.000000e+00> : vector<32xf32>
      %158 = vector.multi_reduction <add>, %157, %cst_74 [1] : vector<32x128xf32> to vector<32xf32>
      %159 = vector.shape_cast %158 : vector<32xf32> to vector<32x1xf32>
      %cst_75 = arith.constant 1.280000e+02 : f32
      %160 = vector.broadcast %cst_75 : f32 to vector<32x1xf32>
      %161 = arith.divf %159, %160 : vector<32x1xf32>
      %cst_76 = arith.constant 9.99999974E-6 : f32
      %162 = vector.broadcast %cst_76 : f32 to vector<32x1xf32>
      %163 = arith.addf %161, %162 : vector<32x1xf32>
      %164 = math.rsqrt %163 : vector<32x1xf32>
      %165 = vector.broadcast %164 : vector<32x1xf32> to vector<32x128xf32>
      %166 = arith.mulf %156, %165 : vector<32x128xf32>
      %167 = vector.broadcast %149 : vector<1x128xf32> to vector<32x128xf32>
      %168 = arith.mulf %166, %167 : vector<32x128xf32>
      %169 = vector.broadcast %150 : vector<1x128xf32> to vector<32x128xf32>
      %170 = arith.addf %168, %169 : vector<32x128xf32>
      %c0_77 = arith.constant 0 : index
      %c0_78 = arith.constant 0 : index
      %c0_79 = arith.constant 0 : index
      %171 = vector.load %arg17[%c0_77, %c0_78, %c0_79] : memref<1x32x128xf32, #tpu.memory_space<vmem>>, vector<1x32x128xf32>
      %172 = vector.shape_cast %171 : vector<1x32x128xf32> to vector<32x128xf32>
      %173 = vector.shape_cast %170 : vector<32x128xf32> to vector<1x32x128xf32>
      tpu.vector_store %arg17[%c0_77, %c0_78, %c0_79], %173 {strides = array<i32>} : memref<1x32x128xf32, #tpu.memory_space<vmem>>, vector<1x32x128xf32>,
    } else {
    }
    return
  }
  func.func @transform_0(%arg0: i32, %arg1: i32) -> (i32, i32, i32) {
    %c0_i32 = arith.constant 0 : i32
    %c0_i32_0 = arith.constant 0 : i32
    %c0_i32_1 = arith.constant 0 : i32
    return %arg0, %c0_i32, %c0_i32_0 : i32, i32, i32
  }
  func.func @transform_1(%arg0: i32, %arg1: i32) -> (i32, i32, i32) {
    %c0_i32 = arith.constant 0 : i32
    %c0_i32_0 = arith.constant 0 : i32
    %c0_i32_1 = arith.constant 0 : i32
    return %arg1, %c0_i32, %c0_i32_0 : i32, i32, i32
  }
  func.func @transform_2(%arg0: i32, %arg1: i32) -> (i32, i32, i32) {
    %c0_i32 = arith.constant 0 : i32
    %c0_i32_0 = arith.constant 0 : i32
    %c0_i32_1 = arith.constant 0 : i32
    return %arg1, %c0_i32, %c0_i32_0 : i32, i32, i32
  }
  func.func @transform_3(%arg0: i32, %arg1: i32) -> (i32, i32, i32) {
    %c0_i32 = arith.constant 0 : i32
    %c0_i32_0 = arith.constant 0 : i32
    %c0_i32_1 = arith.constant 0 : i32
    return %arg1, %c0_i32, %c0_i32_0 : i32, i32, i32
  }
  func.func @transform_4(%arg0: i32, %arg1: i32) -> (i32, i32, i32) {
    %c0_i32 = arith.constant 0 : i32
    %c0_i32_0 = arith.constant 0 : i32
    %c0_i32_1 = arith.constant 0 : i32
    return %arg1, %c0_i32, %c0_i32_0 : i32, i32, i32
  }
  func.func @transform_5(%arg0: i32, %arg1: i32) -> (i32, i32, i32) {
    %c0_i32 = arith.constant 0 : i32
    %c0_i32_0 = arith.constant 0 : i32
    %c0_i32_1 = arith.constant 0 : i32
    return %arg1, %c0_i32, %c0_i32_0 : i32, i32, i32
  }
  func.func @transform_6(%arg0: i32, %arg1: i32) -> (i32, i32, i32) {
    %c0_i32 = arith.constant 0 : i32
    %c0_i32_0 = arith.constant 0 : i32
    %c0_i32_1 = arith.constant 0 : i32
    return %arg1, %c0_i32, %c0_i32_0 : i32, i32, i32
  }
  func.func @transform_7(%arg0: i32, %arg1: i32) -> (i32, i32, i32) {
    %c0_i32 = arith.constant 0 : i32
    %c0_i32_0 = arith.constant 0 : i32
    %c0_i32_1 = arith.constant 0 : i32
    return %arg1, %c0_i32, %c0_i32_0 : i32, i32, i32
  }
  func.func @transform_8(%arg0: i32, %arg1: i32) -> (i32, i32, i32) {
    %c0_i32 = arith.constant 0 : i32
    %c0_i32_0 = arith.constant 0 : i32
    %c0_i32_1 = arith.constant 0 : i32
    return %arg1, %c0_i32, %c0_i32_0 : i32, i32, i32
  }
  func.func @transform_9(%arg0: i32, %arg1: i32) -> (i32, i32, i32) {
    %c0_i32 = arith.constant 0 : i32
    %c0_i32_0 = arith.constant 0 : i32
    %c0_i32_1 = arith.constant 0 : i32
    return %arg1, %c0_i32, %c0_i32_0 : i32, i32, i32
  }
  func.func @transform_10(%arg0: i32, %arg1: i32) -> (i32, i32, i32) {
    %c0_i32 = arith.constant 0 : i32
    %c0_i32_0 = arith.constant 0 : i32
    %c0_i32_1 = arith.constant 0 : i32
    return %arg1, %c0_i32, %c0_i32_0 : i32, i32, i32
  }
  func.func @transform_11(%arg0: i32, %arg1: i32) -> (i32, i32, i32) {
    %c0_i32 = arith.constant 0 : i32
    %c0_i32_0 = arith.constant 0 : i32
    %c0_i32_1 = arith.constant 0 : i32
    return %arg1, %c0_i32, %c0_i32_0 : i32, i32, i32
  }
  func.func @transform_12(%arg0: i32, %arg1: i32) -> (i32, i32, i32) {
    %c0_i32 = arith.constant 0 : i32
    %c0_i32_0 = arith.constant 0 : i32
    %c0_i32_1 = arith.constant 0 : i32
    return %arg1, %c0_i32, %c0_i32_0 : i32, i32, i32
  }
  func.func @transform_13(%arg0: i32, %arg1: i32) -> (i32, i32) {
    %c0_i32 = arith.constant 0 : i32
    %c0_i32_0 = arith.constant 0 : i32
    %c0_i32_1 = arith.constant 0 : i32
    return %c0_i32, %c0_i32_0 : i32, i32
  }
  func.func @transform_14(%arg0: i32, %arg1: i32) -> (i32, i32) {
    %c0_i32 = arith.constant 0 : i32
    %c0_i32_0 = arith.constant 0 : i32
    %c0_i32_1 = arith.constant 0 : i32
    return %c0_i32, %c0_i32_0 : i32, i32
  }
  func.func @transform_15(%arg0: i32, %arg1: i32) -> (i32, i32, i32) {
    %c0_i32 = arith.constant 0 : i32
    %c0_i32_0 = arith.constant 0 : i32
    %c0_i32_1 = arith.constant 0 : i32
    return %arg0, %c0_i32, %c0_i32_0 : i32, i32, i32
  }
}

</mosaic_0001>

<llo_original>
// kernel: tpu_custom_call.1
$region0: #{tpu_custom_call.1}
  #allocation0 [shape = 'u32[]', space=smem, size = 0x4, offset = 0x4, fixed_abs, tag = 'smem constant byte address 0x4 - core index']
  #allocation1 [shape = 'u32[144,128]{1,0:T(1,128)}', space=vmem, size = 0x12000, scoped, tag = 'internal scratch']
  #allocation2 [shape = 'f32[8,8]{1,0:T(8,128)}', space=vmem, size = 0x1000, scoped, tag = 'scratch operand']
  %s0 = inlined_call_operand.hbm [shape: f32[1,32,128], index: 0, kind: input, shape index: {}]
  %s1 = inlined_call_operand.hbm [shape: f32[2,1,128], index: 1, kind: input, shape index: {}]
  %s2 = inlined_call_operand.hbm [shape: f32[2,1,128], index: 2, kind: input, shape index: {}]
  %s3 = inlined_call_operand.hbm [shape: bf16[2,128,384], index: 3, kind: input, shape index: {}]
  %s4 = inlined_call_operand.vmem [shape: f32[2,1,384], index: 4, kind: input, shape index: {}]
  %s5 = inlined_call_operand.hbm [shape: bf16[2,128,128], index: 5, kind: input, shape index: {}]
  %s6 = inlined_call_operand.vmem [shape: f32[2,1,128], index: 6, kind: input, shape index: {}]
  %s7 = inlined_call_operand.vmem [shape: f32[2,1,128], index: 7, kind: input, shape index: {}]
  %s8 = inlined_call_operand.vmem [shape: f32[2,1,128], index: 8, kind: input, shape index: {}]
  %s9 = inlined_call_operand.hbm [shape: bf16[2,128,512], index: 9, kind: input, shape index: {}]
  %s10 = inlined_call_operand.vmem [shape: f32[2,1,512], index: 10, kind: input, shape index: {}]
  %s11 = inlined_call_operand.hbm [shape: bf16[2,512,128], index: 11, kind: input, shape index: {}]
  %s12 = inlined_call_operand.vmem [shape: f32[2,1,128], index: 12, kind: input, shape index: {}]
  %s13 = inlined_call_operand.vmem [shape: f32[1,128], index: 13, kind: input, shape index: {}]
  %s14 = inlined_call_operand.vmem [shape: f32[1,128], index: 14, kind: input, shape index: {}]
  %s15 = inlined_call_operand.hbm [shape: f32[1,32,128], index: 15, kind: output, shape index: {}]
  %s16 = sld [smem:[#allocation0]]
  $region129: #{tpu_custom_call.1} parent=0
    _
  %s18 = ssub.s32 1, %s16
  %s19 = scalar_select 0, %s18, %s16
  $region1: #{tpu_custom_call.1} parent=0
    #allocation3 [shape = 'u8[16384]{0}', space=vmem, size = 0x4000, scoped, tag = 'input window, operand 0, single buffered']
    #allocation4 [shape = 's32[2]{0}', space=sflag, size = 0x8, scoped, tag = 'scoped memory for tpu_custom_call.1']
    #allocation5 [shape = 's32[2]{0}', space=sflag, size = 0x8, scoped, tag = 'scoped memory for tpu_custom_call.1']
    #allocation6 [shape = 'u8[1024]{0}', space=vmem, size = 0x400, scoped, tag = 'input window, operand 1']
    #allocation7 [shape = 's32[2]{0}', space=sflag, size = 0x8, scoped, tag = 'scoped memory for tpu_custom_call.1']
    #allocation8 [shape = 'u8[1024]{0}', space=vmem, size = 0x400, scoped, tag = 'input window, operand 2']
    #allocation9 [shape = 'u8[196608]{0}', space=vmem, size = 0x30000, scoped, tag = 'input window, operand 3']
    #allocation10 [shape = 's32[2]{0}', space=sflag, size = 0x8, scoped, tag = 'scoped memory for tpu_custom_call.1']
    #allocation11 [shape = 'u8[65536]{0}', space=vmem, size = 0x10000, scoped, tag = 'input window, operand 5']
    #allocation12 [shape = 'u8[262144]{0}', space=vmem, size = 0x40000, scoped, tag = 'input window, operand 9']
    #allocation13 [shape = 's32[2]{0}', space=sflag, size = 0x8, scoped, tag = 'scoped memory for tpu_custom_call.1']
    #allocation14 [shape = 'u8[262144]{0}', space=vmem, size = 0x40000, scoped, tag = 'input window, operand 11']
    #allocation15 [shape = 'u8[16384]{0}', space=vmem, size = 0x4000, scoped, tag = 'output window, operand 0, single buffered']
    %20 = vsyncpa [#allocation4], 0
    %21 = vsyncpa [#allocation7], 0
    %s22 = scalar_lea.sflag [#allocation7], 1
    %23 = vsyncpa %s22, 0
    %24 = vsyncpa [#allocation10], 0
    %s25 = scalar_lea.sflag [#allocation10], 1
    %26 = vsyncpa %s25, 0
    %27 = vsyncpa [#allocation13], 0
    %s28 = scalar_lea.sflag [#allocation13], 1
    %29 = vsyncpa %s28, 0
    %30 = vsyncpa [#allocation5], 0
    loop: start=0, step=1, limit=4
    $region2: #{tpu_custom_call.1} parent=1 // loop_pre_header
      _
    $region3: #{tpu_custom_call.1} parent=1 // loop_header
      %s32 = sphi 0, %s36
      %p33 = scmp.ge.s32.totalorder %s32, 4
      %s39 = sphi 0, %s51
      %s40 = sphi 0, %s47
      %s41 = sphi 0, %s39
      %s42 = sphi 0, %s40
      %s43 = sphi 0, %s41
      %s44 = sphi 0, %s42
      %s54 = sphi 0, %s56
      %s57 = sphi 0, %s54
      %s58 = sphi 0, %s57
      %s74 = sphi 0, %s58
      %s80 = sphi 0, %s82
      %s83 = sphi 0, %s80
      %s84 = sphi 0, %s83
      %s100 = sphi 0, %s84
      %s106 = sphi 0, %s108
      %s109 = sphi 0, %s106
      %s110 = sphi 0, %s109
      %s126 = sphi 0, %s110
      %s132 = sphi 0, %s134
      %s135 = sphi 0, %s132
      %s136 = sphi 0, %s135
      %s152 = sphi 0, %s136
      %s158 = sphi 0, %s160
      %s161 = sphi 0, %s158
      %s162 = sphi 0, %s161
      %s178 = sphi 0, %s162
      %s184 = sphi 0, %s186
      %s187 = sphi 0, %s184
      %s188 = sphi 0, %s187
      %s204 = sphi 0, %s188
      %s210 = sphi 0, %s212
      %s213 = sphi 0, %s210
      %s214 = sphi 0, %s213
      %s230 = sphi 0, %s214
      %s236 = sphi 0, %s238
      %s239 = sphi 0, %s236
      %s240 = sphi 0, %s239
      %s256 = sphi 0, %s240
      %s262 = sphi 0, %s264
      %s265 = sphi 0, %s262
      %s266 = sphi 0, %s265
      %s282 = sphi 0, %s266
      %s288 = sphi 0, %s290
      %s291 = sphi 0, %s288
      %s292 = sphi 0, %s291
      %s308 = sphi 0, %s292
      %s314 = sphi 0, %s316
      %s317 = sphi 0, %s314
      %s318 = sphi 0, %s317
      %s334 = sphi 0, %s318
      %s340 = sphi 0, %s342
      %s343 = sphi 0, %s340
      %s344 = sphi 0, %s343
      %s360 = sphi 0, %s344
      %s366 = sphi 0, %s368
      %s369 = sphi 0, %s366
      %s370 = sphi 0, %s369
      %s386 = sphi 0, %s370
      %s390 = sphi 0, %s390
      %s392 = sphi 0, %s390
      %s393 = sphi 0, %s392
      %s407 = sphi 0, %s393
      %s411 = sphi 0, %s411
      %s413 = sphi 0, %s411
      %s414 = sphi 0, %s413
      %s428 = sphi 0, %s414
      %s434 = sphi 0, %s436
      %s437 = sphi 0, %s434
      %s438 = sphi 0, %s437
      %s454 = sphi 0, %s438
    $region4: #{tpu_custom_call.1} parent=1 // loop_header_branch
      %35 = sbr.rel (%p33) target = $region8
    $region5: #{tpu_custom_call.1} parent=1 // loop_body
      %s37 = ssub.s32 %s32, 1
      %s38 = ssub.s32 %s32, 2
      %s45 = sadd.s32 1, %s40
      %p46 = scmp.ge.s32.totalorder %s45, 2
      %s47 = scalar_select %p46, 0, %s45
      %s48 = sadd.s32 1, %s39
      %s49 = scalar_select %p46, %s48, %s39
      %p50 = scmp.ge.s32.totalorder %s49, 1
      %s51 = scalar_select %p50, 0, %s49
      %s52 = ssub.s32 %s39, %s51
      %p53 = scmp.eq.s32.totalorder %s52, 0
      %s55 = sadd.s32 %s54, 1
      %s56 = scalar_select %p53, %s54, %s55
      %p59 = pneg %p53
      %p60 = scmp.eq.s32.totalorder %s32, 1
      %p61 = por %p59, %p60
      %p62 = scmp.ne.s32.totalorder %s54, %s57
      %p63 = scmp.eq.s32.totalorder %s32, 0
      %p64 = por %p62, %p63
      %p65 = scmp.ne.s32.totalorder %s54, %s57
      %p66 = scmp.eq.s32.totalorder %s37, 1
      %p67 = por %p65, %p66
      %p68 = scmp.ne.s32.totalorder %s57, %s58
      %p69 = scmp.eq.s32.totalorder %s37, 0
      %p70 = por %p68, %p69
      %p71 = scmp.ne.s32.totalorder %s57, %s58
      %p72 = scmp.eq.s32.totalorder %s38, 1
      %p73 = por %p71, %p72
      %p75 = scmp.ne.s32.totalorder %s58, %s74
      %p76 = scmp.eq.s32.totalorder %s38, 0
      %p77 = por %p75, %p76
      %s78 = ssub.s32 %s40, %s47
      %p79 = scmp.eq.s32.totalorder %s78, 0
      %s81 = sadd.s32 %s80, 1
      %s82 = scalar_select %p79, %s80, %s81
      %p85 = pneg %p79
      %p86 = scmp.eq.s32.totalorder %s32, 1
      %p87 = por %p85, %p86
      %p88 = scmp.ne.s32.totalorder %s80, %s83
      %p89 = scmp.eq.s32.totalorder %s32, 0
      %p90 = por %p88, %p89
      %p91 = scmp.ne.s32.totalorder %s80, %s83
      %p92 = scmp.eq.s32.totalorder %s37, 1
      %p93 = por %p91, %p92
      %p94 = scmp.ne.s32.totalorder %s83, %s84
      %p95 = scmp.eq.s32.totalorder %s37, 0
      %p96 = por %p94, %p95
      %p97 = scmp.ne.s32.totalorder %s83, %s84
      %p98 = scmp.eq.s32.totalorder %s38, 1
      %p99 = por %p97, %p98
      %p101 = scmp.ne.s32.totalorder %s84, %s100
      %p102 = scmp.eq.s32.totalorder %s38, 0
      %p103 = por %p101, %p102
      %s104 = ssub.s32 %s40, %s47
      %p105 = scmp.eq.s32.totalorder %s104, 0
      %s107 = sadd.s32 %s106, 1
      %s108 = scalar_select %p105, %s106, %s107
      %p111 = pneg %p105
      %p112 = scmp.eq.s32.totalorder %s32, 1
      %p113 = por %p111, %p112
      %p114 = scmp.ne.s32.totalorder %s106, %s109
      %p115 = scmp.eq.s32.totalorder %s32, 0
      %p116 = por %p114, %p115
      %p117 = scmp.ne.s32.totalorder %s106, %s109
      %p118 = scmp.eq.s32.totalorder %s37, 1
      %p119 = por %p117, %p118
      %p120 = scmp.ne.s32.totalorder %s109, %s110
      %p121 = scmp.eq.s32.totalorder %s37, 0
      %p122 = por %p120, %p121
      %p123 = scmp.ne.s32.totalorder %s109, %s110
      %p124 = scmp.eq.s32.totalorder %s38, 1
      %p125 = por %p123, %p124
      %p127 = scmp.ne.s32.totalorder %s110, %s126
      %p128 = scmp.eq.s32.totalorder %s38, 0
      %p129 = por %p127, %p128
      %s130 = ssub.s32 %s40, %s47
      %p131 = scmp.eq.s32.totalorder %s130, 0
      %s133 = sadd.s32 %s132, 1
      %s134 = scalar_select %p131, %s132, %s133
      %p137 = pneg %p131
      %p138 = scmp.eq.s32.totalorder %s32, 1
      %p139 = por %p137, %p138
      %p140 = scmp.ne.s32.totalorder %s132, %s135
      %p141 = scmp.eq.s32.totalorder %s32, 0
      %p142 = por %p140, %p141
      %p143 = scmp.ne.s32.totalorder %s132, %s135
      %p144 = scmp.eq.s32.totalorder %s37, 1
      %p145 = por %p143, %p144
      %p146 = scmp.ne.s32.totalorder %s135, %s136
      %p147 = scmp.eq.s32.totalorder %s37, 0
      %p148 = por %p146, %p147
      %p149 = scmp.ne.s32.totalorder %s135, %s136
      %p150 = scmp.eq.s32.totalorder %s38, 1
      %p151 = por %p149, %p150
      %p153 = scmp.ne.s32.totalorder %s136, %s152
      %p154 = scmp.eq.s32.totalorder %s38, 0
      %p155 = por %p153, %p154
      %s156 = ssub.s32 %s40, %s47
      %p157 = scmp.eq.s32.totalorder %s156, 0
      %s159 = sadd.s32 %s158, 1
      %s160 = scalar_select %p157, %s158, %s159
      %p163 = pneg %p157
      %p164 = scmp.eq.s32.totalorder %s32, 1
      %p165 = por %p163, %p164
      %p166 = scmp.ne.s32.totalorder %s158, %s161
      %p167 = scmp.eq.s32.totalorder %s32, 0
      %p168 = por %p166, %p167
      %p169 = scmp.ne.s32.totalorder %s158, %s161
      %p170 = scmp.eq.s32.totalorder %s37, 1
      %p171 = por %p169, %p170
      %p172 = scmp.ne.s32.totalorder %s161, %s162
      %p173 = scmp.eq.s32.totalorder %s37, 0
      %p174 = por %p172, %p173
      %p175 = scmp.ne.s32.totalorder %s161, %s162
      %p176 = scmp.eq.s32.totalorder %s38, 1
      %p177 = por %p175, %p176
      %p179 = scmp.ne.s32.totalorder %s162, %s178
      %p180 = scmp.eq.s32.totalorder %s38, 0
      %p181 = por %p179, %p180
      %s182 = ssub.s32 %s40, %s47
      %p183 = scmp.eq.s32.totalorder %s182, 0
      %s185 = sadd.s32 %s184, 1
      %s186 = scalar_select %p183, %s184, %s185
      %p189 = pneg %p183
      %p190 = scmp.eq.s32.totalorder %s32, 1
      %p191 = por %p189, %p190
      %p192 = scmp.ne.s32.totalorder %s184, %s187
      %p193 = scmp.eq.s32.totalorder %s32, 0
      %p194 = por %p192, %p193
      %p195 = scmp.ne.s32.totalorder %s184, %s187
      %p196 = scmp.eq.s32.totalorder %s37, 1
      %p197 = por %p195, %p196
      %p198 = scmp.ne.s32.totalorder %s187, %s188
      %p199 = scmp.eq.s32.totalorder %s37, 0
      %p200 = por %p198, %p199
      %p201 = scmp.ne.s32.totalorder %s187, %s188
      %p202 = scmp.eq.s32.totalorder %s38, 1
      %p203 = por %p201, %p202
      %p205 = scmp.ne.s32.totalorder %s188, %s204
      %p206 = scmp.eq.s32.totalorder %s38, 0
      %p207 = por %p205, %p206
      %s208 = ssub.s32 %s40, %s47
      %p209 = scmp.eq.s32.totalorder %s208, 0
      %s211 = sadd.s32 %s210, 1
      %s212 = scalar_select %p209, %s210, %s211
      %p215 = pneg %p209
      %p216 = scmp.eq.s32.totalorder %s32, 1
      %p217 = por %p215, %p216
      %p218 = scmp.ne.s32.totalorder %s210, %s213
      %p219 = scmp.eq.s32.totalorder %s32, 0
      %p220 = por %p218, %p219
      %p221 = scmp.ne.s32.totalorder %s210, %s213
      %p222 = scmp.eq.s32.totalorder %s37, 1
      %p223 = por %p221, %p222
      %p224 = scmp.ne.s32.totalorder %s213, %s214
      %p225 = scmp.eq.s32.totalorder %s37, 0
      %p226 = por %p224, %p225
      %p227 = scmp.ne.s32.totalorder %s213, %s214
      %p228 = scmp.eq.s32.totalorder %s38, 1
      %p229 = por %p227, %p228
      %p231 = scmp.ne.s32.totalorder %s214, %s230
      %p232 = scmp.eq.s32.totalorder %s38, 0
      %p233 = por %p231, %p232
      %s234 = ssub.s32 %s40, %s47
      %p235 = scmp.eq.s32.totalorder %s234, 0
      %s237 = sadd.s32 %s236, 1
      %s238 = scalar_select %p235, %s236, %s237
      %p241 = pneg %p235
      %p242 = scmp.eq.s32.totalorder %s32, 1
      %p243 = por %p241, %p242
      %p244 = scmp.ne.s32.totalorder %s236, %s239
      %p245 = scmp.eq.s32.totalorder %s32, 0
      %p246 = por %p244, %p245
      %p247 = scmp.ne.s32.totalorder %s236, %s239
      %p248 = scmp.eq.s32.totalorder %s37, 1
      %p249 = por %p247, %p248
      %p250 = scmp.ne.s32.totalorder %s239, %s240
      %p251 = scmp.eq.s32.totalorder %s37, 0
      %p252 = por %p250, %p251
      %p253 = scmp.ne.s32.totalorder %s239, %s240
      %p254 = scmp.eq.s32.totalorder %s38, 1
      %p255 = por %p253, %p254
      %p257 = scmp.ne.s32.totalorder %s240, %s256
      %p258 = scmp.eq.s32.totalorder %s38, 0
      %p259 = por %p257, %p258
      %s260 = ssub.s32 %s40, %s47
      %p261 = scmp.eq.s32.totalorder %s260, 0
      %s263 = sadd.s32 %s262, 1
      %s264 = scalar_select %p261, %s262, %s263
      %p267 = pneg %p261
      %p268 = scmp.eq.s32.totalorder %s32, 1
      %p269 = por %p267, %p268
      %p270 = scmp.ne.s32.totalorder %s262, %s265
      %p271 = scmp.eq.s32.totalorder %s32, 0
      %p272 = por %p270, %p271
      %p273 = scmp.ne.s32.totalorder %s262, %s265
      %p274 = scmp.eq.s32.totalorder %s37, 1
      %p275 = por %p273, %p274
      %p276 = scmp.ne.s32.totalorder %s265, %s266
      %p277 = scmp.eq.s32.totalorder %s37, 0
      %p278 = por %p276, %p277
      %p279 = scmp.ne.s32.totalorder %s265, %s266
      %p280 = scmp.eq.s32.totalorder %s38, 1
      %p281 = por %p279, %p280
      %p283 = scmp.ne.s32.totalorder %s266, %s282
      %p284 = scmp.eq.s32.totalorder %s38, 0
      %p285 = por %p283, %p284
      %s286 = ssub.s32 %s40, %s47
      %p287 = scmp.eq.s32.totalorder %s286, 0
      %s289 = sadd.s32 %s288, 1
      %s290 = scalar_select %p287, %s288, %s289
      %p293 = pneg %p287
      %p294 = scmp.eq.s32.totalorder %s32, 1
      %p295 = por %p293, %p294
      %p296 = scmp.ne.s32.totalorder %s288, %s291
      %p297 = scmp.eq.s32.totalorder %s32, 0
      %p298 = por %p296, %p297
      %p299 = scmp.ne.s32.totalorder %s288, %s291
      %p300 = scmp.eq.s32.totalorder %s37, 1
      %p301 = por %p299, %p300
      %p302 = scmp.ne.s32.totalorder %s291, %s292
      %p303 = scmp.eq.s32.totalorder %s37, 0
      %p304 = por %p302, %p303
      %p305 = scmp.ne.s32.totalorder %s291, %s292
      %p306 = scmp.eq.s32.totalorder %s38, 1
      %p307 = por %p305, %p306
      %p309 = scmp.ne.s32.totalorder %s292, %s308
      %p310 = scmp.eq.s32.totalorder %s38, 0
      %p311 = por %p309, %p310
      %s312 = ssub.s32 %s40, %s47
      %p313 = scmp.eq.s32.totalorder %s312, 0
      %s315 = sadd.s32 %s314, 1
      %s316 = scalar_select %p313, %s314, %s315
      %p319 = pneg %p313
      %p320 = scmp.eq.s32.totalorder %s32, 1
      %p321 = por %p319, %p320
      %p322 = scmp.ne.s32.totalorder %s314, %s317
      %p323 = scmp.eq.s32.totalorder %s32, 0
      %p324 = por %p322, %p323
      %p325 = scmp.ne.s32.totalorder %s314, %s317
      %p326 = scmp.eq.s32.totalorder %s37, 1
      %p327 = por %p325, %p326
      %p328 = scmp.ne.s32.totalorder %s317, %s318
      %p329 = scmp.eq.s32.totalorder %s37, 0
      %p330 = por %p328, %p329
      %p331 = scmp.ne.s32.totalorder %s317, %s318
      %p332 = scmp.eq.s32.totalorder %s38, 1
      %p333 = por %p331, %p332
      %p335 = scmp.ne.s32.totalorder %s318, %s334
      %p336 = scmp.eq.s32.totalorder %s38, 0
      %p337 = por %p335, %p336
      %s338 = ssub.s32 %s40, %s47
      %p339 = scmp.eq.s32.totalorder %s338, 0
      %s341 = sadd.s32 %s340, 1
      %s342 = scalar_select %p339, %s340, %s341
      %p345 = pneg %p339
      %p346 = scmp.eq.s32.totalorder %s32, 1
      %p347 = por %p345, %p346
      %p348 = scmp.ne.s32.totalorder %s340, %s343
      %p349 = scmp.eq.s32.totalorder %s32, 0
      %p350 = por %p348, %p349
      %p351 = scmp.ne.s32.totalorder %s340, %s343
      %p352 = scmp.eq.s32.totalorder %s37, 1
      %p353 = por %p351, %p352
      %p354 = scmp.ne.s32.totalorder %s343, %s344
      %p355 = scmp.eq.s32.totalorder %s37, 0
      %p356 = por %p354, %p355
      %p357 = scmp.ne.s32.totalorder %s343, %s344
      %p358 = scmp.eq.s32.totalorder %s38, 1
      %p359 = por %p357, %p358
      %p361 = scmp.ne.s32.totalorder %s344, %s360
      %p362 = scmp.eq.s32.totalorder %s38, 0
      %p363 = por %p361, %p362
      %s364 = ssub.s32 %s40, %s47
      %p365 = scmp.eq.s32.totalorder %s364, 0
      %s367 = sadd.s32 %s366, 1
      %s368 = scalar_select %p365, %s366, %s367
      %p371 = pneg %p365
      %p372 = scmp.eq.s32.totalorder %s32, 1
      %p373 = por %p371, %p372
      %p374 = scmp.ne.s32.totalorder %s366, %s369
      %p375 = scmp.eq.s32.totalorder %s32, 0
      %p376 = por %p374, %p375
      %p377 = scmp.ne.s32.totalorder %s366, %s369
      %p378 = scmp.eq.s32.totalorder %s37, 1
      %p379 = por %p377, %p378
      %p380 = scmp.ne.s32.totalorder %s369, %s370
      %p381 = scmp.eq.s32.totalorder %s37, 0
      %p382 = por %p380, %p381
      %p383 = scmp.ne.s32.totalorder %s369, %s370
      %p384 = scmp.eq.s32.totalorder %s38, 1
      %p385 = por %p383, %p384
      %p387 = scmp.ne.s32.totalorder %s370, %s386
      %p388 = scmp.eq.s32.totalorder %s38, 0
      %p389 = por %p387, %p388
      %s391 = sadd.s32 %s390, 1
      %p394 = scmp.eq.s32.totalorder %s32, 1
      %p395 = scmp.ne.s32.totalorder %s390, %s392
      %p396 = scmp.eq.s32.totalorder %s32, 0
      %p397 = por %p395, %p396
      %p398 = scmp.ne.s32.totalorder %s390, %s392
      %p399 = scmp.eq.s32.totalorder %s37, 1
      %p400 = por %p398, %p399
      %p401 = scmp.ne.s32.totalorder %s392, %s393
      %p402 = scmp.eq.s32.totalorder %s37, 0
      %p403 = por %p401, %p402
      %p404 = scmp.ne.s32.totalorder %s392, %s393
      %p405 = scmp.eq.s32.totalorder %s38, 1
      %p406 = por %p404, %p405
      %p408 = scmp.ne.s32.totalorder %s393, %s407
      %p409 = scmp.eq.s32.totalorder %s38, 0
      %p410 = por %p408, %p409
      %s412 = sadd.s32 %s411, 1
      %p415 = scmp.eq.s32.totalorder %s32, 1
      %p416 = scmp.ne.s32.totalorder %s411, %s413
      %p417 = scmp.eq.s32.totalorder %s32, 0
      %p418 = por %p416, %p417
      %p419 = scmp.ne.s32.totalorder %s411, %s413
      %p420 = scmp.eq.s32.totalorder %s37, 1
      %p421 = por %p419, %p420
      %p422 = scmp.ne.s32.totalorder %s413, %s414
      %p423 = scmp.eq.s32.totalorder %s37, 0
      %p424 = por %p422, %p423
      %p425 = scmp.ne.s32.totalorder %s413, %s414
      %p426 = scmp.eq.s32.totalorder %s38, 1
      %p427 = por %p425, %p426
      %p429 = scmp.ne.s32.totalorder %s414, %s428
      %p430 = scmp.eq.s32.totalorder %s38, 0
      %p431 = por %p429, %p430
      %s432 = ssub.s32 %s39, %s51
      %p433 = scmp.eq.s32.totalorder %s432, 0
      %s435 = sadd.s32 %s434, 1
      %s436 = scalar_select %p433, %s434, %s435
      %p439 = pneg %p433
      %p440 = scmp.eq.s32.totalorder %s32, 1
      %p441 = por %p439, %p440
      %p442 = scmp.ne.s32.totalorder %s434, %s437
      %p443 = scmp.eq.s32.totalorder %s32, 0
      %p444 = por %p442, %p443
      %p445 = scmp.ne.s32.totalorder %s434, %s437
      %p446 = scmp.eq.s32.totalorder %s37, 1
      %p447 = por %p445, %p446
      %p448 = scmp.ne.s32.totalorder %s437, %s438
      %p449 = scmp.eq.s32.totalorder %s37, 0
      %p450 = por %p448, %p449
      %p451 = scmp.ne.s32.totalorder %s437, %s438
      %p452 = scmp.eq.s32.totalorder %s38, 1
      %p453 = por %p451, %p452
      %p455 = scmp.ne.s32.totalorder %s438, %s454
      %p456 = scmp.eq.s32.totalorder %s38, 0
      %p457 = por %p455, %p456
      %p458 = scmp.le.s32.totalorder 1, %s32
      %p459 = scmp.lt.s32.totalorder %s32, 3
      %p460 = pnand %p458, %p459
      %p461 = pneg %p460
      // Predicated region
      $region9: #{tpu_custom_call.1} parent=5 // pred_check
        _
      $region10: #{tpu_custom_call.1} parent=5 // pred_check_branch
        %463 = sbr.rel (%p460) target = $region12
      $region11: #{tpu_custom_call.1} parent=5 // pred_region
        %s464 = ssub.s32 %s32, 1
        // Predicated region
        $region13: #{tpu_custom_call.1} parent=11 // pred_check
          %p465 = pneg %p70
        $region14: #{tpu_custom_call.1} parent=11 // pred_check_branch
          %467 = sbr.rel (%p465) target = $region16
        $region15: #{tpu_custom_call.1} parent=11 // pred_region
          %s469 = ssub.s32 512, 512
          %470 = vsyncadd [#allocation4], %s469
          %s471 = smul.addr %s41, 4
          %s472 = smul.addr %s471, 128
          %s473 = scalar_lea.hbm %s0, %s472
          %s474 = sshll.u32 [#allocation3], 4
          %s475 = int_to_ptr.vmem [resolvable:$true] %s474
          %480 = dma.hbm_to_vmem [thread:$0]  %s473, 512, %s475, [#allocation4], 128, 128, 8
        $region16: #{tpu_custom_call.1} parent=11 // pred_fallthru
          _
        // Predicated region
        $region17: #{tpu_custom_call.1} parent=11 // pred_check
          %p481 = pneg %p403
        $region18: #{tpu_custom_call.1} parent=11 // pred_check_branch
          %483 = sbr.rel (%p481) target = $region20
        $region19: #{tpu_custom_call.1} parent=11 // pred_region
          _
        $region20: #{tpu_custom_call.1} parent=11 // pred_fallthru
          _
        // Predicated region
        $region21: #{tpu_custom_call.1} parent=11 // pred_check
          %p484 = pneg %p424
        $region22: #{tpu_custom_call.1} parent=11 // pred_check_branch
          %486 = sbr.rel (%p484) target = $region24
        $region23: #{tpu_custom_call.1} parent=11 // pred_region
          _
        $region24: #{tpu_custom_call.1} parent=11 // pred_fallthru
          _
      $region12: #{tpu_custom_call.1} parent=5 // pred_fallthru
        _
      %p487 = scmp.lt.s32.totalorder %s32, 2
      // Predicated region
      $region25: #{tpu_custom_call.1} parent=5 // pred_check
        %p488 = pneg %p487
      $region26: #{tpu_custom_call.1} parent=5 // pred_check_branch
        %490 = sbr.rel (%p488) target = $region28
      $region27: #{tpu_custom_call.1} parent=5 // pred_region
        // Predicated region
        $region29: #{tpu_custom_call.1} parent=27 // pred_check
          %p491 = pneg %p90
        $region30: #{tpu_custom_call.1} parent=27 // pred_check_branch
          %493 = sbr.rel (%p491) target = $region32
        $region31: #{tpu_custom_call.1} parent=27 // pred_region
          %s494 = sand.u32 %s32, 1
          %s495 = scalar_lea.sflag [#allocation7], %s494
          %s496 = sand.u32 %s80, 1
          %s497 = scalar_lea.vmem [#allocation6], %s496
          %s499 = ssub.s32 16, 16
          %500 = vsyncadd %s495, %s499
          %s501 = smul.addr %s40, 16
          %s502 = scalar_lea.hbm %s1, %s501
          %s504 = sshll.u32 %s497, 4
          %s505 = int_to_ptr.vmem [resolvable:$true] %s504
          %507 = dma.hbm_to_vmem [thread:$0]  %s502, 16, %s505, %s495
        $region32: #{tpu_custom_call.1} parent=27 // pred_fallthru
          _
        // Predicated region
        $region33: #{tpu_custom_call.1} parent=27 // pred_check
          %p508 = pneg %p116
        $region34: #{tpu_custom_call.1} parent=27 // pred_check_branch
          %510 = sbr.rel (%p508) target = $region36
        $region35: #{tpu_custom_call.1} parent=27 // pred_region
          %s511 = sand.u32 %s32, 1
          %s512 = scalar_lea.sflag [#allocation7], %s511
          %s513 = sand.u32 %s106, 1
          %s514 = scalar_lea.vmem [#allocation8], %s513
          %s516 = ssub.s32 16, 16
          %517 = vsyncadd %s512, %s516
          %s518 = smul.addr %s40, 16
          %s519 = scalar_lea.hbm %s2, %s518
          %s521 = sshll.u32 %s514, 4
          %s522 = int_to_ptr.vmem [resolvable:$true] %s521
          %524 = dma.hbm_to_vmem [thread:$0]  %s519, 16, %s522, %s512
        $region36: #{tpu_custom_call.1} parent=27 // pred_fallthru
          _
        // Predicated region
        $region37: #{tpu_custom_call.1} parent=27 // pred_check
          %p525 = pneg %p142
        $region38: #{tpu_custom_call.1} parent=27 // pred_check_branch
          %527 = sbr.rel (%p525) target = $region40
        $region39: #{tpu_custom_call.1} parent=27 // pred_region
          %s528 = sand.u32 %s32, 1
          %s529 = scalar_lea.sflag [#allocation10], %s528
          %s530 = sand.u32 %s132, 1
          %s531 = smul.addr %s530, 192
          %s532 = scalar_lea.vmem [#allocation9], %s531
          %s534 = ssub.s32 3072, 3072
          %535 = vsyncadd %s529, %s534
          %s536 = smul.addr %s40, 48
          %s537 = smul.addr %s536, 64
          %s538 = scalar_lea.hbm %s3, %s537
          %s539 = sshll.u32 %s532, 4
          %s540 = int_to_ptr.vmem [resolvable:$true] %s539
          %545 = dma.hbm_to_vmem [thread:$0]  %s538, 3072, %s540, %s529, 192, 192, 12
        $region40: #{tpu_custom_call.1} parent=27 // pred_fallthru
          _
        // Predicated region
        $region41: #{tpu_custom_call.1} parent=27 // pred_check
          %p546 = pneg %p168
        $region42: #{tpu_custom_call.1} parent=27 // pred_check_branch
          %548 = sbr.rel (%p546) target = $region44
        $region43: #{tpu_custom_call.1} parent=27 // pred_region
          %p549 = scmp.lt.s32.totalorder %s40, 1
          %s550 = scalar_select %p549, %s40, 1
          %s551 = smul.addr %s550, 3
          %s552 = scalar_lea.vmem %s4, %s551
        $region44: #{tpu_custom_call.1} parent=27 // pred_fallthru
          _
        // Predicated region
        $region45: #{tpu_custom_call.1} parent=27 // pred_check
          %p553 = pneg %p194
        $region46: #{tpu_custom_call.1} parent=27 // pred_check_branch
          %555 = sbr.rel (%p553) target = $region48
        $region47: #{tpu_custom_call.1} parent=27 // pred_region
          %s556 = sand.u32 %s32, 1
          %s557 = scalar_lea.sflag [#allocation10], %s556
          %s558 = sand.u32 %s184, 1
          %s559 = smul.addr %s558, 64
          %s560 = scalar_lea.vmem [#allocation11], %s559
          %s562 = ssub.s32 1024, 1024
          %563 = vsyncadd %s557, %s562
          %s564 = smul.addr %s40, 16
          %s565 = smul.addr %s564, 64
          %s566 = scalar_lea.hbm %s5, %s565
          %s567 = sshll.u32 %s560, 4
          %s568 = int_to_ptr.vmem [resolvable:$true] %s567
          %573 = dma.hbm_to_vmem [thread:$0]  %s566, 1024, %s568, %s557, 64, 64, 4
        $region48: #{tpu_custom_call.1} parent=27 // pred_fallthru
          _
        // Predicated region
        $region49: #{tpu_custom_call.1} parent=27 // pred_check
          %p574 = pneg %p220
        $region50: #{tpu_custom_call.1} parent=27 // pred_check_branch
          %576 = sbr.rel (%p574) target = $region52
        $region51: #{tpu_custom_call.1} parent=27 // pred_region
          %p577 = scmp.lt.s32.totalorder %s40, 1
          %s578 = scalar_select %p577, %s40, 1
          %s579 = scalar_lea.vmem %s6, %s578
        $region52: #{tpu_custom_call.1} parent=27 // pred_fallthru
          _
        // Predicated region
        $region53: #{tpu_custom_call.1} parent=27 // pred_check
          %p580 = pneg %p246
        $region54: #{tpu_custom_call.1} parent=27 // pred_check_branch
          %582 = sbr.rel (%p580) target = $region56
        $region55: #{tpu_custom_call.1} parent=27 // pred_region
          %p583 = scmp.lt.s32.totalorder %s40, 1
          %s584 = scalar_select %p583, %s40, 1
          %s585 = scalar_lea.vmem %s7, %s584
        $region56: #{tpu_custom_call.1} parent=27 // pred_fallthru
          _
        // Predicated region
        $region57: #{tpu_custom_call.1} parent=27 // pred_check
          %p586 = pneg %p272
        $region58: #{tpu_custom_call.1} parent=27 // pred_check_branch
          %588 = sbr.rel (%p586) target = $region60
        $region59: #{tpu_custom_call.1} parent=27 // pred_region
          %p589 = scmp.lt.s32.totalorder %s40, 1
          %s590 = scalar_select %p589, %s40, 1
          %s591 = scalar_lea.vmem %s8, %s590
        $region60: #{tpu_custom_call.1} parent=27 // pred_fallthru
          _
        // Predicated region
        $region61: #{tpu_custom_call.1} parent=27 // pred_check
          %p592 = pneg %p298
        $region62: #{tpu_custom_call.1} parent=27 // pred_check_branch
          %594 = sbr.rel (%p592) target = $region64
        $region63: #{tpu_custom_call.1} parent=27 // pred_region
          %s595 = sand.u32 %s32, 1
          %s596 = scalar_lea.sflag [#allocation13], %s595
          %s597 = sand.u32 %s288, 1
          %s598 = smul.addr %s597, 256
          %s599 = scalar_lea.vmem [#allocation12], %s598
          %s601 = ssub.s32 4096, 4096
          %602 = vsyncadd %s596, %s601
          %s603 = smul.addr %s40, 64
          %s604 = smul.addr %s603, 64
          %s605 = scalar_lea.hbm %s9, %s604
          %s606 = sshll.u32 %s599, 4
          %s607 = int_to_ptr.vmem [resolvable:$true] %s606
          %612 = dma.hbm_to_vmem [thread:$0]  %s605, 4096, %s607, %s596, 256, 256, 16
        $region64: #{tpu_custom_call.1} parent=27 // pred_fallthru
          _
        // Predicated region
        $region65: #{tpu_custom_call.1} parent=27 // pred_check
          %p613 = pneg %p324
        $region66: #{tpu_custom_call.1} parent=27 // pred_check_branch
          %615 = sbr.rel (%p613) target = $region68
        $region67: #{tpu_custom_call.1} parent=27 // pred_region
          %p616 = scmp.lt.s32.totalorder %s40, 1
          %s617 = scalar_select %p616, %s40, 1
          %s618 = smul.addr %s617, 4
          %s619 = scalar_lea.vmem %s10, %s618
        $region68: #{tpu_custom_call.1} parent=27 // pred_fallthru
          _
        // Predicated region
        $region69: #{tpu_custom_call.1} parent=27 // pred_check
          %p620 = pneg %p350
        $region70: #{tpu_custom_call.1} parent=27 // pred_check_branch
          %622 = sbr.rel (%p620) target = $region72
        $region71: #{tpu_custom_call.1} parent=27 // pred_region
          %s623 = sand.u32 %s32, 1
          %s624 = scalar_lea.sflag [#allocation13], %s623
          %s625 = sand.u32 %s340, 1
          %s626 = smul.addr %s625, 256
          %s627 = scalar_lea.vmem [#allocation14], %s626
          %s629 = ssub.s32 4096, 4096
          %630 = vsyncadd %s624, %s629
          %s631 = smul.addr %s40, 64
          %s632 = smul.addr %s631, 64
          %s633 = scalar_lea.hbm %s11, %s632
          %s634 = sshll.u32 %s627, 4
          %s635 = int_to_ptr.vmem [resolvable:$true] %s634
          %640 = dma.hbm_to_vmem [thread:$0]  %s633, 4096, %s635, %s624, 64, 64, 4
        $region72: #{tpu_custom_call.1} parent=27 // pred_fallthru
          _
        // Predicated region
        $region73: #{tpu_custom_call.1} parent=27 // pred_check
          %p641 = pneg %p376
        $region74: #{tpu_custom_call.1} parent=27 // pred_check_branch
          %643 = sbr.rel (%p641) target = $region76
        $region75: #{tpu_custom_call.1} parent=27 // pred_region
          %p644 = scmp.lt.s32.totalorder %s40, 1
          %s645 = scalar_select %p644, %s40, 1
          %s646 = scalar_lea.vmem %s12, %s645
        $region76: #{tpu_custom_call.1} parent=27 // pred_fallthru
          _
      $region28: #{tpu_custom_call.1} parent=5 // pred_fallthru
        _
      %p647 = scmp.le.s32.totalorder 1, %s32
      %p648 = scmp.lt.s32.totalorder %s32, 3
      %p649 = pnand %p647, %p648
      %p650 = pneg %p649
      // Predicated region
      $region77: #{tpu_custom_call.1} parent=5 // pred_check
        _
      $region78: #{tpu_custom_call.1} parent=5 // pred_check_branch
        %652 = sbr.rel (%p649) target = $region80
      $region79: #{tpu_custom_call.1} parent=5 // pred_region
        %s653 = ssub.s32 %s32, 1
        // Predicated region
        $region81: #{tpu_custom_call.1} parent=79 // pred_check
          %p654 = pneg %p70
        $region82: #{tpu_custom_call.1} parent=79 // pred_check_branch
          %656 = sbr.rel (%p654) target = $region84
        $region83: #{tpu_custom_call.1} parent=79 // pred_region
          %657 = dma.done [#allocation4], 512
        $region84: #{tpu_custom_call.1} parent=79 // pred_fallthru
          _
        %s658 = sand.u32 %s37, 1
        %s659 = scalar_lea.sflag [#allocation7], %s658
        %s660 = sand.u32 %s83, 1
        %s661 = scalar_lea.vmem [#allocation6], %s660
        // Predicated region
        $region85: #{tpu_custom_call.1} parent=79 // pred_check
          %p662 = pneg %p96
        $region86: #{tpu_custom_call.1} parent=79 // pred_check_branch
          %664 = sbr.rel (%p662) target = $region88
        $region87: #{tpu_custom_call.1} parent=79 // pred_region
          %665 = dma.done %s659, 16
        $region88: #{tpu_custom_call.1} parent=79 // pred_fallthru
          _
        %s666 = sand.u32 %s37, 1
        %s667 = scalar_lea.sflag [#allocation7], %s666
        %s668 = sand.u32 %s109, 1
        %s669 = scalar_lea.vmem [#allocation8], %s668
        // Predicated region
        $region89: #{tpu_custom_call.1} parent=79 // pred_check
          %p670 = pneg %p122
        $region90: #{tpu_custom_call.1} parent=79 // pred_check_branch
          %672 = sbr.rel (%p670) target = $region92
        $region91: #{tpu_custom_call.1} parent=79 // pred_region
          %673 = dma.done %s667, 16
        $region92: #{tpu_custom_call.1} parent=79 // pred_fallthru
          _
        %s674 = sand.u32 %s37, 1
        %s675 = scalar_lea.sflag [#allocation10], %s674
        %s676 = sand.u32 %s135, 1
        %s677 = smul.addr %s676, 192
        %s678 = scalar_lea.vmem [#allocation9], %s677
        // Predicated region
        $region93: #{tpu_custom_call.1} parent=79 // pred_check
          %p679 = pneg %p148
        $region94: #{tpu_custom_call.1} parent=79 // pred_check_branch
          %681 = sbr.rel (%p679) target = $region96
        $region95: #{tpu_custom_call.1} parent=79 // pred_region
          %682 = dma.done %s675, 3072
        $region96: #{tpu_custom_call.1} parent=79 // pred_fallthru
          _
        %s683 = sand.u32 %s37, 1
        %s684 = scalar_lea.sflag [#allocation10], %s683
        %s685 = sand.u32 %s187, 1
        %s686 = smul.addr %s685, 64
        %s687 = scalar_lea.vmem [#allocation11], %s686
        // Predicated region
        $region97: #{tpu_custom_call.1} parent=79 // pred_check
          %p688 = pneg %p200
        $region98: #{tpu_custom_call.1} parent=79 // pred_check_branch
          %690 = sbr.rel (%p688) target = $region100
        $region99: #{tpu_custom_call.1} parent=79 // pred_region
          %691 = dma.done %s684, 1024
        $region100: #{tpu_custom_call.1} parent=79 // pred_fallthru
          _
        %s692 = sand.u32 %s37, 1
        %s693 = scalar_lea.sflag [#allocation13], %s692
        %s694 = sand.u32 %s291, 1
        %s695 = smul.addr %s694, 256
        %s696 = scalar_lea.vmem [#allocation12], %s695
        // Predicated region
        $region101: #{tpu_custom_call.1} parent=79 // pred_check
          %p697 = pneg %p304
        $region102: #{tpu_custom_call.1} parent=79 // pred_check_branch
          %699 = sbr.rel (%p697) target = $region104
        $region103: #{tpu_custom_call.1} parent=79 // pred_region
          %700 = dma.done %s693, 4096
        $region104: #{tpu_custom_call.1} parent=79 // pred_fallthru
          _
        %s701 = sand.u32 %s37, 1
        %s702 = scalar_lea.sflag [#allocation13], %s701
        %s703 = sand.u32 %s343, 1
        %s704 = smul.addr %s703, 256
        %s705 = scalar_lea.vmem [#allocation14], %s704
        // Predicated region
        $region105: #{tpu_custom_call.1} parent=79 // pred_check
          %p706 = pneg %p356
        $region106: #{tpu_custom_call.1} parent=79 // pred_check_branch
          %708 = sbr.rel (%p706) target = $region108
        $region107: #{tpu_custom_call.1} parent=79 // pred_region
          %709 = dma.done %s702, 4096
        $region108: #{tpu_custom_call.1} parent=79 // pred_fallthru
          _
        %p710 = pneg %p70
        %p711 = pneg %p67
        %s712 = sand.u32 %s37, 1
        %s713 = scalar_lea.sflag [#allocation7], %s712
        %s714 = sand.u32 %s83, 1
        %s715 = scalar_lea.vmem [#allocation6], %s714
        %p716 = pneg %p96
        %p717 = pneg %p93
        %s718 = sand.u32 %s37, 1
        %s719 = scalar_lea.sflag [#allocation7], %s718
        %s720 = sand.u32 %s109, 1
        %s721 = scalar_lea.vmem [#allocation8], %s720
        %p722 = pneg %p122
        %p723 = pneg %p119
        %s724 = sand.u32 %s37, 1
        %s725 = scalar_lea.sflag [#allocation10], %s724
        %s726 = sand.u32 %s135, 1
        %s727 = smul.addr %s726, 192
        %s728 = scalar_lea.vmem [#allocation9], %s727
        %p729 = pneg %p148
        %p730 = pneg %p145
        %p731 = scmp.lt.s32.totalorder %s42, 1
        %s732 = scalar_select %p731, %s42, 1
        %s733 = smul.addr %s732, 3
        %s734 = scalar_lea.vmem %s4, %s733
        %p735 = pneg %p174
        %p736 = pneg %p171
        %s737 = sand.u32 %s37, 1
        %s738 = scalar_lea.sflag [#allocation10], %s737
        %s739 = sand.u32 %s187, 1
        %s740 = smul.addr %s739, 64
        %s741 = scalar_lea.vmem [#allocation11], %s740
        %p742 = pneg %p200
        %p743 = pneg %p197
        %p744 = scmp.lt.s32.totalorder %s42, 1
        %s745 = scalar_select %p744, %s42, 1
        %s746 = scalar_lea.vmem %s6, %s745
        %p747 = pneg %p226
        %p748 = pneg %p223
        %p749 = scmp.lt.s32.totalorder %s42, 1
        %s750 = scalar_select %p749, %s42, 1
        %s751 = scalar_lea.vmem %s7, %s750
        %p752 = pneg %p252
        %p753 = pneg %p249
        %p754 = scmp.lt.s32.totalorder %s42, 1
        %s755 = scalar_select %p754, %s42, 1
        %s756 = scalar_lea.vmem %s8, %s755
        %p757 = pneg %p278
        %p758 = pneg %p275
        %s759 = sand.u32 %s37, 1
        %s760 = scalar_lea.sflag [#allocation13], %s759
        %s761 = sand.u32 %s291, 1
        %s762 = smul.addr %s761, 256
        %s763 = scalar_lea.vmem [#allocation12], %s762
        %p764 = pneg %p304
        %p765 = pneg %p301
        %p766 = scmp.lt.s32.totalorder %s42, 1
        %s767 = scalar_select %p766, %s42, 1
        %s768 = smul.addr %s767, 4
        %s769 = scalar_lea.vmem %s10, %s768
        %p770 = pneg %p330
        %p771 = pneg %p327
        %s772 = sand.u32 %s37, 1
        %s773 = scalar_lea.sflag [#allocation13], %s772
        %s774 = sand.u32 %s343, 1
        %s775 = smul.addr %s774, 256
        %s776 = scalar_lea.vmem [#allocation14], %s775
        %p777 = pneg %p356
        %p778 = pneg %p353
        %p779 = scmp.lt.s32.totalorder %s42, 1
        %s780 = scalar_select %p779, %s42, 1
        %s781 = scalar_lea.vmem %s12, %s780
        %p782 = pneg %p382
        %p783 = pneg %p379
        %p784 = pneg %p403
        %p785 = pneg %p400
        %p786 = pneg %p424
        %p787 = pneg %p421
        %p788 = pneg %p450
        %p789 = pneg %p447
        %p790 = scmp.lt.s32.totalorder %s42, 1
        %s791 = scalar_select %p790, %s42, 1
        %s792 = smul.addr %s791, 3
        %s793 = scalar_lea.vmem %s4, %s792
        %p794 = scmp.lt.s32.totalorder %s42, 1
        %s795 = scalar_select %p794, %s42, 1
        %s796 = scalar_lea.vmem %s6, %s795
        %p797 = scmp.lt.s32.totalorder %s42, 1
        %s798 = scalar_select %p797, %s42, 1
        %s799 = scalar_lea.vmem %s7, %s798
        %p800 = scmp.lt.s32.totalorder %s42, 1
        %s801 = scalar_select %p800, %s42, 1
        %s802 = scalar_lea.vmem %s8, %s801
        %p803 = scmp.lt.s32.totalorder %s42, 1
        %s804 = scalar_select %p803, %s42, 1
        %s805 = smul.addr %s804, 4
        %s806 = scalar_lea.vmem %s10, %s805
        %p807 = scmp.lt.s32.totalorder %s42, 1
        %s808 = scalar_select %p807, %s42, 1
        %s809 = scalar_lea.vmem %s12, %s808
        %p811 = scmp.eq.s32.totalorder %s42, 0
        // Predicated region
        $region109: #{tpu_custom_call.1} parent=79 // pred_check
          %p812 = pneg %p811
        $region110: #{tpu_custom_call.1} parent=79 // pred_check_branch
          %814 = sbr.rel (%p812) target = $region112
        $region111: #{tpu_custom_call.1} parent=79 // pred_region
          %v815 = vld [vmem:[#allocation3] sm:$0xff]
          %v816 = vld [vmem:[#allocation3 + $0x8] sm:$0xff]
          %v817 = vld [vmem:[#allocation3 + $0x10] sm:$0xff]
          %v818 = vld [vmem:[#allocation3 + $0x18] sm:$0xff]
          %819 = vst [vmem:[#allocation15] sm:$0xff] %v815
          %820 = vst [vmem:[#allocation15 + $0x8] sm:$0xff] %v816
          %821 = vst [vmem:[#allocation15 + $0x10] sm:$0xff] %v817
          %822 = vst [vmem:[#allocation15 + $0x18] sm:$0xff] %v818
          %v823 = vlaneseq
          %v824 = vshrl.u32 %v823, 7
          %v825 = vlaneseq
          %v826 = vand.u32 %v825, 127
          %vm827 = vcmp.le.s32.totalorder %v826, %v824
          %v828 = vsel %vm827, 0.0, -1e+30
          %vm829 = vcmask 64512
          %830 = vst.msk [vmem:[#allocation2] sm:$0xff] %vm829, %v828
        $region112: #{tpu_custom_call.1} parent=79 // pred_fallthru
          _
        %v831 = vld [vmem:[#allocation15] sm:$0xff]
        %v832 = vld [vmem:[#allocation15 + $0x8] sm:$0xff]
        %v833 = vld [vmem:[#allocation15 + $0x10] sm:$0xff]
        %v834 = vld [vmem:[#allocation15 + $0x18] sm:$0xff]
        %v835 = vld [vmem:[#allocation2] sm:$0xff]
        %v836 = vld [vmem:[%s661] sm:$0x1]
        %v837 = vld [vmem:[%s669] sm:$0x1]
        %838 = vadd.xlane.f32.xlu0 %v831
        %v839 = vpop.xlane.xlu0 %838
        %840 = vadd.xlane.f32.xlu0 %v832
        %v841 = vpop.xlane.xlu0 %840
        %842 = vadd.xlane.f32.xlu0 %v833
        %v843 = vpop.xlane.xlu0 %842
        %844 = vadd.xlane.f32.xlu0 %v834
        %v845 = vpop.xlane.xlu0 %844
        %v846 = vrcp.pop 128.0
        %v847 = vmul.f32 %v839, %v846
        %v848 = vmul.f32 %v841, %v846
        %v849 = vmul.f32 %v843, %v846
        %v850 = vmul.f32 %v845, %v846
        %v851 = vsub.f32 %v831, %v847
        %v852 = vsub.f32 %v832, %v848
        %v853 = vsub.f32 %v833, %v849
        %v854 = vsub.f32 %v834, %v850
        %v855 = vmul.f32 %v851, %v851
        %v856 = vmul.f32 %v852, %v852
        %v857 = vmul.f32 %v853, %v853
        %v858 = vmul.f32 %v854, %v854
        %859 = vadd.xlane.f32.xlu0 %v855
        %v860 = vpop.xlane.xlu0 %859
        %861 = vadd.xlane.f32.xlu0 %v856
        %v862 = vpop.xlane.xlu0 %861
        %863 = vadd.xlane.f32.xlu0 %v857
        %v864 = vpop.xlane.xlu0 %863
        %865 = vadd.xlane.f32.xlu0 %v858
        %v866 = vpop.xlane.xlu0 %865
        %v867 = vmul.f32 %v860, %v846
        %v868 = vmul.f32 %v862, %v846
        %v869 = vmul.f32 %v864, %v846
        %v870 = vmul.f32 %v866, %v846
        %v871 = vadd.f32 %v867, 1e-05
        %v872 = vadd.f32 %v868, 1e-05
        %v873 = vadd.f32 %v869, 1e-05
        %v874 = vadd.f32 %v870, 1e-05
        %v875 = vrsqrt.pop %v871
        %v876 = vrsqrt.pop %v872
        %v877 = vrsqrt.pop %v873
        %v878 = vrsqrt.pop %v874
        %v879 = vmul.f32 %v851, %v875
        %v880 = vmul.f32 %v852, %v876
        %v881 = vmul.f32 %v853, %v877
        %v882 = vmul.f32 %v854, %v878
        %v884 = vlaneseq
        %v885 = vshrl.u32 %v884, 7
        %v886 = vsub.s32 0, %v885
        %v887 = vrot.slane %v836, %v886
        %v889 = vmul.f32 %v879, %v887
        %v890 = vmul.f32 %v880, %v887
        %v891 = vmul.f32 %v881, %v887
        %v892 = vmul.f32 %v882, %v887
        %v894 = vlaneseq
        %v895 = vshrl.u32 %v894, 7
        %v896 = vsub.s32 0, %v895
        %v897 = vrot.slane %v837, %v896
        %v899 = vadd.f32 %v889, %v897
        %v900 = vadd.f32 %v890, %v897
        %v901 = vadd.f32 %v891, %v897
        %v902 = vadd.f32 %v892, %v897
        %v903 = vpack.c.bf16 %v900, %v899
        %v904 = vpack.c.bf16 %v902, %v901
        %v905 = vld [vmem:[%s678] sm:$0xff]
        %v906 = vld [vmem:[%s678 + $0x8] sm:$0xf]
        %v907 = vld [vmem:[%s678 + $0xc] sm:$0xff]
        %v908 = vld [vmem:[%s678 + $0x14] sm:$0xf]
        %v909 = vld [vmem:[%s678 + $0x18] sm:$0xff]
        %v910 = vld [vmem:[%s678 + $0x20] sm:$0xf]
        %v911 = vld [vmem:[%s678 + $0x24] sm:$0xff]
        %v912 = vld [vmem:[%s678 + $0x2c] sm:$0xf]
        %v913 = vld [vmem:[%s678 + $0x30] sm:$0xff]
        %v914 = vld [vmem:[%s678 + $0x38] sm:$0xf]
        %v915 = vld [vmem:[%s678 + $0x3c] sm:$0xff]
        %v916 = vld [vmem:[%s678 + $0x44] sm:$0xf]
        %v917 = vld [vmem:[%s678 + $0x48] sm:$0xff]
        %v918 = vld [vmem:[%s678 + $0x50] sm:$0xf]
        %v919 = vld [vmem:[%s678 + $0x54] sm:$0xff]
        %v920 = vld [vmem:[%s678 + $0x5c] sm:$0xf]
        %v921 = vld [vmem:[%s678 + $0x60] sm:$0xff]
        %v922 = vld [vmem:[%s678 + $0x68] sm:$0xf]
        %v923 = vld [vmem:[%s678 + $0x6c] sm:$0xff]
        %v924 = vld [vmem:[%s678 + $0x74] sm:$0xf]
        %v925 = vld [vmem:[%s678 + $0x78] sm:$0xff]
        %v926 = vld [vmem:[%s678 + $0x80] sm:$0xf]
        %v927 = vld [vmem:[%s678 + $0x84] sm:$0xff]
        %v928 = vld [vmem:[%s678 + $0x8c] sm:$0xf]
        %v929 = vld [vmem:[%s678 + $0x90] sm:$0xff]
        %v930 = vld [vmem:[%s678 + $0x98] sm:$0xf]
        %v931 = vld [vmem:[%s678 + $0x9c] sm:$0xff]
        %v932 = vld [vmem:[%s678 + $0xa4] sm:$0xf]
        %v933 = vld [vmem:[%s678 + $0xa8] sm:$0xff]
        %v934 = vld [vmem:[%s678 + $0xb0] sm:$0xf]
        %v935 = vld [vmem:[%s678 + $0xb4] sm:$0xff]
        %v936 = vld [vmem:[%s678 + $0xbc] sm:$0xf]
        %v937 = vld [vmem:[%s793] sm:$0x7]
        %v939 = vlaneseq
        %v940 = vshrl.u32 %v939, 7
        %v941 = vsub.s32 0, %v940
        %v942 = vrot.slane %v937, %v941
        %v943 = vlaneseq
        %v944 = vshrl.u32 %v943, 7
        %v945 = vsub.s32 1, %v944
        %v946 = vrot.slane %v937, %v945
        %v947 = vlaneseq
        %v948 = vshrl.u32 %v947, 7
        %v949 = vsub.s32 2, %v948
        %v950 = vrot.slane %v937, %v949
        %v986 = vunpack.c.l.b16 %v905
        %v987 = vunpack.c.h.b16 %v905
        %v988 = vunpack.c.l.b16 %v906
        %v989 = vunpack.c.l.b16 %v907
        %v990 = vunpack.c.h.b16 %v907
        %v991 = vunpack.c.l.b16 %v908
        %v992 = vunpack.c.l.b16 %v909
        %v993 = vunpack.c.h.b16 %v909
        %v994 = vunpack.c.l.b16 %v910
        %v995 = vunpack.c.l.b16 %v911
        %v996 = vunpack.c.h.b16 %v911
        %v997 = vunpack.c.l.b16 %v912
        %v998 = vunpack.c.l.b16 %v913
        %v999 = vunpack.c.h.b16 %v913
        %v1000 = vunpack.c.l.b16 %v914
        %v1001 = vunpack.c.l.b16 %v915
        %v1002 = vunpack.c.h.b16 %v915
        %v1003 = vunpack.c.l.b16 %v916
        %v1004 = vunpack.c.l.b16 %v917
        %v1005 = vunpack.c.h.b16 %v917
        %v1006 = vunpack.c.l.b16 %v918
        %v1007 = vunpack.c.l.b16 %v919
        %v1008 = vunpack.c.h.b16 %v919
        %v1009 = vunpack.c.l.b16 %v920
        %v1010 = vunpack.c.l.b16 %v921
        %v1011 = vunpack.c.h.b16 %v921
        %v1012 = vunpack.c.l.b16 %v922
        %v1013 = vunpack.c.l.b16 %v923
        %v1014 = vunpack.c.h.b16 %v923
        %v1015 = vunpack.c.l.b16 %v924
        %v1016 = vunpack.c.l.b16 %v925
        %v1017 = vunpack.c.h.b16 %v925
        %v1018 = vunpack.c.l.b16 %v926
        %v1019 = vunpack.c.l.b16 %v927
        %v1020 = vunpack.c.h.b16 %v927
        %v1021 = vunpack.c.l.b16 %v928
        %v1022 = vunpack.c.l.b16 %v929
        %v1023 = vunpack.c.h.b16 %v929
        %v1024 = vunpack.c.l.b16 %v930
        %v1025 = vunpack.c.l.b16 %v931
        %v1026 = vunpack.c.h.b16 %v931
        %v1027 = vunpack.c.l.b16 %v932
        %v1028 = vunpack.c.l.b16 %v933
        %v1029 = vunpack.c.h.b16 %v933
        %v1030 = vunpack.c.l.b16 %v934
        %v1031 = vunpack.c.l.b16 %v935
        %v1032 = vunpack.c.h.b16 %v935
        %v1033 = vunpack.c.l.b16 %v936
        %v1034 = vpack.c.b16 %v989, %v986
        %v1035 = vpack.c.b16 %v990, %v987
        %v1036 = vpack.c.b16 %v991, %v988
        %v1037 = vpack.c.b16 %v995, %v992
        %v1038 = vpack.c.b16 %v996, %v993
        %v1039 = vpack.c.b16 %v997, %v994
        %v1040 = vpack.c.b16 %v1001, %v998
        %v1041 = vpack.c.b16 %v1002, %v999
        %v1042 = vpack.c.b16 %v1003, %v1000
        %v1043 = vpack.c.b16 %v1007, %v1004
        %v1044 = vpack.c.b16 %v1008, %v1005
        %v1045 = vpack.c.b16 %v1009, %v1006
        %v1046 = vpack.c.b16 %v1013, %v1010
        %v1047 = vpack.c.b16 %v1014, %v1011
        %v1048 = vpack.c.b16 %v1015, %v1012
        %v1049 = vpack.c.b16 %v1019, %v1016
        %v1050 = vpack.c.b16 %v1020, %v1017
        %v1051 = vpack.c.b16 %v1021, %v1018
        %v1052 = vpack.c.b16 %v1025, %v1022
        %v1053 = vpack.c.b16 %v1026, %v1023
        %v1054 = vpack.c.b16 %v1027, %v1024
        %v1055 = vpack.c.b16 %v1031, %v1028
        %v1056 = vpack.c.b16 %v1032, %v1029
        %v1057 = vpack.c.b16 %v1033, %v1030
        %1082 = vmatprep.subr.bf16.mxu0 %v1035
        %1083 = vmatpush1.bf16.msra.mxu0 %v1034
        %1084 = vmatprep.subr.bf16.mxu0 %v1038
        %1085 = vmatpush1.bf16.msra.mxu0 %v1037
        %1086 = vmatprep.subr.bf16.mxu0 %v1041
        %1087 = vmatpush1.bf16.msra.mxu0 %v1040
        %1088 = vmatprep.subr.bf16.mxu0 %v1044
        %1089 = vmatpush1.bf16.msra.mxu0 %v1043
        %1090 = vmatprep.subr.bf16.mxu0 %v1047
        %1091 = vmatpush1.bf16.msra.mxu0 %v1046
        %1092 = vmatprep.subr.bf16.mxu0 %v1050
        %1093 = vmatpush1.bf16.msra.mxu0 %v1049
        %1094 = vmatprep.subr.bf16.mxu0 %v1053
        %1095 = vmatpush1.bf16.msra.mxu0 %v1052
        %1096 = vmatprep.subr.bf16.mxu0 %v1056
        %1097 = vmatpush1.bf16.msra.mxu0 %v1055
        %1098 = vmatprep.subr.bf16.mxu0 0
        %1099 = vmatpush1.bf16.msra.mxu0 0
        %1100 = vmatprep.subr.bf16.mxu0 0
        %1101 = vmatpush1.bf16.msra.mxu0 0
        %1102 = vmatprep.subr.bf16.mxu0 0
        %1103 = vmatpush1.bf16.msra.mxu0 0
        %1104 = vmatprep.subr.bf16.mxu0 0
        %1105 = vmatpush1.bf16.msra.mxu0 0
        %1106 = vmatprep.subr.bf16.mxu0 0
        %1107 = vmatpush1.bf16.msra.mxu0 0
        %1108 = vmatprep.subr.bf16.mxu0 0
        %1109 = vmatpush1.bf16.msra.mxu0 0
        %1110 = vmatprep.subr.bf16.mxu0 0
        %1111 = vmatpush1.bf16.msra.mxu0 0
        %1112 = vmatprep.subr.bf16.mxu0 0
        %1113 = vmatpush1.bf16.msra.mxu0 0
        %1114 = vmatprep.mubr.bf16.mxu0 0
        %1115 = vmatmul.mubr.bf16.gmra.mrb[0].mxu0 %v903
        %v1116 = vpop.f32.mrb[0].mxu0
        %v1117 = vadd.f32 %v942, %v1116
        %v1118 = vpop.f32.mrb[0].mxu0
        %v1119 = vadd.f32 %v946, %v1118
        %v1120 = vpop.f32.mrb[0].mxu0
        %v1121 = vadd.f32 %v942, %v1120
        %v1122 = vpop.f32.mrb[0].mxu0
        %v1123 = vadd.f32 %v946, %v1122
        %1124 = vmatprep.mubr.bf16.mxu0 0
        %1125 = vmatmul.mubr.bf16.gmra.mrb[0].mxu0 %v904
        %v1126 = vpop.f32.mrb[0].mxu0
        %v1127 = vadd.f32 %v942, %v1126
        %v1128 = vpop.f32.mrb[0].mxu0
        %v1129 = vadd.f32 %v946, %v1128
        %v1130 = vpop.f32.mrb[0].mxu0
        %v1131 = vadd.f32 %v942, %v1130
        %v1132 = vpop.f32.mrb[0].mxu0
        %v1133 = vadd.f32 %v946, %v1132
        %1134 = vdwg.mxu0
        %1135 = vmatprep.subr.bf16.mxu0 0
        %1136 = vmatpush1.bf16.msra.mxu0 %v1036
        %1137 = vmatprep.subr.bf16.mxu0 0
        %1138 = vmatpush1.bf16.msra.mxu0 %v1039
        %1139 = vmatprep.subr.bf16.mxu0 0
        %1140 = vmatpush1.bf16.msra.mxu0 %v1042
        %1141 = vmatprep.subr.bf16.mxu0 0
        %1142 = vmatpush1.bf16.msra.mxu0 %v1045
        %1143 = vmatprep.subr.bf16.mxu0 0
        %1144 = vmatpush1.bf16.msra.mxu0 %v1048
        %1145 = vmatprep.subr.bf16.mxu0 0
        %1146 = vmatpush1.bf16.msra.mxu0 %v1051
        %1147 = vmatprep.subr.bf16.mxu0 0
        %1148 = vmatpush1.bf16.msra.mxu0 %v1054
        %1149 = vmatprep.subr.bf16.mxu0 0
        %1150 = vmatpush1.bf16.msra.mxu0 %v1057
        %1151 = vmatprep.subr.bf16.mxu0 0
        %1152 = vmatpush1.bf16.msra.mxu0 0
        %1153 = vmatprep.subr.bf16.mxu0 0
        %1154 = vmatpush1.bf16.msra.mxu0 0
        %1155 = vmatprep.subr.bf16.mxu0 0
        %1156 = vmatpush1.bf16.msra.mxu0 0
        %1157 = vmatprep.subr.bf16.mxu0 0
        %1158 = vmatpush1.bf16.msra.mxu0 0
        %1159 = vmatprep.subr.bf16.mxu0 0
        %1160 = vmatpush1.bf16.msra.mxu0 0
        %1161 = vmatprep.subr.bf16.mxu0 0
        %1162 = vmatpush1.bf16.msra.mxu0 0
        %1163 = vmatprep.subr.bf16.mxu0 0
        %1164 = vmatpush1.bf16.msra.mxu0 0
        %1165 = vmatprep.subr.bf16.mxu0 0
        %1166 = vmatpush1.bf16.msra.mxu0 0
        %1167 = vmatprep.mubr.bf16.mxu0 0
        %1168 = vmatmul.mubr.bf16.gmra.mrb[0].mxu0 %v903
        %v1169 = vpop.f32.mrb[0].mxu0
        %v1170 = vadd.f32 %v950, %v1169
        %v1171 = vpop.f32.mrb[0].mxu0
        %v1172 = vpop.f32.mrb[0].mxu0
        %v1173 = vadd.f32 %v950, %v1172
        %v1174 = vpop.f32.mrb[0].mxu0
        %1175 = vmatprep.mubr.bf16.mxu0 0
        %1176 = vmatmul.mubr.bf16.gmra.mrb[0].mxu0 %v904
        %v1177 = vpop.f32.mrb[0].mxu0
        %v1178 = vadd.f32 %v950, %v1177
        %v1179 = vpop.f32.mrb[0].mxu0
        %v1180 = vpop.f32.mrb[0].mxu0
        %v1181 = vadd.f32 %v950, %v1180
        %v1182 = vpop.f32.mrb[0].mxu0
        %1183 = vdwg.mxu0
        %v1184 = vpack.c.bf16 %v1117, %v1117
        %v1185 = vpack.c.bf16 %v1121, %v1121
        %v1186 = vpack.c.bf16 %v1127, %v1127
        %v1187 = vpack.c.bf16 %v1131, %v1131
        %v1188 = vpack.c.bf16 %v1119, %v1119
        %v1189 = vpack.c.bf16 %v1123, %v1123
        %v1190 = vpack.c.bf16 %v1129, %v1129
        %v1191 = vpack.c.bf16 %v1133, %v1133
        %v1192 = vpack.c.bf16 %v1170, %v1170
        %v1193 = vpack.c.bf16 %v1173, %v1173
        %v1194 = vpack.c.bf16 %v1178, %v1178
        %v1195 = vpack.c.bf16 %v1181, %v1181
        %vm1196 = vcmask 523264
        %v1198 = vsel %vm1196, %v1184, 0
        %v1201 = vsel %vm1196, %v1188, 0
        %1203 = vmatprep.subr.bf16.mxu0 0
        %1204 = vmatpush1.bf16.xpose.msra.mxu0 %v1201
        %1205 = vmatprep.subr.bf16.mxu0 0
        %1206 = vmatpush1.bf16.xpose.msra.mxu0 0
        %1207 = vmatprep.subr.bf16.mxu0 0
        %1208 = vmatpush1.bf16.xpose.msra.mxu0 0
        %1209 = vmatprep.subr.bf16.mxu0 0
        %1210 = vmatpush1.bf16.xpose.msra.mxu0 0
        %1211 = vmatprep.subr.bf16.mxu0 0
        %1212 = vmatpush1.bf16.xpose.msra.mxu0 0
        %1213 = vmatprep.subr.bf16.mxu0 0
        %1214 = vmatpush1.bf16.xpose.msra.mxu0 0
        %1215 = vmatprep.subr.bf16.mxu0 0
        %1216 = vmatpush1.bf16.xpose.msra.mxu0 0
        %1217 = vmatprep.subr.bf16.mxu0 0
        %1218 = vmatpush1.bf16.xpose.msra.mxu0 0
        %1219 = vmatprep.subr.bf16.mxu0 0
        %1220 = vmatpush1.bf16.xpose.msra.mxu0 0
        %1221 = vmatprep.subr.bf16.mxu0 0
        %1222 = vmatpush1.bf16.xpose.msra.mxu0 0
        %1223 = vmatprep.subr.bf16.mxu0 0
        %1224 = vmatpush1.bf16.xpose.msra.mxu0 0
        %1225 = vmatprep.subr.bf16.mxu0 0
        %1226 = vmatpush1.bf16.xpose.msra.mxu0 0
        %1227 = vmatprep.subr.bf16.mxu0 0
        %1228 = vmatpush1.bf16.xpose.msra.mxu0 0
        %1229 = vmatprep.subr.bf16.mxu0 0
        %1230 = vmatpush1.bf16.xpose.msra.mxu0 0
        %1231 = vmatprep.subr.bf16.mxu0 0
        %1232 = vmatpush1.bf16.xpose.msra.mxu0 0
        %1233 = vmatprep.subr.bf16.mxu0 0
        %1234 = vmatpush1.bf16.xpose.msra.mxu0 0
        %1235 = vmatprep.mubr.bf16.mxu0 0
        %1236 = vmatmul.mubr.bf16.gmra.mrb[0].mxu0 %v1198
        %v1237 = vpop.f32.mrb[0].mxu0
        %v1238 = vadd.f32 %v835, %v1237
        %v1239 = vpop.f32.mrb[0].mxu0
        %v1240 = vpop.f32.mrb[0].mxu0
        %v1241 = vpop.f32.mrb[0].mxu0
        %1242 = vdwg.mxu0
        %v1244 = vsel %vm1196, %v1185, 0
        %v1247 = vsel %vm1196, %v1189, 0
        %1249 = vmatprep.subr.bf16.mxu0 0
        %1250 = vmatpush1.bf16.xpose.msra.mxu0 %v1247
        %1251 = vmatprep.subr.bf16.mxu0 0
        %1252 = vmatpush1.bf16.xpose.msra.mxu0 0
        %1253 = vmatprep.subr.bf16.mxu0 0
        %1254 = vmatpush1.bf16.xpose.msra.mxu0 0
        %1255 = vmatprep.subr.bf16.mxu0 0
        %1256 = vmatpush1.bf16.xpose.msra.mxu0 0
        %1257 = vmatprep.subr.bf16.mxu0 0
        %1258 = vmatpush1.bf16.xpose.msra.mxu0 0
        %1259 = vmatprep.subr.bf16.mxu0 0
        %1260 = vmatpush1.bf16.xpose.msra.mxu0 0
        %1261 = vmatprep.subr.bf16.mxu0 0
        %1262 = vmatpush1.bf16.xpose.msra.mxu0 0
        %1263 = vmatprep.subr.bf16.mxu0 0
        %1264 = vmatpush1.bf16.xpose.msra.mxu0 0
        %1265 = vmatprep.subr.bf16.mxu0 0
        %1266 = vmatpush1.bf16.xpose.msra.mxu0 0
        %1267 = vmatprep.subr.bf16.mxu0 0
        %1268 = vmatpush1.bf16.xpose.msra.mxu0 0
        %1269 = vmatprep.subr.bf16.mxu0 0
        %1270 = vmatpush1.bf16.xpose.msra.mxu0 0
        %1271 = vmatprep.subr.bf16.mxu0 0
        %1272 = vmatpush1.bf16.xpose.msra.mxu0 0
        %1273 = vmatprep.subr.bf16.mxu0 0
        %1274 = vmatpush1.bf16.xpose.msra.mxu0 0
        %1275 = vmatprep.subr.bf16.mxu0 0
        %1276 = vmatpush1.bf16.xpose.msra.mxu0 0
        %1277 = vmatprep.subr.bf16.mxu0 0
        %1278 = vmatpush1.bf16.xpose.msra.mxu0 0
        %1279 = vmatprep.subr.bf16.mxu0 0
        %1280 = vmatpush1.bf16.xpose.msra.mxu0 0
        %1281 = vmatprep.mubr.bf16.mxu0 0
        %1282 = vmatmul.mubr.bf16.gmra.mrb[0].mxu0 %v1244
        %v1283 = vpop.f32.mrb[0].mxu0
        %v1284 = vadd.f32 %v835, %v1283
        %v1285 = vpop.f32.mrb[0].mxu0
        %v1286 = vpop.f32.mrb[0].mxu0
        %v1287 = vpop.f32.mrb[0].mxu0
        %1288 = vdwg.mxu0
        %v1290 = vsel %vm1196, %v1186, 0
        %v1293 = vsel %vm1196, %v1190, 0
        %1295 = vmatprep.subr.bf16.mxu0 0
        %1296 = vmatpush1.bf16.xpose.msra.mxu0 %v1293
        %1297 = vmatprep.subr.bf16.mxu0 0
        %1298 = vmatpush1.bf16.xpose.msra.mxu0 0
        %1299 = vmatprep.subr.bf16.mxu0 0
        %1300 = vmatpush1.bf16.xpose.msra.mxu0 0
        %1301 = vmatprep.subr.bf16.mxu0 0
        %1302 = vmatpush1.bf16.xpose.msra.mxu0 0
        %1303 = vmatprep.subr.bf16.mxu0 0
        %1304 = vmatpush1.bf16.xpose.msra.mxu0 0
        %1305 = vmatprep.subr.bf16.mxu0 0
        %1306 = vmatpush1.bf16.xpose.msra.mxu0 0
        %1307 = vmatprep.subr.bf16.mxu0 0
        %1308 = vmatpush1.bf16.xpose.msra.mxu0 0
        %1309 = vmatprep.subr.bf16.mxu0 0
        %1310 = vmatpush1.bf16.xpose.msra.mxu0 0
        %1311 = vmatprep.subr.bf16.mxu0 0
        %1312 = vmatpush1.bf16.xpose.msra.mxu0 0
        %1313 = vmatprep.subr.bf16.mxu0 0
        %1314 = vmatpush1.bf16.xpose.msra.mxu0 0
        %1315 = vmatprep.subr.bf16.mxu0 0
        %1316 = vmatpush1.bf16.xpose.msra.mxu0 0
        %1317 = vmatprep.subr.bf16.mxu0 0
        %1318 = vmatpush1.bf16.xpose.msra.mxu0 0
        %1319 = vmatprep.subr.bf16.mxu0 0
        %1320 = vmatpush1.bf16.xpose.msra.mxu0 0
        %1321 = vmatprep.subr.bf16.mxu0 0
        %1322 = vmatpush1.bf16.xpose.msra.mxu0 0
        %1323 = vmatprep.subr.bf16.mxu0 0
        %1324 = vmatpush1.bf16.xpose.msra.mxu0 0
        %1325 = vmatprep.subr.bf16.mxu0 0
        %1326 = vmatpush1.bf16.xpose.msra.mxu0 0
        %1327 = vmatprep.mubr.bf16.mxu0 0
        %1328 = vmatmul.mubr.bf16.gmra.mrb[0].mxu0 %v1290
        %v1329 = vpop.f32.mrb[0].mxu0
        %v1330 = vadd.f32 %v835, %v1329
        %v1331 = vpop.f32.mrb[0].mxu0
        %v1332 = vpop.f32.mrb[0].mxu0
        %v1333 = vpop.f32.mrb[0].mxu0
        %1334 = vdwg.mxu0
        %v1336 = vsel %vm1196, %v1187, 0
        %v1339 = vsel %vm1196, %v1191, 0
        %1341 = vmatprep.subr.bf16.mxu0 0
        %1342 = vmatpush1.bf16.xpose.msra.mxu0 %v1339
        %1343 = vmatprep.subr.bf16.mxu0 0
        %1344 = vmatpush1.bf16.xpose.msra.mxu0 0
        %1345 = vmatprep.subr.bf16.mxu0 0
        %1346 = vmatpush1.bf16.xpose.msra.mxu0 0
        %1347 = vmatprep.subr.bf16.mxu0 0
        %1348 = vmatpush1.bf16.xpose.msra.mxu0 0
        %1349 = vmatprep.subr.bf16.mxu0 0
        %1350 = vmatpush1.bf16.xpose.msra.mxu0 0
        %1351 = vmatprep.subr.bf16.mxu0 0
        %1352 = vmatpush1.bf16.xpose.msra.mxu0 0
        %1353 = vmatprep.subr.bf16.mxu0 0
        %1354 = vmatpush1.bf16.xpose.msra.mxu0 0
        %1355 = vmatprep.subr.bf16.mxu0 0
        %1356 = vmatpush1.bf16.xpose.msra.mxu0 0
        %1357 = vmatprep.subr.bf16.mxu0 0
        %1358 = vmatpush1.bf16.xpose.msra.mxu0 0
        %1359 = vmatprep.subr.bf16.mxu0 0
        %1360 = vmatpush1.bf16.xpose.msra.mxu0 0
        %1361 = vmatprep.subr.bf16.mxu0 0
        %1362 = vmatpush1.bf16.xpose.msra.mxu0 0
        %1363 = vmatprep.subr.bf16.mxu0 0
        %1364 = vmatpush1.bf16.xpose.msra.mxu0 0
        %1365 = vmatprep.subr.bf16.mxu0 0
        %1366 = vmatpush1.bf16.xpose.msra.mxu0 0
        %1367 = vmatprep.subr.bf16.mxu0 0
        %1368 = vmatpush1.bf16.xpose.msra.mxu0 0
        %1369 = vmatprep.subr.bf16.mxu0 0
        %1370 = vmatpush1.bf16.xpose.msra.mxu0 0
        %1371 = vmatprep.subr.bf16.mxu0 0
        %1372 = vmatpush1.bf16.xpose.msra.mxu0 0
        %1373 = vmatprep.mubr.bf16.mxu0 0
        %1374 = vmatmul.mubr.bf16.gmra.mrb[0].mxu0 %v1336
        %v1375 = vpop.f32.mrb[0].mxu0
        %v1376 = vadd.f32 %v835, %v1375
        %v1377 = vpop.f32.mrb[0].mxu0
        %v1378 = vpop.f32.mrb[0].mxu0
        %v1379 = vpop.f32.mrb[0].mxu0
        %1380 = vdwg.mxu0
        %vm1381 = vcmask 64512
        %v1382 = vsel %vm1381, %v1238, -inf
        %1383 = vmax.xlane.f32.xlu0 %v1382
        %v1384 = vpop.xlane.xlu0 %1383
        %v1385 = vsel %vm1381, %v1284, -inf
        %1386 = vmax.xlane.f32.xlu0 %v1385
        %v1387 = vpop.xlane.xlu0 %1386
        %v1388 = vsel %vm1381, %v1330, -inf
        %1389 = vmax.xlane.f32.xlu0 %v1388
        %v1390 = vpop.xlane.xlu0 %1389
        %v1391 = vsel %vm1381, %v1376, -inf
        %1392 = vmax.xlane.f32.xlu0 %v1391
        %v1393 = vpop.xlane.xlu0 %1392
        %v1394 = vsub.f32 %v1238, %v1384
        %v1395 = vsub.f32 %v1284, %v1387
        %v1396 = vsub.f32 %v1330, %v1390
        %v1397 = vsub.f32 %v1376, %v1393
        %v1398 = vmul.f32 %v1394, 1.442695
        %v1399 = vpow.pop %v1398
        %v1400 = vmul.f32 %v1395, 1.442695
        %v1401 = vpow.pop %v1400
        %v1402 = vmul.f32 %v1396, 1.442695
        %v1403 = vpow.pop %v1402
        %v1404 = vmul.f32 %v1397, 1.442695
        %v1405 = vpow.pop %v1404
        %v1406 = vsel %vm1381, %v1399, 0.0
        %1407 = vadd.xlane.f32.xlu0 %v1406
        %v1408 = vpop.xlane.xlu0 %1407
        %v1409 = vsel %vm1381, %v1401, 0.0
        %1410 = vadd.xlane.f32.xlu0 %v1409
        %v1411 = vpop.xlane.xlu0 %1410
        %v1412 = vsel %vm1381, %v1403, 0.0
        %1413 = vadd.xlane.f32.xlu0 %v1412
        %v1414 = vpop.xlane.xlu0 %1413
        %v1415 = vsel %vm1381, %v1405, 0.0
        %1416 = vadd.xlane.f32.xlu0 %v1415
        %v1417 = vpop.xlane.xlu0 %1416
        %v1418 = vrcp.pop %v1408
        %v1419 = vrcp.pop %v1411
        %v1420 = vrcp.pop %v1414
        %v1421 = vrcp.pop %v1417
        %v1422 = vmul.f32 %v1399, %v1418
        %v1423 = vmul.f32 %v1401, %v1419
        %v1424 = vmul.f32 %v1403, %v1420
        %v1425 = vmul.f32 %v1405, %v1421
        %v1426 = vpack.c.bf16 %v1422, %v1422
        %v1427 = vpack.c.bf16 %v1423, %v1423
        %v1428 = vpack.c.bf16 %v1424, %v1424
        %v1429 = vpack.c.bf16 %v1425, %v1425
        %v1431 = vsel %vm1381, %v1426, 0
        %vm1433 = vcmask 1043456
        %v1435 = vsel %vm1433, %v1192, 0
        %1437 = vmatprep.subr.bf16.mxu0 0
        %1438 = vmatpush1.bf16.msra.mxu0 %v1435
        %1439 = vmatprep.subr.bf16.mxu0 0
        %1440 = vmatpush1.bf16.msra.mxu0 0
        %1441 = vmatprep.subr.bf16.mxu0 0
        %1442 = vmatpush1.bf16.msra.mxu0 0
        %1443 = vmatprep.subr.bf16.mxu0 0
        %1444 = vmatpush1.bf16.msra.mxu0 0
        %1445 = vmatprep.subr.bf16.mxu0 0
        %1446 = vmatpush1.bf16.msra.mxu0 0
        %1447 = vmatprep.subr.bf16.mxu0 0
        %1448 = vmatpush1.bf16.msra.mxu0 0
        %1449 = vmatprep.subr.bf16.mxu0 0
        %1450 = vmatpush1.bf16.msra.mxu0 0
        %1451 = vmatprep.subr.bf16.mxu0 0
        %1452 = vmatpush1.bf16.msra.mxu0 0
        %1453 = vmatprep.subr.bf16.mxu0 0
        %1454 = vmatpush1.bf16.msra.mxu0 0
        %1455 = vmatprep.subr.bf16.mxu0 0
        %1456 = vmatpush1.bf16.msra.mxu0 0
        %1457 = vmatprep.subr.bf16.mxu0 0
        %1458 = vmatpush1.bf16.msra.mxu0 0
        %1459 = vmatprep.subr.bf16.mxu0 0
        %1460 = vmatpush1.bf16.msra.mxu0 0
        %1461 = vmatprep.subr.bf16.mxu0 0
        %1462 = vmatpush1.bf16.msra.mxu0 0
        %1463 = vmatprep.subr.bf16.mxu0 0
        %1464 = vmatpush1.bf16.msra.mxu0 0
        %1465 = vmatprep.subr.bf16.mxu0 0
        %1466 = vmatpush1.bf16.msra.mxu0 0
        %1467 = vmatprep.subr.bf16.mxu0 0
        %1468 = vmatpush1.bf16.msra.mxu0 0
        %1469 = vmatprep.mubr.bf16.mxu0 0
        %1470 = vmatmul.mubr.bf16.gmra.mrb[0].mxu0 %v1431
        %v1471 = vpop.f32.mrb[0].mxu0
        %v1472 = vadd.f32 0.0, %v1471
        %v1473 = vpop.f32.mrb[0].mxu0
        %v1474 = vpop.f32.mrb[0].mxu0
        %v1475 = vpop.f32.mrb[0].mxu0
        %1476 = vdwg.mxu0
        %v1478 = vsel %vm1381, %v1427, 0
        %v1481 = vsel %vm1433, %v1193, 0
        %1483 = vmatprep.subr.bf16.mxu0 0
        %1484 = vmatpush1.bf16.msra.mxu0 %v1481
        %1485 = vmatprep.subr.bf16.mxu0 0
        %1486 = vmatpush1.bf16.msra.mxu0 0
        %1487 = vmatprep.subr.bf16.mxu0 0
        %1488 = vmatpush1.bf16.msra.mxu0 0
        %1489 = vmatprep.subr.bf16.mxu0 0
        %1490 = vmatpush1.bf16.msra.mxu0 0
        %1491 = vmatprep.subr.bf16.mxu0 0
        %1492 = vmatpush1.bf16.msra.mxu0 0
        %1493 = vmatprep.subr.bf16.mxu0 0
        %1494 = vmatpush1.bf16.msra.mxu0 0
        %1495 = vmatprep.subr.bf16.mxu0 0
        %1496 = vmatpush1.bf16.msra.mxu0 0
        %1497 = vmatprep.subr.bf16.mxu0 0
        %1498 = vmatpush1.bf16.msra.mxu0 0
        %1499 = vmatprep.subr.bf16.mxu0 0
        %1500 = vmatpush1.bf16.msra.mxu0 0
        %1501 = vmatprep.subr.bf16.mxu0 0
        %1502 = vmatpush1.bf16.msra.mxu0 0
        %1503 = vmatprep.subr.bf16.mxu0 0
        %1504 = vmatpush1.bf16.msra.mxu0 0
        %1505 = vmatprep.subr.bf16.mxu0 0
        %1506 = vmatpush1.bf16.msra.mxu0 0
        %1507 = vmatprep.subr.bf16.mxu0 0
        %1508 = vmatpush1.bf16.msra.mxu0 0
        %1509 = vmatprep.subr.bf16.mxu0 0
        %1510 = vmatpush1.bf16.msra.mxu0 0
        %1511 = vmatprep.subr.bf16.mxu0 0
        %1512 = vmatpush1.bf16.msra.mxu0 0
        %1513 = vmatprep.subr.bf16.mxu0 0
        %1514 = vmatpush1.bf16.msra.mxu0 0
        %1515 = vmatprep.mubr.bf16.mxu0 0
        %1516 = vmatmul.mubr.bf16.gmra.mrb[0].mxu0 %v1478
        %v1517 = vpop.f32.mrb[0].mxu0
        %v1518 = vadd.f32 0.0, %v1517
        %v1519 = vpop.f32.mrb[0].mxu0
        %v1520 = vpop.f32.mrb[0].mxu0
        %v1521 = vpop.f32.mrb[0].mxu0
        %1522 = vdwg.mxu0
        %v1524 = vsel %vm1381, %v1428, 0
        %v1527 = vsel %vm1433, %v1194, 0
        %1529 = vmatprep.subr.bf16.mxu0 0
        %1530 = vmatpush1.bf16.msra.mxu0 %v1527
        %1531 = vmatprep.subr.bf16.mxu0 0
        %1532 = vmatpush1.bf16.msra.mxu0 0
        %1533 = vmatprep.subr.bf16.mxu0 0
        %1534 = vmatpush1.bf16.msra.mxu0 0
        %1535 = vmatprep.subr.bf16.mxu0 0
        %1536 = vmatpush1.bf16.msra.mxu0 0
        %1537 = vmatprep.subr.bf16.mxu0 0
        %1538 = vmatpush1.bf16.msra.mxu0 0
        %1539 = vmatprep.subr.bf16.mxu0 0
        %1540 = vmatpush1.bf16.msra.mxu0 0
        %1541 = vmatprep.subr.bf16.mxu0 0
        %1542 = vmatpush1.bf16.msra.mxu0 0
        %1543 = vmatprep.subr.bf16.mxu0 0
        %1544 = vmatpush1.bf16.msra.mxu0 0
        %1545 = vmatprep.subr.bf16.mxu0 0
        %1546 = vmatpush1.bf16.msra.mxu0 0
        %1547 = vmatprep.subr.bf16.mxu0 0
        %1548 = vmatpush1.bf16.msra.mxu0 0
        %1549 = vmatprep.subr.bf16.mxu0 0
        %1550 = vmatpush1.bf16.msra.mxu0 0
        %1551 = vmatprep.subr.bf16.mxu0 0
        %1552 = vmatpush1.bf16.msra.mxu0 0
        %1553 = vmatprep.subr.bf16.mxu0 0
        %1554 = vmatpush1.bf16.msra.mxu0 0
        %1555 = vmatprep.subr.bf16.mxu0 0
        %1556 = vmatpush1.bf16.msra.mxu0 0
        %1557 = vmatprep.subr.bf16.mxu0 0
        %1558 = vmatpush1.bf16.msra.mxu0 0
        %1559 = vmatprep.subr.bf16.mxu0 0
        %1560 = vmatpush1.bf16.msra.mxu0 0
        %1561 = vmatprep.mubr.bf16.mxu0 0
        %1562 = vmatmul.mubr.bf16.gmra.mrb[0].mxu0 %v1524
        %v1563 = vpop.f32.mrb[0].mxu0
        %v1564 = vadd.f32 0.0, %v1563
        %v1565 = vpop.f32.mrb[0].mxu0
        %v1566 = vpop.f32.mrb[0].mxu0
        %v1567 = vpop.f32.mrb[0].mxu0
        %1568 = vdwg.mxu0
        %v1570 = vsel %vm1381, %v1429, 0
        %v1573 = vsel %vm1433, %v1195, 0
        %1575 = vmatprep.subr.bf16.mxu0 0
        %1576 = vmatpush1.bf16.msra.mxu0 %v1573
        %1577 = vmatprep.subr.bf16.mxu0 0
        %1578 = vmatpush1.bf16.msra.mxu0 0
        %1579 = vmatprep.subr.bf16.mxu0 0
        %1580 = vmatpush1.bf16.msra.mxu0 0
        %1581 = vmatprep.subr.bf16.mxu0 0
        %1582 = vmatpush1.bf16.msra.mxu0 0
        %1583 = vmatprep.subr.bf16.mxu0 0
        %1584 = vmatpush1.bf16.msra.mxu0 0
        %1585 = vmatprep.subr.bf16.mxu0 0
        %1586 = vmatpush1.bf16.msra.mxu0 0
        %1587 = vmatprep.subr.bf16.mxu0 0
        %1588 = vmatpush1.bf16.msra.mxu0 0
        %1589 = vmatprep.subr.bf16.mxu0 0
        %1590 = vmatpush1.bf16.msra.mxu0 0
        %1591 = vmatprep.subr.bf16.mxu0 0
        %1592 = vmatpush1.bf16.msra.mxu0 0
        %1593 = vmatprep.subr.bf16.mxu0 0
        %1594 = vmatpush1.bf16.msra.mxu0 0
        %1595 = vmatprep.subr.bf16.mxu0 0
        %1596 = vmatpush1.bf16.msra.mxu0 0
        %1597 = vmatprep.subr.bf16.mxu0 0
        %1598 = vmatpush1.bf16.msra.mxu0 0
        %1599 = vmatprep.subr.bf16.mxu0 0
        %1600 = vmatpush1.bf16.msra.mxu0 0
        %1601 = vmatprep.subr.bf16.mxu0 0
        %1602 = vmatpush1.bf16.msra.mxu0 0
        %1603 = vmatprep.subr.bf16.mxu0 0
        %1604 = vmatpush1.bf16.msra.mxu0 0
        %1605 = vmatprep.subr.bf16.mxu0 0
        %1606 = vmatpush1.bf16.msra.mxu0 0
        %1607 = vmatprep.mubr.bf16.mxu0 0
        %1608 = vmatmul.mubr.bf16.gmra.mrb[0].mxu0 %v1570
        %v1609 = vpop.f32.mrb[0].mxu0
        %v1610 = vadd.f32 0.0, %v1609
        %v1611 = vpop.f32.mrb[0].mxu0
        %v1612 = vpop.f32.mrb[0].mxu0
        %v1613 = vpop.f32.mrb[0].mxu0
        %1614 = vdwg.mxu0
        %1616 = vrot.lane.b32.xlu0 %v1184, 64
        %v1617 = vpop.permute.xlu0 %1616
        %1619 = vrot.lane.b32.xlu0 %v1188, 64
        %v1620 = vpop.permute.xlu0 %1619
        %v1622 = vsel %vm1196, %v1617, 0
        %v1625 = vsel %vm1196, %v1620, 0
        %1627 = vmatprep.subr.bf16.mxu0 0
        %1628 = vmatpush1.bf16.xpose.msra.mxu0 %v1625
        %1629 = vmatprep.subr.bf16.mxu0 0
        %1630 = vmatpush1.bf16.xpose.msra.mxu0 0
        %1631 = vmatprep.subr.bf16.mxu0 0
        %1632 = vmatpush1.bf16.xpose.msra.mxu0 0
        %1633 = vmatprep.subr.bf16.mxu0 0
        %1634 = vmatpush1.bf16.xpose.msra.mxu0 0
        %1635 = vmatprep.subr.bf16.mxu0 0
        %1636 = vmatpush1.bf16.xpose.msra.mxu0 0
        %1637 = vmatprep.subr.bf16.mxu0 0
        %1638 = vmatpush1.bf16.xpose.msra.mxu0 0
        %1639 = vmatprep.subr.bf16.mxu0 0
        %1640 = vmatpush1.bf16.xpose.msra.mxu0 0
        %1641 = vmatprep.subr.bf16.mxu0 0
        %1642 = vmatpush1.bf16.xpose.msra.mxu0 0
        %1643 = vmatprep.subr.bf16.mxu0 0
        %1644 = vmatpush1.bf16.xpose.msra.mxu0 0
        %1645 = vmatprep.subr.bf16.mxu0 0
        %1646 = vmatpush1.bf16.xpose.msra.mxu0 0
        %1647 = vmatprep.subr.bf16.mxu0 0
        %1648 = vmatpush1.bf16.xpose.msra.mxu0 0
        %1649 = vmatprep.subr.bf16.mxu0 0
        %1650 = vmatpush1.bf16.xpose.msra.mxu0 0
        %1651 = vmatprep.subr.bf16.mxu0 0
        %1652 = vmatpush1.bf16.xpose.msra.mxu0 0
        %1653 = vmatprep.subr.bf16.mxu0 0
        %1654 = vmatpush1.bf16.xpose.msra.mxu0 0
        %1655 = vmatprep.subr.bf16.mxu0 0
        %1656 = vmatpush1.bf16.xpose.msra.mxu0 0
        %1657 = vmatprep.subr.bf16.mxu0 0
        %1658 = vmatpush1.bf16.xpose.msra.mxu0 0
        %1659 = vmatprep.mubr.bf16.mxu0 0
        %1660 = vmatmul.mubr.bf16.gmra.mrb[0].mxu0 %v1622
        %v1661 = vpop.f32.mrb[0].mxu0
        %v1662 = vadd.f32 %v835, %v1661
        %v1663 = vpop.f32.mrb[0].mxu0
        %v1664 = vpop.f32.mrb[0].mxu0
        %v1665 = vpop.f32.mrb[0].mxu0
        %1666 = vdwg.mxu0
        %1668 = vrot.lane.b32.xlu0 %v1185, 64
        %v1669 = vpop.permute.xlu0 %1668
        %1671 = vrot.lane.b32.xlu0 %v1189, 64
        %v1672 = vpop.permute.xlu0 %1671
        %v1674 = vsel %vm1196, %v1669, 0
        %v1677 = vsel %vm1196, %v1672, 0
        %1679 = vmatprep.subr.bf16.mxu0 0
        %1680 = vmatpush1.bf16.xpose.msra.mxu0 %v1677
        %1681 = vmatprep.subr.bf16.mxu0 0
        %1682 = vmatpush1.bf16.xpose.msra.mxu0 0
        %1683 = vmatprep.subr.bf16.mxu0 0
        %1684 = vmatpush1.bf16.xpose.msra.mxu0 0
        %1685 = vmatprep.subr.bf16.mxu0 0
        %1686 = vmatpush1.bf16.xpose.msra.mxu0 0
        %1687 = vmatprep.subr.bf16.mxu0 0
        %1688 = vmatpush1.bf16.xpose.msra.mxu0 0
        %1689 = vmatprep.subr.bf16.mxu0 0
        %1690 = vmatpush1.bf16.xpose.msra.mxu0 0
        %1691 = vmatprep.subr.bf16.mxu0 0
        %1692 = vmatpush1.bf16.xpose.msra.mxu0 0
        %1693 = vmatprep.subr.bf16.mxu0 0
        %1694 = vmatpush1.bf16.xpose.msra.mxu0 0
        %1695 = vmatprep.subr.bf16.mxu0 0
        %1696 = vmatpush1.bf16.xpose.msra.mxu0 0
        %1697 = vmatprep.subr.bf16.mxu0 0
        %1698 = vmatpush1.bf16.xpose.msra.mxu0 0
        %1699 = vmatprep.subr.bf16.mxu0 0
        %1700 = vmatpush1.bf16.xpose.msra.mxu0 0
        %1701 = vmatprep.subr.bf16.mxu0 0
        %1702 = vmatpush1.bf16.xpose.msra.mxu0 0
        %1703 = vmatprep.subr.bf16.mxu0 0
        %1704 = vmatpush1.bf16.xpose.msra.mxu0 0
        %1705 = vmatprep.subr.bf16.mxu0 0
        %1706 = vmatpush1.bf16.xpose.msra.mxu0 0
        %1707 = vmatprep.subr.bf16.mxu0 0
        %1708 = vmatpush1.bf16.xpose.msra.mxu0 0
        %1709 = vmatprep.subr.bf16.mxu0 0
        %1710 = vmatpush1.bf16.xpose.msra.mxu0 0
        %1711 = vmatprep.mubr.bf16.mxu0 0
        %1712 = vmatmul.mubr.bf16.gmra.mrb[0].mxu0 %v1674
        %v1713 = vpop.f32.mrb[0].mxu0
        %v1714 = vadd.f32 %v835, %v1713
        %v1715 = vpop.f32.mrb[0].mxu0
        %v1716 = vpop.f32.mrb[0].mxu0
        %v1717 = vpop.f32.mrb[0].mxu0
        %1718 = vdwg.mxu0
        %1720 = vrot.lane.b32.xlu0 %v1186, 64
        %v1721 = vpop.permute.xlu0 %1720
        %1723 = vrot.lane.b32.xlu0 %v1190, 64
        %v1724 = vpop.permute.xlu0 %1723
        %v1726 = vsel %vm1196, %v1721, 0
        %v1729 = vsel %vm1196, %v1724, 0
        %1731 = vmatprep.subr.bf16.mxu0 0
        %1732 = vmatpush1.bf16.xpose.msra.mxu0 %v1729
        %1733 = vmatprep.subr.bf16.mxu0 0
        %1734 = vmatpush1.bf16.xpose.msra.mxu0 0
        %1735 = vmatprep.subr.bf16.mxu0 0
        %1736 = vmatpush1.bf16.xpose.msra.mxu0 0
        %1737 = vmatprep.subr.bf16.mxu0 0
        %1738 = vmatpush1.bf16.xpose.msra.mxu0 0
        %1739 = vmatprep.subr.bf16.mxu0 0
        %1740 = vmatpush1.bf16.xpose.msra.mxu0 0
        %1741 = vmatprep.subr.bf16.mxu0 0
        %1742 = vmatpush1.bf16.xpose.msra.mxu0 0
        %1743 = vmatprep.subr.bf16.mxu0 0
        %1744 = vmatpush1.bf16.xpose.msra.mxu0 0
        %1745 = vmatprep.subr.bf16.mxu0 0
        %1746 = vmatpush1.bf16.xpose.msra.mxu0 0
        %1747 = vmatprep.subr.bf16.mxu0 0
        %1748 = vmatpush1.bf16.xpose.msra.mxu0 0
        %1749 = vmatprep.subr.bf16.mxu0 0
        %1750 = vmatpush1.bf16.xpose.msra.mxu0 0
        %1751 = vmatprep.subr.bf16.mxu0 0
        %1752 = vmatpush1.bf16.xpose.msra.mxu0 0
        %1753 = vmatprep.subr.bf16.mxu0 0
        %1754 = vmatpush1.bf16.xpose.msra.mxu0 0
        %1755 = vmatprep.subr.bf16.mxu0 0
        %1756 = vmatpush1.bf16.xpose.msra.mxu0 0
        %1757 = vmatprep.subr.bf16.mxu0 0
        %1758 = vmatpush1.bf16.xpose.msra.mxu0 0
        %1759 = vmatprep.subr.bf16.mxu0 0
        %1760 = vmatpush1.bf16.xpose.msra.mxu0 0
        %1761 = vmatprep.subr.bf16.mxu0 0
        %1762 = vmatpush1.bf16.xpose.msra.mxu0 0
        %1763 = vmatprep.mubr.bf16.mxu0 0
        %1764 = vmatmul.mubr.bf16.gmra.mrb[0].mxu0 %v1726
        %v1765 = vpop.f32.mrb[0].mxu0
        %v1766 = vadd.f32 %v835, %v1765
        %v1767 = vpop.f32.mrb[0].mxu0
        %v1768 = vpop.f32.mrb[0].mxu0
        %v1769 = vpop.f32.mrb[0].mxu0
        %1770 = vdwg.mxu0
        %1772 = vrot.lane.b32.xlu0 %v1187, 64
        %v1773 = vpop.permute.xlu0 %1772
        %1775 = vrot.lane.b32.xlu0 %v1191, 64
        %v1776 = vpop.permute.xlu0 %1775
        %v1778 = vsel %vm1196, %v1773, 0
        %v1781 = vsel %vm1196, %v1776, 0
        %1783 = vmatprep.subr.bf16.mxu0 0
        %1784 = vmatpush1.bf16.xpose.msra.mxu0 %v1781
        %1785 = vmatprep.subr.bf16.mxu0 0
        %1786 = vmatpush1.bf16.xpose.msra.mxu0 0
        %1787 = vmatprep.subr.bf16.mxu0 0
        %1788 = vmatpush1.bf16.xpose.msra.mxu0 0
        %1789 = vmatprep.subr.bf16.mxu0 0
        %1790 = vmatpush1.bf16.xpose.msra.mxu0 0
        %1791 = vmatprep.subr.bf16.mxu0 0
        %1792 = vmatpush1.bf16.xpose.msra.mxu0 0
        %1793 = vmatprep.subr.bf16.mxu0 0
        %1794 = vmatpush1.bf16.xpose.msra.mxu0 0
        %1795 = vmatprep.subr.bf16.mxu0 0
        %1796 = vmatpush1.bf16.xpose.msra.mxu0 0
        %1797 = vmatprep.subr.bf16.mxu0 0
        %1798 = vmatpush1.bf16.xpose.msra.mxu0 0
        %1799 = vmatprep.subr.bf16.mxu0 0
        %1800 = vmatpush1.bf16.xpose.msra.mxu0 0
        %1801 = vmatprep.subr.bf16.mxu0 0
        %1802 = vmatpush1.bf16.xpose.msra.mxu0 0
        %1803 = vmatprep.subr.bf16.mxu0 0
        %1804 = vmatpush1.bf16.xpose.msra.mxu0 0
        %1805 = vmatprep.subr.bf16.mxu0 0
        %1806 = vmatpush1.bf16.xpose.msra.mxu0 0
        %1807 = vmatprep.subr.bf16.mxu0 0
        %1808 = vmatpush1.bf16.xpose.msra.mxu0 0
        %1809 = vmatprep.subr.bf16.mxu0 0
        %1810 = vmatpush1.bf16.xpose.msra.mxu0 0
        %1811 = vmatprep.subr.bf16.mxu0 0
        %1812 = vmatpush1.bf16.xpose.msra.mxu0 0
        %1813 = vmatprep.subr.bf16.mxu0 0
        %1814 = vmatpush1.bf16.xpose.msra.mxu0 0
        %1815 = vmatprep.mubr.bf16.mxu0 0
        %1816 = vmatmul.mubr.bf16.gmra.mrb[0].mxu0 %v1778
        %v1817 = vpop.f32.mrb[0].mxu0
        %v1818 = vadd.f32 %v835, %v1817
        %v1819 = vpop.f32.mrb[0].mxu0
        %v1820 = vpop.f32.mrb[0].mxu0
        %v1821 = vpop.f32.mrb[0].mxu0
        %1822 = vdwg.mxu0
        %v1823 = vsel %vm1381, %v1662, -inf
        %1824 = vmax.xlane.f32.xlu0 %v1823
        %v1825 = vpop.xlane.xlu0 %1824
        %v1826 = vsel %vm1381, %v1714, -inf
        %1827 = vmax.xlane.f32.xlu0 %v1826
        %v1828 = vpop.xlane.xlu0 %1827
        %v1829 = vsel %vm1381, %v1766, -inf
        %1830 = vmax.xlane.f32.xlu0 %v1829
        %v1831 = vpop.xlane.xlu0 %1830
        %v1832 = vsel %vm1381, %v1818, -inf
        %1833 = vmax.xlane.f32.xlu0 %v1832
        %v1834 = vpop.xlane.xlu0 %1833
        %v1835 = vsub.f32 %v1662, %v1825
        %v1836 = vsub.f32 %v1714, %v1828
        %v1837 = vsub.f32 %v1766, %v1831
        %v1838 = vsub.f32 %v1818, %v1834
        %v1839 = vmul.f32 %v1835, 1.442695
        %v1840 = vpow.pop %v1839
        %v1841 = vmul.f32 %v1836, 1.442695
        %v1842 = vpow.pop %v1841
        %v1843 = vmul.f32 %v1837, 1.442695
        %v1844 = vpow.pop %v1843
        %v1845 = vmul.f32 %v1838, 1.442695
        %v1846 = vpow.pop %v1845
        %v1847 = vsel %vm1381, %v1840, 0.0
        %1848 = vadd.xlane.f32.xlu0 %v1847
        %v1849 = vpop.xlane.xlu0 %1848
        %v1850 = vsel %vm1381, %v1842, 0.0
        %1851 = vadd.xlane.f32.xlu0 %v1850
        %v1852 = vpop.xlane.xlu0 %1851
        %v1853 = vsel %vm1381, %v1844, 0.0
        %1854 = vadd.xlane.f32.xlu0 %v1853
        %v1855 = vpop.xlane.xlu0 %1854
        %v1856 = vsel %vm1381, %v1846, 0.0
        %1857 = vadd.xlane.f32.xlu0 %v1856
        %v1858 = vpop.xlane.xlu0 %1857
        %v1859 = vrcp.pop %v1849
        %v1860 = vrcp.pop %v1852
        %v1861 = vrcp.pop %v1855
        %v1862 = vrcp.pop %v1858
        %v1863 = vmul.f32 %v1840, %v1859
        %v1864 = vmul.f32 %v1842, %v1860
        %v1865 = vmul.f32 %v1844, %v1861
        %v1866 = vmul.f32 %v1846, %v1862
        %v1867 = vpack.c.bf16 %v1863, %v1863
        %v1868 = vpack.c.bf16 %v1864, %v1864
        %v1869 = vpack.c.bf16 %v1865, %v1865
        %v1870 = vpack.c.bf16 %v1866, %v1866
        %1872 = vrot.lane.b32.xlu0 %v1192, 64
        %v1873 = vpop.permute.xlu0 %1872
        %v1875 = vsel %vm1381, %v1867, 0
        %v1878 = vsel %vm1433, %v1873, 0
        %1880 = vmatprep.subr.bf16.mxu0 0
        %1881 = vmatpush1.bf16.msra.mxu0 %v1878
        %1882 = vmatprep.subr.bf16.mxu0 0
        %1883 = vmatpush1.bf16.msra.mxu0 0
        %1884 = vmatprep.subr.bf16.mxu0 0
        %1885 = vmatpush1.bf16.msra.mxu0 0
        %1886 = vmatprep.subr.bf16.mxu0 0
        %1887 = vmatpush1.bf16.msra.mxu0 0
        %1888 = vmatprep.subr.bf16.mxu0 0
        %1889 = vmatpush1.bf16.msra.mxu0 0
        %1890 = vmatprep.subr.bf16.mxu0 0
        %1891 = vmatpush1.bf16.msra.mxu0 0
        %1892 = vmatprep.subr.bf16.mxu0 0
        %1893 = vmatpush1.bf16.msra.mxu0 0
        %1894 = vmatprep.subr.bf16.mxu0 0
        %1895 = vmatpush1.bf16.msra.mxu0 0
        %1896 = vmatprep.subr.bf16.mxu0 0
        %1897 = vmatpush1.bf16.msra.mxu0 0
        %1898 = vmatprep.subr.bf16.mxu0 0
        %1899 = vmatpush1.bf16.msra.mxu0 0
        %1900 = vmatprep.subr.bf16.mxu0 0
        %1901 = vmatpush1.bf16.msra.mxu0 0
        %1902 = vmatprep.subr.bf16.mxu0 0
        %1903 = vmatpush1.bf16.msra.mxu0 0
        %1904 = vmatprep.subr.bf16.mxu0 0
        %1905 = vmatpush1.bf16.msra.mxu0 0
        %1906 = vmatprep.subr.bf16.mxu0 0
        %1907 = vmatpush1.bf16.msra.mxu0 0
        %1908 = vmatprep.subr.bf16.mxu0 0
        %1909 = vmatpush1.bf16.msra.mxu0 0
        %1910 = vmatprep.subr.bf16.mxu0 0
        %1911 = vmatpush1.bf16.msra.mxu0 0
        %1912 = vmatprep.mubr.bf16.mxu0 0
        %1913 = vmatmul.mubr.bf16.gmra.mrb[0].mxu0 %v1875
        %v1914 = vpop.f32.mrb[0].mxu0
        %v1915 = vadd.f32 0.0, %v1914
        %v1916 = vpop.f32.mrb[0].mxu0
        %v1917 = vpop.f32.mrb[0].mxu0
        %v1918 = vpop.f32.mrb[0].mxu0
        %1919 = vdwg.mxu0
        %1921 = vrot.lane.b32.xlu0 %v1193, 64
        %v1922 = vpop.permute.xlu0 %1921
        %v1924 = vsel %vm1381, %v1868, 0
        %v1927 = vsel %vm1433, %v1922, 0
        %1929 = vmatprep.subr.bf16.mxu0 0
        %1930 = vmatpush1.bf16.msra.mxu0 %v1927
        %1931 = vmatprep.subr.bf16.mxu0 0
        %1932 = vmatpush1.bf16.msra.mxu0 0
        %1933 = vmatprep.subr.bf16.mxu0 0
        %1934 = vmatpush1.bf16.msra.mxu0 0
        %1935 = vmatprep.subr.bf16.mxu0 0
        %1936 = vmatpush1.bf16.msra.mxu0 0
        %1937 = vmatprep.subr.bf16.mxu0 0
        %1938 = vmatpush1.bf16.msra.mxu0 0
        %1939 = vmatprep.subr.bf16.mxu0 0
        %1940 = vmatpush1.bf16.msra.mxu0 0
        %1941 = vmatprep.subr.bf16.mxu0 0
        %1942 = vmatpush1.bf16.msra.mxu0 0
        %1943 = vmatprep.subr.bf16.mxu0 0
        %1944 = vmatpush1.bf16.msra.mxu0 0
        %1945 = vmatprep.subr.bf16.mxu0 0
        %1946 = vmatpush1.bf16.msra.mxu0 0
        %1947 = vmatprep.subr.bf16.mxu0 0
        %1948 = vmatpush1.bf16.msra.mxu0 0
        %1949 = vmatprep.subr.bf16.mxu0 0
        %1950 = vmatpush1.bf16.msra.mxu0 0
        %1951 = vmatprep.subr.bf16.mxu0 0
        %1952 = vmatpush1.bf16.msra.mxu0 0
        %1953 = vmatprep.subr.bf16.mxu0 0
        %1954 = vmatpush1.bf16.msra.mxu0 0
        %1955 = vmatprep.subr.bf16.mxu0 0
        %1956 = vmatpush1.bf16.msra.mxu0 0
        %1957 = vmatprep.subr.bf16.mxu0 0
        %1958 = vmatpush1.bf16.msra.mxu0 0
        %1959 = vmatprep.subr.bf16.mxu0 0
        %1960 = vmatpush1.bf16.msra.mxu0 0
        %1961 = vmatprep.mubr.bf16.mxu0 0
        %1962 = vmatmul.mubr.bf16.gmra.mrb[0].mxu0 %v1924
        %v1963 = vpop.f32.mrb[0].mxu0
        %v1964 = vadd.f32 0.0, %v1963
        %v1965 = vpop.f32.mrb[0].mxu0
        %v1966 = vpop.f32.mrb[0].mxu0
        %v1967 = vpop.f32.mrb[0].mxu0
        %1968 = vdwg.mxu0
        %1970 = vrot.lane.b32.xlu0 %v1194, 64
        %v1971 = vpop.permute.xlu0 %1970
        %v1973 = vsel %vm1381, %v1869, 0
        %v1976 = vsel %vm1433, %v1971, 0
        %1978 = vmatprep.subr.bf16.mxu0 0
        %1979 = vmatpush1.bf16.msra.mxu0 %v1976
        %1980 = vmatprep.subr.bf16.mxu0 0
        %1981 = vmatpush1.bf16.msra.mxu0 0
        %1982 = vmatprep.subr.bf16.mxu0 0
        %1983 = vmatpush1.bf16.msra.mxu0 0
        %1984 = vmatprep.subr.bf16.mxu0 0
        %1985 = vmatpush1.bf16.msra.mxu0 0
        %1986 = vmatprep.subr.bf16.mxu0 0
        %1987 = vmatpush1.bf16.msra.mxu0 0
        %1988 = vmatprep.subr.bf16.mxu0 0
        %1989 = vmatpush1.bf16.msra.mxu0 0
        %1990 = vmatprep.subr.bf16.mxu0 0
        %1991 = vmatpush1.bf16.msra.mxu0 0
        %1992 = vmatprep.subr.bf16.mxu0 0
        %1993 = vmatpush1.bf16.msra.mxu0 0
        %1994 = vmatprep.subr.bf16.mxu0 0
        %1995 = vmatpush1.bf16.msra.mxu0 0
        %1996 = vmatprep.subr.bf16.mxu0 0
        %1997 = vmatpush1.bf16.msra.mxu0 0
        %1998 = vmatprep.subr.bf16.mxu0 0
        %1999 = vmatpush1.bf16.msra.mxu0 0
        %2000 = vmatprep.subr.bf16.mxu0 0
        %2001 = vmatpush1.bf16.msra.mxu0 0
        %2002 = vmatprep.subr.bf16.mxu0 0
        %2003 = vmatpush1.bf16.msra.mxu0 0
        %2004 = vmatprep.subr.bf16.mxu0 0
        %2005 = vmatpush1.bf16.msra.mxu0 0
        %2006 = vmatprep.subr.bf16.mxu0 0
        %2007 = vmatpush1.bf16.msra.mxu0 0
        %2008 = vmatprep.subr.bf16.mxu0 0
        %2009 = vmatpush1.bf16.msra.mxu0 0
        %2010 = vmatprep.mubr.bf16.mxu0 0
        %2011 = vmatmul.mubr.bf16.gmra.mrb[0].mxu0 %v1973
        %v2012 = vpop.f32.mrb[0].mxu0
        %v2013 = vadd.f32 0.0, %v2012
        %v2014 = vpop.f32.mrb[0].mxu0
        %v2015 = vpop.f32.mrb[0].mxu0
        %v2016 = vpop.f32.mrb[0].mxu0
        %2017 = vdwg.mxu0
        %2019 = vrot.lane.b32.xlu0 %v1195, 64
        %v2020 = vpop.permute.xlu0 %2019
        %v2022 = vsel %vm1381, %v1870, 0
        %v2025 = vsel %vm1433, %v2020, 0
        %2027 = vmatprep.subr.bf16.mxu0 0
        %2028 = vmatpush1.bf16.msra.mxu0 %v2025
        %2029 = vmatprep.subr.bf16.mxu0 0
        %2030 = vmatpush1.bf16.msra.mxu0 0
        %2031 = vmatprep.subr.bf16.mxu0 0
        %2032 = vmatpush1.bf16.msra.mxu0 0
        %2033 = vmatprep.subr.bf16.mxu0 0
        %2034 = vmatpush1.bf16.msra.mxu0 0
        %2035 = vmatprep.subr.bf16.mxu0 0
        %2036 = vmatpush1.bf16.msra.mxu0 0
        %2037 = vmatprep.subr.bf16.mxu0 0
        %2038 = vmatpush1.bf16.msra.mxu0 0
        %2039 = vmatprep.subr.bf16.mxu0 0
        %2040 = vmatpush1.bf16.msra.mxu0 0
        %2041 = vmatprep.subr.bf16.mxu0 0
        %2042 = vmatpush1.bf16.msra.mxu0 0
        %2043 = vmatprep.subr.bf16.mxu0 0
        %2044 = vmatpush1.bf16.msra.mxu0 0
        %2045 = vmatprep.subr.bf16.mxu0 0
        %2046 = vmatpush1.bf16.msra.mxu0 0
        %2047 = vmatprep.subr.bf16.mxu0 0
        %2048 = vmatpush1.bf16.msra.mxu0 0
        %2049 = vmatprep.subr.bf16.mxu0 0
        %2050 = vmatpush1.bf16.msra.mxu0 0
        %2051 = vmatprep.subr.bf16.mxu0 0
        %2052 = vmatpush1.bf16.msra.mxu0 0
        %2053 = vmatprep.subr.bf16.mxu0 0
        %2054 = vmatpush1.bf16.msra.mxu0 0
        %2055 = vmatprep.subr.bf16.mxu0 0
        %2056 = vmatpush1.bf16.msra.mxu0 0
        %2057 = vmatprep.subr.bf16.mxu0 0
        %2058 = vmatpush1.bf16.msra.mxu0 0
        %2059 = vmatprep.mubr.bf16.mxu0 0
        %2060 = vmatmul.mubr.bf16.gmra.mrb[0].mxu0 %v2022
        %v2061 = vpop.f32.mrb[0].mxu0
        %v2062 = vadd.f32 0.0, %v2061
        %v2063 = vpop.f32.mrb[0].mxu0
        %v2064 = vpop.f32.mrb[0].mxu0
        %v2065 = vpop.f32.mrb[0].mxu0
        %2066 = vdwg.mxu0
        %2071 = vrot.lane.b32.xlu0 %v1915, 64
        %v2072 = vpop.permute.xlu0 %2071
        %2073 = vrot.lane.b32.xlu0 %v1964, 64
        %v2074 = vpop.permute.xlu0 %2073
        %2075 = vrot.lane.b32.xlu0 %v2013, 64
        %v2076 = vpop.permute.xlu0 %2075
        %2077 = vrot.lane.b32.xlu0 %v2062, 64
        %v2078 = vpop.permute.xlu0 %2077
        %v2083 = vsel %vm1196, %v1472, %v2072
        %v2084 = vsel %vm1196, %v1518, %v2074
        %v2085 = vsel %vm1196, %v1564, %v2076
        %v2086 = vsel %vm1196, %v1610, %v2078
        %v2087 = vpack.c.bf16 %v2084, %v2083
        %v2088 = vpack.c.bf16 %v2086, %v2085
        %v2089 = vld [vmem:[%s687] sm:$0xf]
        %v2090 = vld [vmem:[%s687 + $0x4] sm:$0xf]
        %v2091 = vld [vmem:[%s687 + $0x8] sm:$0xf]
        %v2092 = vld [vmem:[%s687 + $0xc] sm:$0xf]
        %v2093 = vld [vmem:[%s687 + $0x10] sm:$0xf]
        %v2094 = vld [vmem:[%s687 + $0x14] sm:$0xf]
        %v2095 = vld [vmem:[%s687 + $0x18] sm:$0xf]
        %v2096 = vld [vmem:[%s687 + $0x1c] sm:$0xf]
        %v2097 = vld [vmem:[%s687 + $0x20] sm:$0xf]
        %v2098 = vld [vmem:[%s687 + $0x24] sm:$0xf]
        %v2099 = vld [vmem:[%s687 + $0x28] sm:$0xf]
        %v2100 = vld [vmem:[%s687 + $0x2c] sm:$0xf]
        %v2101 = vld [vmem:[%s687 + $0x30] sm:$0xf]
        %v2102 = vld [vmem:[%s687 + $0x34] sm:$0xf]
        %v2103 = vld [vmem:[%s687 + $0x38] sm:$0xf]
        %v2104 = vld [vmem:[%s687 + $0x3c] sm:$0xf]
        %v2105 = vld [vmem:[%s796] sm:$0x1]
        %v2107 = vlaneseq
        %v2108 = vshrl.u32 %v2107, 7
        %v2109 = vsub.s32 0, %v2108
        %v2110 = vrot.slane %v2105, %v2109
        %v2128 = vunpack.c.l.b16 %v2089
        %v2129 = vunpack.c.l.b16 %v2090
        %v2130 = vunpack.c.l.b16 %v2091
        %v2131 = vunpack.c.l.b16 %v2092
        %v2132 = vunpack.c.l.b16 %v2093
        %v2133 = vunpack.c.l.b16 %v2094
        %v2134 = vunpack.c.l.b16 %v2095
        %v2135 = vunpack.c.l.b16 %v2096
        %v2136 = vunpack.c.l.b16 %v2097
        %v2137 = vunpack.c.l.b16 %v2098
        %v2138 = vunpack.c.l.b16 %v2099
        %v2139 = vunpack.c.l.b16 %v2100
        %v2140 = vunpack.c.l.b16 %v2101
        %v2141 = vunpack.c.l.b16 %v2102
        %v2142 = vunpack.c.l.b16 %v2103
        %v2143 = vunpack.c.l.b16 %v2104
        %v2144 = vpack.c.b16 %v2129, %v2128
        %v2145 = vpack.c.b16 %v2131, %v2130
        %v2146 = vpack.c.b16 %v2133, %v2132
        %v2147 = vpack.c.b16 %v2135, %v2134
        %v2148 = vpack.c.b16 %v2137, %v2136
        %v2149 = vpack.c.b16 %v2139, %v2138
        %v2150 = vpack.c.b16 %v2141, %v2140
        %v2151 = vpack.c.b16 %v2143, %v2142
        %2160 = vmatprep.subr.bf16.mxu0 0
        %2161 = vmatpush1.bf16.msra.mxu0 %v2144
        %2162 = vmatprep.subr.bf16.mxu0 0
        %2163 = vmatpush1.bf16.msra.mxu0 %v2145
        %2164 = vmatprep.subr.bf16.mxu0 0
        %2165 = vmatpush1.bf16.msra.mxu0 %v2146
        %2166 = vmatprep.subr.bf16.mxu0 0
        %2167 = vmatpush1.bf16.msra.mxu0 %v2147
        %2168 = vmatprep.subr.bf16.mxu0 0
        %2169 = vmatpush1.bf16.msra.mxu0 %v2148
        %2170 = vmatprep.subr.bf16.mxu0 0
        %2171 = vmatpush1.bf16.msra.mxu0 %v2149
        %2172 = vmatprep.subr.bf16.mxu0 0
        %2173 = vmatpush1.bf16.msra.mxu0 %v2150
        %2174 = vmatprep.subr.bf16.mxu0 0
        %2175 = vmatpush1.bf16.msra.mxu0 %v2151
        %2176 = vmatprep.subr.bf16.mxu0 0
        %2177 = vmatpush1.bf16.msra.mxu0 0
        %2178 = vmatprep.subr.bf16.mxu0 0
        %2179 = vmatpush1.bf16.msra.mxu0 0
        %2180 = vmatprep.subr.bf16.mxu0 0
        %2181 = vmatpush1.bf16.msra.mxu0 0
        %2182 = vmatprep.subr.bf16.mxu0 0
        %2183 = vmatpush1.bf16.msra.mxu0 0
        %2184 = vmatprep.subr.bf16.mxu0 0
        %2185 = vmatpush1.bf16.msra.mxu0 0
        %2186 = vmatprep.subr.bf16.mxu0 0
        %2187 = vmatpush1.bf16.msra.mxu0 0
        %2188 = vmatprep.subr.bf16.mxu0 0
        %2189 = vmatpush1.bf16.msra.mxu0 0
        %2190 = vmatprep.subr.bf16.mxu0 0
        %2191 = vmatpush1.bf16.msra.mxu0 0
        %2192 = vmatprep.mubr.bf16.mxu0 0
        %2193 = vmatmul.mubr.bf16.gmra.mrb[0].mxu0 %v2087
        %v2194 = vpop.f32.mrb[0].mxu0
        %v2195 = vadd.f32 %v2110, %v2194
        %v2196 = vpop.f32.mrb[0].mxu0
        %v2197 = vpop.f32.mrb[0].mxu0
        %v2198 = vadd.f32 %v2110, %v2197
        %v2199 = vpop.f32.mrb[0].mxu0
        %2200 = vmatprep.mubr.bf16.mxu0 0
        %2201 = vmatmul.mubr.bf16.gmra.mrb[0].mxu0 %v2088
        %v2202 = vpop.f32.mrb[0].mxu0
        %v2203 = vadd.f32 %v2110, %v2202
        %v2204 = vpop.f32.mrb[0].mxu0
        %v2205 = vpop.f32.mrb[0].mxu0
        %v2206 = vadd.f32 %v2110, %v2205
        %v2207 = vpop.f32.mrb[0].mxu0
        %2208 = vdwg.mxu0
        %v2209 = vadd.f32 %v831, %v2195
        %v2210 = vadd.f32 %v832, %v2198
        %v2211 = vadd.f32 %v833, %v2203
        %v2212 = vadd.f32 %v834, %v2206
        %v2213 = vld [vmem:[%s799] sm:$0x1]
        %v2214 = vld [vmem:[%s802] sm:$0x1]
        %2215 = vadd.xlane.f32.xlu0 %v2209
        %v2216 = vpop.xlane.xlu0 %2215
        %2217 = vadd.xlane.f32.xlu0 %v2210
        %v2218 = vpop.xlane.xlu0 %2217
        %2219 = vadd.xlane.f32.xlu0 %v2211
        %v2220 = vpop.xlane.xlu0 %2219
        %2221 = vadd.xlane.f32.xlu0 %v2212
        %v2222 = vpop.xlane.xlu0 %2221
        %v2223 = vmul.f32 %v2216, %v846
        %v2224 = vmul.f32 %v2218, %v846
        %v2225 = vmul.f32 %v2220, %v846
        %v2226 = vmul.f32 %v2222, %v846
        %v2227 = vsub.f32 %v2209, %v2223
        %v2228 = vsub.f32 %v2210, %v2224
        %v2229 = vsub.f32 %v2211, %v2225
        %v2230 = vsub.f32 %v2212, %v2226
        %v2231 = vmul.f32 %v2227, %v2227
        %v2232 = vmul.f32 %v2228, %v2228
        %v2233 = vmul.f32 %v2229, %v2229
        %v2234 = vmul.f32 %v2230, %v2230
        %2235 = vadd.xlane.f32.xlu0 %v2231
        %v2236 = vpop.xlane.xlu0 %2235
        %2237 = vadd.xlane.f32.xlu0 %v2232
        %v2238 = vpop.xlane.xlu0 %2237
        %2239 = vadd.xlane.f32.xlu0 %v2233
        %v2240 = vpop.xlane.xlu0 %2239
        %2241 = vadd.xlane.f32.xlu0 %v2234
        %v2242 = vpop.xlane.xlu0 %2241
        %v2243 = vmul.f32 %v2236, %v846
        %v2244 = vmul.f32 %v2238, %v846
        %v2245 = vmul.f32 %v2240, %v846
        %v2246 = vmul.f32 %v2242, %v846
        %v2247 = vadd.f32 %v2243, 1e-05
        %v2248 = vadd.f32 %v2244, 1e-05
        %v2249 = vadd.f32 %v2245, 1e-05
        %v2250 = vadd.f32 %v2246, 1e-05
        %v2251 = vrsqrt.pop %v2247
        %v2252 = vrsqrt.pop %v2248
        %v2253 = vrsqrt.pop %v2249
        %v2254 = vrsqrt.pop %v2250
        %v2255 = vmul.f32 %v2227, %v2251
        %v2256 = vmul.f32 %v2228, %v2252
        %v2257 = vmul.f32 %v2229, %v2253
        %v2258 = vmul.f32 %v2230, %v2254
        %v2260 = vlaneseq
        %v2261 = vshrl.u32 %v2260, 7
        %v2262 = vsub.s32 0, %v2261
        %v2263 = vrot.slane %v2213, %v2262
        %v2265 = vmul.f32 %v2255, %v2263
        %v2266 = vmul.f32 %v2256, %v2263
        %v2267 = vmul.f32 %v2257, %v2263
        %v2268 = vmul.f32 %v2258, %v2263
        %v2270 = vlaneseq
        %v2271 = vshrl.u32 %v2270, 7
        %v2272 = vsub.s32 0, %v2271
        %v2273 = vrot.slane %v2214, %v2272
        %v2275 = vadd.f32 %v2265, %v2273
        %v2276 = vadd.f32 %v2266, %v2273
        %v2277 = vadd.f32 %v2267, %v2273
        %v2278 = vadd.f32 %v2268, %v2273
        %v2279 = vpack.c.bf16 %v2276, %v2275
        %v2280 = vpack.c.bf16 %v2278, %v2277
        %v2281 = vld [vmem:[%s696] sm:$0xff]
        %v2282 = vld [vmem:[%s696 + $0x8] sm:$0xff]
        %v2283 = vld [vmem:[%s696 + $0x10] sm:$0xff]
        %v2284 = vld [vmem:[%s696 + $0x18] sm:$0xff]
        %v2285 = vld [vmem:[%s696 + $0x20] sm:$0xff]
        %v2286 = vld [vmem:[%s696 + $0x28] sm:$0xff]
        %v2287 = vld [vmem:[%s696 + $0x30] sm:$0xff]
        %v2288 = vld [vmem:[%s696 + $0x38] sm:$0xff]
        %v2289 = vld [vmem:[%s696 + $0x40] sm:$0xff]
        %v2290 = vld [vmem:[%s696 + $0x48] sm:$0xff]
        %v2291 = vld [vmem:[%s696 + $0x50] sm:$0xff]
        %v2292 = vld [vmem:[%s696 + $0x58] sm:$0xff]
        %v2293 = vld [vmem:[%s696 + $0x60] sm:$0xff]
        %v2294 = vld [vmem:[%s696 + $0x68] sm:$0xff]
        %v2295 = vld [vmem:[%s696 + $0x70] sm:$0xff]
        %v2296 = vld [vmem:[%s696 + $0x78] sm:$0xff]
        %v2297 = vld [vmem:[%s696 + $0x80] sm:$0xff]
        %v2298 = vld [vmem:[%s696 + $0x88] sm:$0xff]
        %v2299 = vld [vmem:[%s696 + $0x90] sm:$0xff]
        %v2300 = vld [vmem:[%s696 + $0x98] sm:$0xff]
        %v2301 = vld [vmem:[%s696 + $0xa0] sm:$0xff]
        %v2302 = vld [vmem:[%s696 + $0xa8] sm:$0xff]
        %v2303 = vld [vmem:[%s696 + $0xb0] sm:$0xff]
        %v2304 = vld [vmem:[%s696 + $0xb8] sm:$0xff]
        %v2305 = vld [vmem:[%s696 + $0xc0] sm:$0xff]
        %v2306 = vld [vmem:[%s696 + $0xc8] sm:$0xff]
        %v2307 = vld [vmem:[%s696 + $0xd0] sm:$0xff]
        %v2308 = vld [vmem:[%s696 + $0xd8] sm:$0xff]
        %v2309 = vld [vmem:[%s696 + $0xe0] sm:$0xff]
        %v2310 = vld [vmem:[%s696 + $0xe8] sm:$0xff]
        %v2311 = vld [vmem:[%s696 + $0xf0] sm:$0xff]
        %v2312 = vld [vmem:[%s696 + $0xf8] sm:$0xff]
        %v2313 = vld [vmem:[%s806] sm:$0xf]
        %v2315 = vlaneseq
        %v2316 = vshrl.u32 %v2315, 7
        %v2317 = vsub.s32 0, %v2316
        %v2318 = vrot.slane %v2313, %v2317
        %v2319 = vlaneseq
        %v2320 = vshrl.u32 %v2319, 7
        %v2321 = vsub.s32 1, %v2320
        %v2322 = vrot.slane %v2313, %v2321
        %v2323 = vlaneseq
        %v2324 = vshrl.u32 %v2323, 7
        %v2325 = vsub.s32 2, %v2324
        %v2326 = vrot.slane %v2313, %v2325
        %v2327 = vlaneseq
        %v2328 = vshrl.u32 %v2327, 7
        %v2329 = vsub.s32 3, %v2328
        %v2330 = vrot.slane %v2313, %v2329
        %v2367 = vunpack.c.l.b16 %v2281
        %v2368 = vunpack.c.h.b16 %v2281
        %v2369 = vunpack.c.l.b16 %v2282
        %v2370 = vunpack.c.h.b16 %v2282
        %v2371 = vunpack.c.l.b16 %v2283
        %v2372 = vunpack.c.h.b16 %v2283
        %v2373 = vunpack.c.l.b16 %v2284
        %v2374 = vunpack.c.h.b16 %v2284
        %v2375 = vunpack.c.l.b16 %v2285
        %v2376 = vunpack.c.h.b16 %v2285
        %v2377 = vunpack.c.l.b16 %v2286
        %v2378 = vunpack.c.h.b16 %v2286
        %v2379 = vunpack.c.l.b16 %v2287
        %v2380 = vunpack.c.h.b16 %v2287
        %v2381 = vunpack.c.l.b16 %v2288
        %v2382 = vunpack.c.h.b16 %v2288
        %v2383 = vunpack.c.l.b16 %v2289
        %v2384 = vunpack.c.h.b16 %v2289
        %v2385 = vunpack.c.l.b16 %v2290
        %v2386 = vunpack.c.h.b16 %v2290
        %v2387 = vunpack.c.l.b16 %v2291
        %v2388 = vunpack.c.h.b16 %v2291
        %v2389 = vunpack.c.l.b16 %v2292
        %v2390 = vunpack.c.h.b16 %v2292
        %v2391 = vunpack.c.l.b16 %v2293
        %v2392 = vunpack.c.h.b16 %v2293
        %v2393 = vunpack.c.l.b16 %v2294
        %v2394 = vunpack.c.h.b16 %v2294
        %v2395 = vunpack.c.l.b16 %v2295
        %v2396 = vunpack.c.h.b16 %v2295
        %v2397 = vunpack.c.l.b16 %v2296
        %v2398 = vunpack.c.h.b16 %v2296
        %v2399 = vunpack.c.l.b16 %v2297
        %v2400 = vunpack.c.h.b16 %v2297
        %v2401 = vunpack.c.l.b16 %v2298
        %v2402 = vunpack.c.h.b16 %v2298
        %v2403 = vunpack.c.l.b16 %v2299
        %v2404 = vunpack.c.h.b16 %v2299
        %v2405 = vunpack.c.l.b16 %v2300
        %v2406 = vunpack.c.h.b16 %v2300
        %v2407 = vunpack.c.l.b16 %v2301
        %v2408 = vunpack.c.h.b16 %v2301
        %v2409 = vunpack.c.l.b16 %v2302
        %v2410 = vunpack.c.h.b16 %v2302
        %v2411 = vunpack.c.l.b16 %v2303
        %v2412 = vunpack.c.h.b16 %v2303
        %v2413 = vunpack.c.l.b16 %v2304
        %v2414 = vunpack.c.h.b16 %v2304
        %v2415 = vunpack.c.l.b16 %v2305
        %v2416 = vunpack.c.h.b16 %v2305
        %v2417 = vunpack.c.l.b16 %v2306
        %v2418 = vunpack.c.h.b16 %v2306
        %v2419 = vunpack.c.l.b16 %v2307
        %v2420 = vunpack.c.h.b16 %v2307
        %v2421 = vunpack.c.l.b16 %v2308
        %v2422 = vunpack.c.h.b16 %v2308
        %v2423 = vunpack.c.l.b16 %v2309
        %v2424 = vunpack.c.h.b16 %v2309
        %v2425 = vunpack.c.l.b16 %v2310
        %v2426 = vunpack.c.h.b16 %v2310
        %v2427 = vunpack.c.l.b16 %v2311
        %v2428 = vunpack.c.h.b16 %v2311
        %v2429 = vunpack.c.l.b16 %v2312
        %v2430 = vunpack.c.h.b16 %v2312
        %v2431 = vpack.c.b16 %v2371, %v2367
        %v2432 = vpack.c.b16 %v2372, %v2368
        %v2433 = vpack.c.b16 %v2373, %v2369
        %v2434 = vpack.c.b16 %v2374, %v2370
        %v2435 = vpack.c.b16 %v2379, %v2375
        %v2436 = vpack.c.b16 %v2380, %v2376
        %v2437 = vpack.c.b16 %v2381, %v2377
        %v2438 = vpack.c.b16 %v2382, %v2378
        %v2439 = vpack.c.b16 %v2387, %v2383
        %v2440 = vpack.c.b16 %v2388, %v2384
        %v2441 = vpack.c.b16 %v2389, %v2385
        %v2442 = vpack.c.b16 %v2390, %v2386
        %v2443 = vpack.c.b16 %v2395, %v2391
        %v2444 = vpack.c.b16 %v2396, %v2392
        %v2445 = vpack.c.b16 %v2397, %v2393
        %v2446 = vpack.c.b16 %v2398, %v2394
        %v2447 = vpack.c.b16 %v2403, %v2399
        %v2448 = vpack.c.b16 %v2404, %v2400
        %v2449 = vpack.c.b16 %v2405, %v2401
        %v2450 = vpack.c.b16 %v2406, %v2402
        %v2451 = vpack.c.b16 %v2411, %v2407
        %v2452 = vpack.c.b16 %v2412, %v2408
        %v2453 = vpack.c.b16 %v2413, %v2409
        %v2454 = vpack.c.b16 %v2414, %v2410
        %v2455 = vpack.c.b16 %v2419, %v2415
        %v2456 = vpack.c.b16 %v2420, %v2416
        %v2457 = vpack.c.b16 %v2421, %v2417
        %v2458 = vpack.c.b16 %v2422, %v2418
        %v2459 = vpack.c.b16 %v2427, %v2423
        %v2460 = vpack.c.b16 %v2428, %v2424
        %v2461 = vpack.c.b16 %v2429, %v2425
        %v2462 = vpack.c.b16 %v2430, %v2426
        %2495 = vmatprep.subr.bf16.mxu0 %v2432
        %2496 = vmatpush1.bf16.msra.mxu0 %v2431
        %2497 = vmatprep.subr.bf16.mxu0 %v2436
        %2498 = vmatpush1.bf16.msra.mxu0 %v2435
        %2499 = vmatprep.subr.bf16.mxu0 %v2440
        %2500 = vmatpush1.bf16.msra.mxu0 %v2439
        %2501 = vmatprep.subr.bf16.mxu0 %v2444
        %2502 = vmatpush1.bf16.msra.mxu0 %v2443
        %2503 = vmatprep.subr.bf16.mxu0 %v2448
        %2504 = vmatpush1.bf16.msra.mxu0 %v2447
        %2505 = vmatprep.subr.bf16.mxu0 %v2452
        %2506 = vmatpush1.bf16.msra.mxu0 %v2451
        %2507 = vmatprep.subr.bf16.mxu0 %v2456
        %2508 = vmatpush1.bf16.msra.mxu0 %v2455
        %2509 = vmatprep.subr.bf16.mxu0 %v2460
        %2510 = vmatpush1.bf16.msra.mxu0 %v2459
        %2511 = vmatprep.subr.bf16.mxu0 0
        %2512 = vmatpush1.bf16.msra.mxu0 0
        %2513 = vmatprep.subr.bf16.mxu0 0
        %2514 = vmatpush1.bf16.msra.mxu0 0
        %2515 = vmatprep.subr.bf16.mxu0 0
        %2516 = vmatpush1.bf16.msra.mxu0 0
        %2517 = vmatprep.subr.bf16.mxu0 0
        %2518 = vmatpush1.bf16.msra.mxu0 0
        %2519 = vmatprep.subr.bf16.mxu0 0
        %2520 = vmatpush1.bf16.msra.mxu0 0
        %2521 = vmatprep.subr.bf16.mxu0 0
        %2522 = vmatpush1.bf16.msra.mxu0 0
        %2523 = vmatprep.subr.bf16.mxu0 0
        %2524 = vmatpush1.bf16.msra.mxu0 0
        %2525 = vmatprep.subr.bf16.mxu0 0
        %2526 = vmatpush1.bf16.msra.mxu0 0
        %2527 = vmatprep.mubr.bf16.mxu0 0
        %2528 = vmatmul.mubr.bf16.gmra.mrb[0].mxu0 %v2279
        %v2529 = vpop.f32.mrb[0].mxu0
        %v2530 = vadd.f32 %v2318, %v2529
        %v2531 = vpop.f32.mrb[0].mxu0
        %v2532 = vadd.f32 %v2322, %v2531
        %v2533 = vpop.f32.mrb[0].mxu0
        %v2534 = vadd.f32 %v2318, %v2533
        %v2535 = vpop.f32.mrb[0].mxu0
        %v2536 = vadd.f32 %v2322, %v2535
        %2537 = vmatprep.mubr.bf16.mxu0 0
        %2538 = vmatmul.mubr.bf16.gmra.mrb[0].mxu0 %v2280
        %v2539 = vpop.f32.mrb[0].mxu0
        %v2540 = vadd.f32 %v2318, %v2539
        %v2541 = vpop.f32.mrb[0].mxu0
        %v2542 = vadd.f32 %v2322, %v2541
        %v2543 = vpop.f32.mrb[0].mxu0
        %v2544 = vadd.f32 %v2318, %v2543
        %v2545 = vpop.f32.mrb[0].mxu0
        %v2546 = vadd.f32 %v2322, %v2545
        %2547 = vdwg.mxu0
        %2548 = vmatprep.subr.bf16.mxu0 %v2434
        %2549 = vmatpush1.bf16.msra.mxu0 %v2433
        %2550 = vmatprep.subr.bf16.mxu0 %v2438
        %2551 = vmatpush1.bf16.msra.mxu0 %v2437
        %2552 = vmatprep.subr.bf16.mxu0 %v2442
        %2553 = vmatpush1.bf16.msra.mxu0 %v2441
        %2554 = vmatprep.subr.bf16.mxu0 %v2446
        %2555 = vmatpush1.bf16.msra.mxu0 %v2445
        %2556 = vmatprep.subr.bf16.mxu0 %v2450
        %2557 = vmatpush1.bf16.msra.mxu0 %v2449
        %2558 = vmatprep.subr.bf16.mxu0 %v2454
        %2559 = vmatpush1.bf16.msra.mxu0 %v2453
        %2560 = vmatprep.subr.bf16.mxu0 %v2458
        %2561 = vmatpush1.bf16.msra.mxu0 %v2457
        %2562 = vmatprep.subr.bf16.mxu0 %v2462
        %2563 = vmatpush1.bf16.msra.mxu0 %v2461
        %2564 = vmatprep.subr.bf16.mxu0 0
        %2565 = vmatpush1.bf16.msra.mxu0 0
        %2566 = vmatprep.subr.bf16.mxu0 0
        %2567 = vmatpush1.bf16.msra.mxu0 0
        %2568 = vmatprep.subr.bf16.mxu0 0
        %2569 = vmatpush1.bf16.msra.mxu0 0
        %2570 = vmatprep.subr.bf16.mxu0 0
        %2571 = vmatpush1.bf16.msra.mxu0 0
        %2572 = vmatprep.subr.bf16.mxu0 0
        %2573 = vmatpush1.bf16.msra.mxu0 0
        %2574 = vmatprep.subr.bf16.mxu0 0
        %2575 = vmatpush1.bf16.msra.mxu0 0
        %2576 = vmatprep.subr.bf16.mxu0 0
        %2577 = vmatpush1.bf16.msra.mxu0 0
        %2578 = vmatprep.subr.bf16.mxu0 0
        %2579 = vmatpush1.bf16.msra.mxu0 0
        %2580 = vmatprep.mubr.bf16.mxu0 0
        %2581 = vmatmul.mubr.bf16.gmra.mrb[0].mxu0 %v2279
        %v2582 = vpop.f32.mrb[0].mxu0
        %v2583 = vadd.f32 %v2326, %v2582
        %v2584 = vpop.f32.mrb[0].mxu0
        %v2585 = vadd.f32 %v2330, %v2584
        %v2586 = vpop.f32.mrb[0].mxu0
        %v2587 = vadd.f32 %v2326, %v2586
        %v2588 = vpop.f32.mrb[0].mxu0
        %v2589 = vadd.f32 %v2330, %v2588
        %2590 = vmatprep.mubr.bf16.mxu0 0
        %2591 = vmatmul.mubr.bf16.gmra.mrb[0].mxu0 %v2280
        %v2592 = vpop.f32.mrb[0].mxu0
        %v2593 = vadd.f32 %v2326, %v2592
        %v2594 = vpop.f32.mrb[0].mxu0
        %v2595 = vadd.f32 %v2330, %v2594
        %v2596 = vpop.f32.mrb[0].mxu0
        %v2597 = vadd.f32 %v2326, %v2596
        %v2598 = vpop.f32.mrb[0].mxu0
        %v2599 = vadd.f32 %v2330, %v2598
        %2600 = vdwg.mxu0
        %v2601 = vmul.f32 %v2530, 1.702
        %v2602 = vmul.f32 %v2532, 1.702
        %v2603 = vmul.f32 %v2583, 1.702
        %v2604 = vmul.f32 %v2585, 1.702
        %v2605 = vmul.f32 %v2534, 1.702
        %v2606 = vmul.f32 %v2536, 1.702
        %v2607 = vmul.f32 %v2587, 1.702
        %v2608 = vmul.f32 %v2589, 1.702
        %v2609 = vmul.f32 %v2540, 1.702
        %v2610 = vmul.f32 %v2542, 1.702
        %v2611 = vmul.f32 %v2593, 1.702
        %v2612 = vmul.f32 %v2595, 1.702
        %v2613 = vmul.f32 %v2544, 1.702
        %v2614 = vmul.f32 %v2546, 1.702
        %v2615 = vmul.f32 %v2597, 1.702
        %v2616 = vmul.f32 %v2599, 1.702
        %v2617 = vxor.u32 %v2601, 2147483648
        %v2618 = vxor.u32 %v2602, 2147483648
        %v2619 = vxor.u32 %v2603, 2147483648
        %v2620 = vxor.u32 %v2604, 2147483648
        %v2621 = vxor.u32 %v2605, 2147483648
        %v2622 = vxor.u32 %v2606, 2147483648
        %v2623 = vxor.u32 %v2607, 2147483648
        %v2624 = vxor.u32 %v2608, 2147483648
        %v2625 = vxor.u32 %v2609, 2147483648
        %v2626 = vxor.u32 %v2610, 2147483648
        %v2627 = vxor.u32 %v2611, 2147483648
        %v2628 = vxor.u32 %v2612, 2147483648
        %v2629 = vxor.u32 %v2613, 2147483648
        %v2630 = vxor.u32 %v2614, 2147483648
        %v2631 = vxor.u32 %v2615, 2147483648
        %v2632 = vxor.u32 %v2616, 2147483648
        %v2633 = vmul.f32 %v2617, 1.442695
        %v2634 = vpow.pop %v2633
        %v2635 = vmul.f32 %v2618, 1.442695
        %v2636 = vpow.pop %v2635
        %v2637 = vmul.f32 %v2619, 1.442695
        %v2638 = vpow.pop %v2637
        %v2639 = vmul.f32 %v2620, 1.442695
        %v2640 = vpow.pop %v2639
        %v2641 = vmul.f32 %v2621, 1.442695
        %v2642 = vpow.pop %v2641
        %v2643 = vmul.f32 %v2622, 1.442695
        %v2644 = vpow.pop %v2643
        %v2645 = vmul.f32 %v2623, 1.442695
        %v2646 = vpow.pop %v2645
        %v2647 = vmul.f32 %v2624, 1.442695
        %v2648 = vpow.pop %v2647
        %v2649 = vmul.f32 %v2625, 1.442695
        %v2650 = vpow.pop %v2649
        %v2651 = vmul.f32 %v2626, 1.442695
        %v2652 = vpow.pop %v2651
        %v2653 = vmul.f32 %v2627, 1.442695
        %v2654 = vpow.pop %v2653
        %v2655 = vmul.f32 %v2628, 1.442695
        %v2656 = vpow.pop %v2655
        %v2657 = vmul.f32 %v2629, 1.442695
        %v2658 = vpow.pop %v2657
        %v2659 = vmul.f32 %v2630, 1.442695
        %v2660 = vpow.pop %v2659
        %v2661 = vmul.f32 %v2631, 1.442695
        %v2662 = vpow.pop %v2661
        %v2663 = vmul.f32 %v2632, 1.442695
        %v2664 = vpow.pop %v2663
        %v2665 = vadd.f32 %v2634, 1.0
        %v2666 = vadd.f32 %v2636, 1.0
        %v2667 = vadd.f32 %v2638, 1.0
        %v2668 = vadd.f32 %v2640, 1.0
        %v2669 = vadd.f32 %v2642, 1.0
        %v2670 = vadd.f32 %v2644, 1.0
        %v2671 = vadd.f32 %v2646, 1.0
        %v2672 = vadd.f32 %v2648, 1.0
        %v2673 = vadd.f32 %v2650, 1.0
        %v2674 = vadd.f32 %v2652, 1.0
        %v2675 = vadd.f32 %v2654, 1.0
        %v2676 = vadd.f32 %v2656, 1.0
        %v2677 = vadd.f32 %v2658, 1.0
        %v2678 = vadd.f32 %v2660, 1.0
        %v2679 = vadd.f32 %v2662, 1.0
        %v2680 = vadd.f32 %v2664, 1.0
        %v2681 = vrcp.pop %v2665
        %v2682 = vmul.f32 1.0, %v2681
        %v2683 = vrcp.pop %v2666
        %v2684 = vmul.f32 1.0, %v2683
        %v2685 = vrcp.pop %v2667
        %v2686 = vmul.f32 1.0, %v2685
        %v2687 = vrcp.pop %v2668
        %v2688 = vmul.f32 1.0, %v2687
        %v2689 = vrcp.pop %v2669
        %v2690 = vmul.f32 1.0, %v2689
        %v2691 = vrcp.pop %v2670
        %v2692 = vmul.f32 1.0, %v2691
        %v2693 = vrcp.pop %v2671
        %v2694 = vmul.f32 1.0, %v2693
        %v2695 = vrcp.pop %v2672
        %v2696 = vmul.f32 1.0, %v2695
        %v2697 = vrcp.pop %v2673
        %v2698 = vmul.f32 1.0, %v2697
        %v2699 = vrcp.pop %v2674
        %v2700 = vmul.f32 1.0, %v2699
        %v2701 = vrcp.pop %v2675
        %v2702 = vmul.f32 1.0, %v2701
        %v2703 = vrcp.pop %v2676
        %v2704 = vmul.f32 1.0, %v2703
        %v2705 = vrcp.pop %v2677
        %v2706 = vmul.f32 1.0, %v2705
        %v2707 = vrcp.pop %v2678
        %v2708 = vmul.f32 1.0, %v2707
        %v2709 = vrcp.pop %v2679
        %v2710 = vmul.f32 1.0, %v2709
        %v2711 = vrcp.pop %v2680
        %v2712 = vmul.f32 1.0, %v2711
        %v2713 = vmul.f32 %v2530, %v2682
        %v2714 = vmul.f32 %v2532, %v2684
        %v2715 = vmul.f32 %v2583, %v2686
        %v2716 = vmul.f32 %v2585, %v2688
        %v2717 = vmul.f32 %v2534, %v2690
        %v2718 = vmul.f32 %v2536, %v2692
        %v2719 = vmul.f32 %v2587, %v2694
        %v2720 = vmul.f32 %v2589, %v2696
        %v2721 = vmul.f32 %v2540, %v2698
        %v2722 = vmul.f32 %v2542, %v2700
        %v2723 = vmul.f32 %v2593, %v2702
        %v2724 = vmul.f32 %v2595, %v2704
        %v2725 = vmul.f32 %v2544, %v2706
        %v2726 = vmul.f32 %v2546, %v2708
        %v2727 = vmul.f32 %v2597, %v2710
        %v2728 = vmul.f32 %v2599, %v2712
        %v2729 = vpack.c.bf16 %v2717, %v2713
        %v2730 = vpack.c.bf16 %v2718, %v2714
        %v2731 = vpack.c.bf16 %v2719, %v2715
        %v2732 = vpack.c.bf16 %v2720, %v2716
        %v2733 = vpack.c.bf16 %v2725, %v2721
        %v2734 = vpack.c.bf16 %v2726, %v2722
        %v2735 = vpack.c.bf16 %v2727, %v2723
        %v2736 = vpack.c.bf16 %v2728, %v2724
        %v2737 = vld [vmem:[%s705] sm:$0xf]
        %v2738 = vld [vmem:[%s705 + $0x4] sm:$0xf]
        %v2739 = vld [vmem:[%s705 + $0x8] sm:$0xf]
        %v2740 = vld [vmem:[%s705 + $0xc] sm:$0xf]
        %v2741 = vld [vmem:[%s705 + $0x10] sm:$0xf]
        %v2742 = vld [vmem:[%s705 + $0x14] sm:$0xf]
        %v2743 = vld [vmem:[%s705 + $0x18] sm:$0xf]
        %v2744 = vld [vmem:[%s705 + $0x1c] sm:$0xf]
        %v2745 = vld [vmem:[%s705 + $0x20] sm:$0xf]
        %v2746 = vld [vmem:[%s705 + $0x24] sm:$0xf]
        %v2747 = vld [vmem:[%s705 + $0x28] sm:$0xf]
        %v2748 = vld [vmem:[%s705 + $0x2c] sm:$0xf]
        %v2749 = vld [vmem:[%s705 + $0x30] sm:$0xf]
        %v2750 = vld [vmem:[%s705 + $0x34] sm:$0xf]
        %v2751 = vld [vmem:[%s705 + $0x38] sm:$0xf]
        %v2752 = vld [vmem:[%s705 + $0x3c] sm:$0xf]
        %v2753 = vld [vmem:[%s705 + $0x40] sm:$0xf]
        %v2754 = vld [vmem:[%s705 + $0x44] sm:$0xf]
        %v2755 = vld [vmem:[%s705 + $0x48] sm:$0xf]
        %v2756 = vld [vmem:[%s705 + $0x4c] sm:$0xf]
        %v2757 = vld [vmem:[%s705 + $0x50] sm:$0xf]
        %v2758 = vld [vmem:[%s705 + $0x54] sm:$0xf]
        %v2759 = vld [vmem:[%s705 + $0x58] sm:$0xf]
        %v2760 = vld [vmem:[%s705 + $0x5c] sm:$0xf]
        %v2761 = vld [vmem:[%s705 + $0x60] sm:$0xf]
        %v2762 = vld [vmem:[%s705 + $0x64] sm:$0xf]
        %v2763 = vld [vmem:[%s705 + $0x68] sm:$0xf]
        %v2764 = vld [vmem:[%s705 + $0x6c] sm:$0xf]
        %v2765 = vld [vmem:[%s705 + $0x70] sm:$0xf]
        %v2766 = vld [vmem:[%s705 + $0x74] sm:$0xf]
        %v2767 = vld [vmem:[%s705 + $0x78] sm:$0xf]
        %v2768 = vld [vmem:[%s705 + $0x7c] sm:$0xf]
        %v2769 = vld [vmem:[%s705 + $0x80] sm:$0xf]
        %v2770 = vld [vmem:[%s705 + $0x84] sm:$0xf]
        %v2771 = vld [vmem:[%s705 + $0x88] sm:$0xf]
        %v2772 = vld [vmem:[%s705 + $0x8c] sm:$0xf]
        %v2773 = vld [vmem:[%s705 + $0x90] sm:$0xf]
        %v2774 = vld [vmem:[%s705 + $0x94] sm:$0xf]
        %v2775 = vld [vmem:[%s705 + $0x98] sm:$0xf]
        %v2776 = vld [vmem:[%s705 + $0x9c] sm:$0xf]
        %v2777 = vld [vmem:[%s705 + $0xa0] sm:$0xf]
        %v2778 = vld [vmem:[%s705 + $0xa4] sm:$0xf]
        %v2779 = vld [vmem:[%s705 + $0xa8] sm:$0xf]
        %v2780 = vld [vmem:[%s705 + $0xac] sm:$0xf]
        %v2781 = vld [vmem:[%s705 + $0xb0] sm:$0xf]
        %v2782 = vld [vmem:[%s705 + $0xb4] sm:$0xf]
        %v2783 = vld [vmem:[%s705 + $0xb8] sm:$0xf]
        %v2784 = vld [vmem:[%s705 + $0xbc] sm:$0xf]
        %v2785 = vld [vmem:[%s705 + $0xc0] sm:$0xf]
        %v2786 = vld [vmem:[%s705 + $0xc4] sm:$0xf]
        %v2787 = vld [vmem:[%s705 + $0xc8] sm:$0xf]
        %v2788 = vld [vmem:[%s705 + $0xcc] sm:$0xf]
        %v2789 = vld [vmem:[%s705 + $0xd0] sm:$0xf]
        %v2790 = vld [vmem:[%s705 + $0xd4] sm:$0xf]
        %v2791 = vld [vmem:[%s705 + $0xd8] sm:$0xf]
        %v2792 = vld [vmem:[%s705 + $0xdc] sm:$0xf]
        %v2793 = vld [vmem:[%s705 + $0xe0] sm:$0xf]
        %v2794 = vld [vmem:[%s705 + $0xe4] sm:$0xf]
        %v2795 = vld [vmem:[%s705 + $0xe8] sm:$0xf]
        %v2796 = vld [vmem:[%s705 + $0xec] sm:$0xf]
        %v2797 = vld [vmem:[%s705 + $0xf0] sm:$0xf]
        %v2798 = vld [vmem:[%s705 + $0xf4] sm:$0xf]
        %v2799 = vld [vmem:[%s705 + $0xf8] sm:$0xf]
        %v2800 = vld [vmem:[%s705 + $0xfc] sm:$0xf]
        %v2801 = vld [vmem:[%s809] sm:$0x1]
        %v2803 = vlaneseq
        %v2804 = vshrl.u32 %v2803, 7
        %v2805 = vsub.s32 0, %v2804
        %v2806 = vrot.slane %v2801, %v2805
        %v2872 = vunpack.c.l.b16 %v2737
        %v2873 = vunpack.c.l.b16 %v2738
        %v2874 = vunpack.c.l.b16 %v2739
        %v2875 = vunpack.c.l.b16 %v2740
        %v2876 = vunpack.c.l.b16 %v2741
        %v2877 = vunpack.c.l.b16 %v2742
        %v2878 = vunpack.c.l.b16 %v2743
        %v2879 = vunpack.c.l.b16 %v2744
        %v2880 = vunpack.c.l.b16 %v2745
        %v2881 = vunpack.c.l.b16 %v2746
        %v2882 = vunpack.c.l.b16 %v2747
        %v2883 = vunpack.c.l.b16 %v2748
        %v2884 = vunpack.c.l.b16 %v2749
        %v2885 = vunpack.c.l.b16 %v2750
        %v2886 = vunpack.c.l.b16 %v2751
        %v2887 = vunpack.c.l.b16 %v2752
        %v2888 = vunpack.c.l.b16 %v2753
        %v2889 = vunpack.c.l.b16 %v2754
        %v2890 = vunpack.c.l.b16 %v2755
        %v2891 = vunpack.c.l.b16 %v2756
        %v2892 = vunpack.c.l.b16 %v2757
        %v2893 = vunpack.c.l.b16 %v2758
        %v2894 = vunpack.c.l.b16 %v2759
        %v2895 = vunpack.c.l.b16 %v2760
        %v2896 = vunpack.c.l.b16 %v2761
        %v2897 = vunpack.c.l.b16 %v2762
        %v2898 = vunpack.c.l.b16 %v2763
        %v2899 = vunpack.c.l.b16 %v2764
        %v2900 = vunpack.c.l.b16 %v2765
        %v2901 = vunpack.c.l.b16 %v2766
        %v2902 = vunpack.c.l.b16 %v2767
        %v2903 = vunpack.c.l.b16 %v2768
        %v2904 = vunpack.c.l.b16 %v2769
        %v2905 = vunpack.c.l.b16 %v2770
        %v2906 = vunpack.c.l.b16 %v2771
        %v2907 = vunpack.c.l.b16 %v2772
        %v2908 = vunpack.c.l.b16 %v2773
        %v2909 = vunpack.c.l.b16 %v2774
        %v2910 = vunpack.c.l.b16 %v2775
        %v2911 = vunpack.c.l.b16 %v2776
        %v2912 = vunpack.c.l.b16 %v2777
        %v2913 = vunpack.c.l.b16 %v2778
        %v2914 = vunpack.c.l.b16 %v2779
        %v2915 = vunpack.c.l.b16 %v2780
        %v2916 = vunpack.c.l.b16 %v2781
        %v2917 = vunpack.c.l.b16 %v2782
        %v2918 = vunpack.c.l.b16 %v2783
        %v2919 = vunpack.c.l.b16 %v2784
        %v2920 = vunpack.c.l.b16 %v2785
        %v2921 = vunpack.c.l.b16 %v2786
        %v2922 = vunpack.c.l.b16 %v2787
        %v2923 = vunpack.c.l.b16 %v2788
        %v2924 = vunpack.c.l.b16 %v2789
        %v2925 = vunpack.c.l.b16 %v2790
        %v2926 = vunpack.c.l.b16 %v2791
        %v2927 = vunpack.c.l.b16 %v2792
        %v2928 = vunpack.c.l.b16 %v2793
        %v2929 = vunpack.c.l.b16 %v2794
        %v2930 = vunpack.c.l.b16 %v2795
        %v2931 = vunpack.c.l.b16 %v2796
        %v2932 = vunpack.c.l.b16 %v2797
        %v2933 = vunpack.c.l.b16 %v2798
        %v2934 = vunpack.c.l.b16 %v2799
        %v2935 = vunpack.c.l.b16 %v2800
        %v2936 = vpack.c.b16 %v2873, %v2872
        %v2937 = vpack.c.b16 %v2875, %v2874
        %v2938 = vpack.c.b16 %v2877, %v2876
        %v2939 = vpack.c.b16 %v2879, %v2878
        %v2940 = vpack.c.b16 %v2881, %v2880
        %v2941 = vpack.c.b16 %v2883, %v2882
        %v2942 = vpack.c.b16 %v2885, %v2884
        %v2943 = vpack.c.b16 %v2887, %v2886
        %v2944 = vpack.c.b16 %v2889, %v2888
        %v2945 = vpack.c.b16 %v2891, %v2890
        %v2946 = vpack.c.b16 %v2893, %v2892
        %v2947 = vpack.c.b16 %v2895, %v2894
        %v2948 = vpack.c.b16 %v2897, %v2896
        %v2949 = vpack.c.b16 %v2899, %v2898
        %v2950 = vpack.c.b16 %v2901, %v2900
        %v2951 = vpack.c.b16 %v2903, %v2902
        %v2952 = vpack.c.b16 %v2905, %v2904
        %v2953 = vpack.c.b16 %v2907, %v2906
        %v2954 = vpack.c.b16 %v2909, %v2908
        %v2955 = vpack.c.b16 %v2911, %v2910
        %v2956 = vpack.c.b16 %v2913, %v2912
        %v2957 = vpack.c.b16 %v2915, %v2914
        %v2958 = vpack.c.b16 %v2917, %v2916
        %v2959 = vpack.c.b16 %v2919, %v2918
        %v2960 = vpack.c.b16 %v2921, %v2920
        %v2961 = vpack.c.b16 %v2923, %v2922
        %v2962 = vpack.c.b16 %v2925, %v2924
        %v2963 = vpack.c.b16 %v2927, %v2926
        %v2964 = vpack.c.b16 %v2929, %v2928
        %v2965 = vpack.c.b16 %v2931, %v2930
        %v2966 = vpack.c.b16 %v2933, %v2932
        %v2967 = vpack.c.b16 %v2935, %v2934
        %3000 = vmatprep.subr.bf16.mxu0 0
        %3001 = vmatpush1.bf16.msra.mxu0 %v2936
        %3002 = vmatprep.subr.bf16.mxu0 0
        %3003 = vmatpush1.bf16.msra.mxu0 %v2937
        %3004 = vmatprep.subr.bf16.mxu0 0
        %3005 = vmatpush1.bf16.msra.mxu0 %v2938
        %3006 = vmatprep.subr.bf16.mxu0 0
        %3007 = vmatpush1.bf16.msra.mxu0 %v2939
        %3008 = vmatprep.subr.bf16.mxu0 0
        %3009 = vmatpush1.bf16.msra.mxu0 %v2940
        %3010 = vmatprep.subr.bf16.mxu0 0
        %3011 = vmatpush1.bf16.msra.mxu0 %v2941
        %3012 = vmatprep.subr.bf16.mxu0 0
        %3013 = vmatpush1.bf16.msra.mxu0 %v2942
        %3014 = vmatprep.subr.bf16.mxu0 0
        %3015 = vmatpush1.bf16.msra.mxu0 %v2943
        %3016 = vmatprep.subr.bf16.mxu0 0
        %3017 = vmatpush1.bf16.msra.mxu0 %v2944
        %3018 = vmatprep.subr.bf16.mxu0 0
        %3019 = vmatpush1.bf16.msra.mxu0 %v2945
        %3020 = vmatprep.subr.bf16.mxu0 0
        %3021 = vmatpush1.bf16.msra.mxu0 %v2946
        %3022 = vmatprep.subr.bf16.mxu0 0
        %3023 = vmatpush1.bf16.msra.mxu0 %v2947
        %3024 = vmatprep.subr.bf16.mxu0 0
        %3025 = vmatpush1.bf16.msra.mxu0 %v2948
        %3026 = vmatprep.subr.bf16.mxu0 0
        %3027 = vmatpush1.bf16.msra.mxu0 %v2949
        %3028 = vmatprep.subr.bf16.mxu0 0
        %3029 = vmatpush1.bf16.msra.mxu0 %v2950
        %3030 = vmatprep.subr.bf16.mxu0 0
        %3031 = vmatpush1.bf16.msra.mxu0 %v2951
        %3032 = vmatprep.mubr.bf16.mxu0 %v2730
        %3033 = vmatmul.mubr.bf16.gmra.mrb[0].mxu0 %v2729
        %v3034 = vpop.f32.mrb[0].mxu0
        %v3035 = vadd.f32 %v2806, %v3034
        %v3036 = vpop.f32.mrb[0].mxu0
        %v3037 = vpop.f32.mrb[0].mxu0
        %v3038 = vadd.f32 %v2806, %v3037
        %v3039 = vpop.f32.mrb[0].mxu0
        %3040 = vmatprep.mubr.bf16.mxu0 %v2734
        %3041 = vmatmul.mubr.bf16.gmra.mrb[0].mxu0 %v2733
        %v3042 = vpop.f32.mrb[0].mxu0
        %v3043 = vadd.f32 %v2806, %v3042
        %v3044 = vpop.f32.mrb[0].mxu0
        %v3045 = vpop.f32.mrb[0].mxu0
        %v3046 = vadd.f32 %v2806, %v3045
        %v3047 = vpop.f32.mrb[0].mxu0
        %3048 = vdwg.mxu0
        %3049 = vmatprep.subr.bf16.mxu0 0
        %3050 = vmatpush1.bf16.msra.mxu0 %v2952
        %3051 = vmatprep.subr.bf16.mxu0 0
        %3052 = vmatpush1.bf16.msra.mxu0 %v2953
        %3053 = vmatprep.subr.bf16.mxu0 0
        %3054 = vmatpush1.bf16.msra.mxu0 %v2954
        %3055 = vmatprep.subr.bf16.mxu0 0
        %3056 = vmatpush1.bf16.msra.mxu0 %v2955
        %3057 = vmatprep.subr.bf16.mxu0 0
        %3058 = vmatpush1.bf16.msra.mxu0 %v2956
        %3059 = vmatprep.subr.bf16.mxu0 0
        %3060 = vmatpush1.bf16.msra.mxu0 %v2957
        %3061 = vmatprep.subr.bf16.mxu0 0
        %3062 = vmatpush1.bf16.msra.mxu0 %v2958
        %3063 = vmatprep.subr.bf16.mxu0 0
        %3064 = vmatpush1.bf16.msra.mxu0 %v2959
        %3065 = vmatprep.subr.bf16.mxu0 0
        %3066 = vmatpush1.bf16.msra.mxu0 %v2960
        %3067 = vmatprep.subr.bf16.mxu0 0
        %3068 = vmatpush1.bf16.msra.mxu0 %v2961
        %3069 = vmatprep.subr.bf16.mxu0 0
        %3070 = vmatpush1.bf16.msra.mxu0 %v2962
        %3071 = vmatprep.subr.bf16.mxu0 0
        %3072 = vmatpush1.bf16.msra.mxu0 %v2963
        %3073 = vmatprep.subr.bf16.mxu0 0
        %3074 = vmatpush1.bf16.msra.mxu0 %v2964
        %3075 = vmatprep.subr.bf16.mxu0 0
        %3076 = vmatpush1.bf16.msra.mxu0 %v2965
        %3077 = vmatprep.subr.bf16.mxu0 0
        %3078 = vmatpush1.bf16.msra.mxu0 %v2966
        %3079 = vmatprep.subr.bf16.mxu0 0
        %3080 = vmatpush1.bf16.msra.mxu0 %v2967
        %3081 = vmatprep.mubr.bf16.mxu0 %v2732
        %3082 = vmatmul.mubr.bf16.gmra.mrb[0].mxu0 %v2731
        %v3083 = vpop.f32.mrb[0].mxu0
        %v3084 = vadd.f32 %v3035, %v3083
        %v3085 = vpop.f32.mrb[0].mxu0
        %v3086 = vpop.f32.mrb[0].mxu0
        %v3087 = vadd.f32 %v3038, %v3086
        %v3088 = vpop.f32.mrb[0].mxu0
        %3089 = vmatprep.mubr.bf16.mxu0 %v2736
        %3090 = vmatmul.mubr.bf16.gmra.mrb[0].mxu0 %v2735
        %v3091 = vpop.f32.mrb[0].mxu0
        %v3092 = vadd.f32 %v3043, %v3091
        %v3093 = vpop.f32.mrb[0].mxu0
        %v3094 = vpop.f32.mrb[0].mxu0
        %v3095 = vadd.f32 %v3046, %v3094
        %v3096 = vpop.f32.mrb[0].mxu0
        %3097 = vdwg.mxu0
        %v3098 = vadd.f32 %v2209, %v3084
        %v3099 = vadd.f32 %v2210, %v3087
        %v3100 = vadd.f32 %v2211, %v3092
        %v3101 = vadd.f32 %v2212, %v3095
        %3102 = vst [vmem:[#allocation15] sm:$0xff] %v3098
        %3103 = vst [vmem:[#allocation15 + $0x8] sm:$0xff] %v3099
        %3104 = vst [vmem:[#allocation15 + $0x10] sm:$0xff] %v3100
        %3105 = vst [vmem:[#allocation15 + $0x18] sm:$0xff] %v3101
        %p3106 = scmp.eq.s32.totalorder %s42, 1
        // Predicated region
        $region113: #{tpu_custom_call.1} parent=79 // pred_check
          %p3107 = pneg %p3106
        $region114: #{tpu_custom_call.1} parent=79 // pred_check_branch
          %3109 = sbr.rel (%p3107) target = $region116
        $region115: #{tpu_custom_call.1} parent=79 // pred_region
          %v3110 = vld [vmem:[%s13] sm:$0x1]
          %v3111 = vld [vmem:[%s14] sm:$0x1]
          %3112 = vadd.xlane.f32.xlu0 %v3098
          %v3113 = vpop.xlane.xlu0 %3112
          %3114 = vadd.xlane.f32.xlu0 %v3099
          %v3115 = vpop.xlane.xlu0 %3114
          %3116 = vadd.xlane.f32.xlu0 %v3100
          %v3117 = vpop.xlane.xlu0 %3116
          %3118 = vadd.xlane.f32.xlu0 %v3101
          %v3119 = vpop.xlane.xlu0 %3118
          %v3120 = vmul.f32 %v3113, %v846
          %v3121 = vmul.f32 %v3115, %v846
          %v3122 = vmul.f32 %v3117, %v846
          %v3123 = vmul.f32 %v3119, %v846
          %v3124 = vsub.f32 %v3098, %v3120
          %v3125 = vsub.f32 %v3099, %v3121
          %v3126 = vsub.f32 %v3100, %v3122
          %v3127 = vsub.f32 %v3101, %v3123
          %v3128 = vmul.f32 %v3124, %v3124
          %v3129 = vmul.f32 %v3125, %v3125
          %v3130 = vmul.f32 %v3126, %v3126
          %v3131 = vmul.f32 %v3127, %v3127
          %3132 = vadd.xlane.f32.xlu0 %v3128
          %v3133 = vpop.xlane.xlu0 %3132
          %3134 = vadd.xlane.f32.xlu0 %v3129
          %v3135 = vpop.xlane.xlu0 %3134
          %3136 = vadd.xlane.f32.xlu0 %v3130
          %v3137 = vpop.xlane.xlu0 %3136
          %3138 = vadd.xlane.f32.xlu0 %v3131
          %v3139 = vpop.xlane.xlu0 %3138
          %v3140 = vmul.f32 %v3133, %v846
          %v3141 = vmul.f32 %v3135, %v846
          %v3142 = vmul.f32 %v3137, %v846
          %v3143 = vmul.f32 %v3139, %v846
          %v3144 = vadd.f32 %v3140, 1e-05
          %v3145 = vadd.f32 %v3141, 1e-05
          %v3146 = vadd.f32 %v3142, 1e-05
          %v3147 = vadd.f32 %v3143, 1e-05
          %v3148 = vrsqrt.pop %v3144
          %v3149 = vrsqrt.pop %v3145
          %v3150 = vrsqrt.pop %v3146
          %v3151 = vrsqrt.pop %v3147
          %v3152 = vmul.f32 %v3124, %v3148
          %v3153 = vmul.f32 %v3125, %v3149
          %v3154 = vmul.f32 %v3126, %v3150
          %v3155 = vmul.f32 %v3127, %v3151
          %v3157 = vlaneseq
          %v3158 = vshrl.u32 %v3157, 7
          %v3159 = vsub.s32 0, %v3158
          %v3160 = vrot.slane %v3110, %v3159
          %v3162 = vmul.f32 %v3152, %v3160
          %v3163 = vmul.f32 %v3153, %v3160
          %v3164 = vmul.f32 %v3154, %v3160
          %v3165 = vmul.f32 %v3155, %v3160
          %v3167 = vlaneseq
          %v3168 = vshrl.u32 %v3167, 7
          %v3169 = vsub.s32 0, %v3168
          %v3170 = vrot.slane %v3111, %v3169
          %v3172 = vadd.f32 %v3162, %v3170
          %v3173 = vadd.f32 %v3163, %v3170
          %v3174 = vadd.f32 %v3164, %v3170
          %v3175 = vadd.f32 %v3165, %v3170
          %3176 = vst [vmem:[#allocation15] sm:$0xff] %v3172
          %3177 = vst [vmem:[#allocation15 + $0x8] sm:$0xff] %v3173
          %3178 = vst [vmem:[#allocation15 + $0x10] sm:$0xff] %v3174
          %3179 = vst [vmem:[#allocation15 + $0x18] sm:$0xff] %v3175
        $region116: #{tpu_custom_call.1} parent=79 // pred_fallthru
          _
        // Predicated region
        $region117: #{tpu_custom_call.1} parent=79 // pred_check
          %p3180 = pneg %p447
        $region118: #{tpu_custom_call.1} parent=79 // pred_check_branch
          %3182 = sbr.rel (%p3180) target = $region120
        $region119: #{tpu_custom_call.1} parent=79 // pred_region
          %s3184 = ssub.s32 512, 512
          %3185 = vsyncadd [#allocation5], %s3184
          %s3186 = smul.addr %s41, 4
          %s3187 = smul.addr %s3186, 128
          %s3188 = scalar_lea.hbm %s15, %s3187
          %s3189 = sshll.u32 [#allocation15], 4
          %s3190 = int_to_ptr.vmem [resolvable:$true] %s3189
          %3195 = dma.vmem_to_hbm [thread:$0]  %s3190, 512, %s3188, [#allocation5], 128, 128, 8
        $region120: #{tpu_custom_call.1} parent=79 // pred_fallthru
          _
        // Predicated region
        $region121: #{tpu_custom_call.1} parent=79 // pred_check
          %p3196 = pneg %p447
        $region122: #{tpu_custom_call.1} parent=79 // pred_check_branch
          %3198 = sbr.rel (%p3196) target = $region124
        $region123: #{tpu_custom_call.1} parent=79 // pred_region
          %3199 = dma.done [#allocation5], 512
        $region124: #{tpu_custom_call.1} parent=79 // pred_fallthru
          _
      $region80: #{tpu_custom_call.1} parent=5 // pred_fallthru
        _
      %p3200 = scmp.le.s32.totalorder 2, %s32
      // Predicated region
      $region125: #{tpu_custom_call.1} parent=5 // pred_check
        %p3201 = pneg %p3200
      $region126: #{tpu_custom_call.1} parent=5 // pred_check_branch
        %3203 = sbr.rel (%p3201) target = $region128
      $region127: #{tpu_custom_call.1} parent=5 // pred_region
        %s3204 = ssub.s32 %s32, 2
      $region128: #{tpu_custom_call.1} parent=5 // pred_fallthru
        _
    $region6: #{tpu_custom_call.1} parent=1 // loop_footer
      %s36 = sadd.s32 1, %s32
    $region7: #{tpu_custom_call.1} parent=1 // loop_footer_branch
      %31 = sbr.rel target = $region3
    $region8: #{tpu_custom_call.1} parent=1 // loop_exit
      _
    %3205 = vsyncpa [#allocation4], 1
    %s3206 = scalar_lea.sflag [#allocation4], 1
    %3207 = vsyncpa %s3206, 1
    %3208 = vsyncpa [#allocation7], 1
    %s3209 = scalar_lea.sflag [#allocation7], 1
    %3210 = vsyncpa %s3209, 1
    %3211 = vsyncpa [#allocation10], 1
    %s3212 = scalar_lea.sflag [#allocation10], 1
    %3213 = vsyncpa %s3212, 1
    %3214 = vsyncpa [#allocation13], 1
    %s3215 = scalar_lea.sflag [#allocation13], 1
    %3216 = vsyncpa %s3215, 1
    %3217 = vsyncpa [#allocation5], 1
    %s3218 = scalar_lea.sflag [#allocation5], 1
    %3219 = vsyncpa %s3218, 1

</llo_original>
